<compile_context>
chip_gen: v7x
topology: tpu7x:2x2x1
jax: 0.10.0
libtpu: 0.0.40
codegen_flags: <defaults>
</compile_context>

<pallas_src>
import jax
import jax.numpy as jnp
from jax.experimental import pallas as pl
from jax.experimental.pallas import tpu as pltpu

BN_EPS = 1e-5


def _cdiv(a, b):
    return -(-a // b)


def _round_up(x, m):
    return _cdiv(x, m) * m


# ---------------------------------------------------------------------------
# Fused Pallas kernel:  out = PReLU(x @ W + shift, alpha)
# Grid = (row tiles [parallel], K tiles [arbitrary]); f32 accumulator scratch.
# ---------------------------------------------------------------------------
def _gemm_bias_prelu_kernel(x_ref, w_ref, shift_ref, alpha_ref, o_ref, acc_ref):
    k = pl.program_id(1)

    @pl.when(k == 0)
    def _init():
        acc_ref[...] = jnp.zeros_like(acc_ref)

    acc_ref[...] += jnp.dot(x_ref[...], w_ref[...],
                            preferred_element_type=jnp.float32)

    @pl.when(k == pl.num_programs(1) - 1)
    def _finalize():
        z = acc_ref[...] + shift_ref[...]
        alpha = alpha_ref[0]
        o_ref[...] = jnp.where(z >= 0.0, z, alpha * z)


def _choose_tile_m(M):
    # Enough row tiles that (a) tiles stay <= ~512 rows and (b) there are >= 2
    # grid steps when there is enough work (double buffering + megacore).
    n_tiles = max(_cdiv(M, 512), 2 if M >= 32 else 1)
    return _round_up(_cdiv(M, n_tiles), 16)


def _choose_tile_k(K):
    # Largest multiple of 128 dividing K that is <= 2048; otherwise the full K
    # (full-extent blocks are always legal; Mosaic pads internally in VMEM).
    if K <= 2048 or K % 128 != 0:
        return K
    for tk in range(2048, 127, -128):
        if K % tk == 0:
            return tk
    return K


def gemm_bias_prelu(x, w, shift, alpha):
    """PReLU(x @ w + shift, alpha).  x:(M,K), w:(K,N), shift:(N,). Returns (M,N) f32."""
    M, K = x.shape
    Kw, N = w.shape
    assert K == Kw

    tile_m = _choose_tile_m(M)
    M_pad = _round_up(M, tile_m)
    tile_k = _choose_tile_k(K)
    n_k = K // tile_k
    N_pad = _round_up(N, 128)          # lane-dense output / weight columns

    # bf16 MXU operands; accumulation & epilogue stay f32 inside the kernel.
    x_p = x.astype(jnp.bfloat16)
    w_p = w.astype(jnp.bfloat16)
    shift_p = shift.reshape(1, N).astype(jnp.float32)
    if M_pad != M:
        x_p = jnp.pad(x_p, ((0, M_pad - M), (0, 0)))
    if N_pad != N:
        w_p = jnp.pad(w_p, ((0, 0), (0, N_pad - N)))
        shift_p = jnp.pad(shift_p, ((0, 0), (0, N_pad - N)))
    alpha_p = jnp.asarray(alpha, jnp.float32).reshape(1)

    out = pl.pallas_call(
        _gemm_bias_prelu_kernel,
        out_shape=jax.ShapeDtypeStruct((M_pad, N_pad), jnp.float32),
        grid=(M_pad // tile_m, n_k),
        in_specs=[
            pl.BlockSpec((tile_m, tile_k), lambda i, k: (i, k)),   # activations
            pl.BlockSpec((tile_k, N_pad), lambda i, k: (k, 0)),    # weights (BN scale folded)
            pl.BlockSpec((1, N_pad), lambda i, k: (0, 0)),         # conv bias + BN shift
            pl.BlockSpec(memory_space=pltpu.MemorySpace.SMEM),     # PReLU alpha (scalar)
        ],
        out_specs=pl.BlockSpec((tile_m, N_pad), lambda i, k: (i, 0)),
        scratch_shapes=[pltpu.VMEM((tile_m, N_pad), jnp.float32)],
        compiler_params=pltpu.CompilerParams(
            dimension_semantics=("parallel", "arbitrary")),
    )(x_p, w_p, shift_p, alpha_p)
    return out[:M, :N]


# ---------------------------------------------------------------------------
# Wrapper plumbing (layout only): im2col, stride handling, flatten
# ---------------------------------------------------------------------------
def _im2col_nhwc(x, k, stride):
    """x:(B,H,W,C) -> patches:(B*OH*OW, k*k*C), feature order (dh, dw, c)."""
    B, H, W, C = x.shape
    OH = (H - k) // stride + 1
    OW = (W - k) // stride + 1
    cols = []
    for dh in range(k):
        for dw in range(k):
            cols.append(x[:, dh:dh + (OH - 1) * stride + 1:stride,
                             dw:dw + (OW - 1) * stride + 1:stride, :])
    patches = jnp.concatenate(cols, axis=-1)
    return patches.reshape(B * OH * OW, k * k * C), OH, OW


def _conv_bn_prelu(x_nhwc, p, stride):
    B = x_nhwc.shape[0]
    cout, cin, kh, kw = p["w"].shape
    patches, OH, OW = _im2col_nhwc(x_nhwc, kh, stride)
    # PyTorch OIHW weight -> (kh*kw*cin, cout), matching the patch feature order.
    wmat = jnp.transpose(p["w"], (2, 3, 1, 0)).reshape(kh * kw * cin, cout)
    scale = p["gamma"] * jax.lax.rsqrt(p["var"] + BN_EPS)
    w_folded = wmat * scale[None, :]                      # BN scale into weights
    shift = (p["b"] - p["mean"]) * scale + p["beta"]      # bias + BN shift
    out = gemm_bias_prelu(patches, w_folded, shift, p["alpha"])
    return out.reshape(B, OH, OW, cout)


def mnist_encoder_forward(params, x_nchw):
    B = x_nchw.shape[0]
    y = jnp.transpose(x_nchw, (0, 2, 3, 1))                 # NHWC
    y = _conv_bn_prelu(y, params["conv1"], stride=1)        # (B,26,26,32)
    y = _conv_bn_prelu(y, params["conv2"], stride=2)        # (B,12,12,32)
    y = _conv_bn_prelu(y, params["conv3"], stride=1)        # (B,10,10,64)
    # nn.Flatten on NCHW ordering
    feats = jnp.transpose(y, (0, 3, 1, 2)).reshape(B, -1)   # (B, 6400)
    fc = params["fc"]
    # alpha = 1 -> plain Linear(6400, 128) through the same fused kernel.
    return gemm_bias_prelu(feats, fc["w"].T, fc["b"], 1.0)


# ---------------------------------------------------------------------------
# Plain-JAX f32 reference (PyTorch semantics) for correctness checking
# ---------------------------------------------------------------------------
def reference_forward(params, x_nchw):
    def bn_prelu(y, p):
        c = y.shape[1]
        y = y + p["b"].reshape(1, c, 1, 1)
        y = (y - p["mean"].reshape(1, c, 1, 1)) / jnp.sqrt(p["var"].reshape(1, c, 1, 1) + BN_EPS)
        y = y * p["gamma"].reshape(1, c, 1, 1) + p["beta"].reshape(1, c, 1, 1)
        return jnp.where(y >= 0, y, p["alpha"] * y)

    dn = ("NCHW", "OIHW", "NCHW")
    y = jax.lax.conv_general_dilated(x_nchw, params["conv1"]["w"], (1, 1), "VALID", dimension_numbers=dn)
    y = bn_prelu(y, params["conv1"])
    y = jax.lax.conv_general_dilated(y, params["conv2"]["w"], (2, 2), "VALID", dimension_numbers=dn)
    y = bn_prelu(y, params["conv2"])
    y = jax.lax.conv_general_dilated(y, params["conv3"]["w"], (1, 1), "VALID", dimension_numbers=dn)
    y = bn_prelu(y, params["conv3"])
    feats = y.reshape(y.shape[0], -1)
    return feats @ params["fc"]["w"].T + params["fc"]["b"]


# ---------------------------------------------------------------------------
# Deterministic parameter init (PyTorch-like layouts)
# ---------------------------------------------------------------------------
def init_params(key):
    def conv_block(k, cin, cout, ksz):
        k1, k2, k3, k4, k5, k6 = jax.random.split(k, 6)
        fan_in = cin * ksz * ksz
        bound = 1.0 / jnp.sqrt(jnp.float32(fan_in))
        return {
            "w": jax.random.uniform(k1, (cout, cin, ksz, ksz), jnp.float32, -bound, bound),
            "b": jax.random.uniform(k2, (cout,), jnp.float32, -bound, bound),
            "gamma": 1.0 + 0.1 * jax.random.normal(k3, (cout,), jnp.float32),
            "beta": 0.1 * jax.random.normal(k4, (cout,), jnp.float32),
            "mean": 0.1 * jax.random.normal(k5, (cout,), jnp.float32),
            "var": jax.random.uniform(k6, (cout,), jnp.float32, 0.5, 1.5),
            "alpha": jnp.float32(0.25),   # nn.PReLU() default (num_parameters=1)
        }

    k1, k2, k3, k4 = jax.random.split(key, 4)
    kfw, kfb = jax.random.split(k4)
    bound = 1.0 / jnp.sqrt(jnp.float32(6400))
    return {
        "conv1": conv_block(k1, 1, 32, 3),
        "conv2": conv_block(k2, 32, 32, 3),
        "conv3": conv_block(k3, 32, 64, 3),
        "fc": {
            "w": jax.random.uniform(kfw, (128, 6400), jnp.float32, -bound, bound),
            "b": jax.random.uniform(kfb, (128,), jnp.float32, -bound, bound),
        },
    }


if __name__ == "__main__":
    key = jax.random.PRNGKey(0)
    k_params, k_x = jax.random.split(key)
    params = init_params(k_params)

    B = 4
    x = jax.random.normal(k_x, (B, 1, 28, 28), jnp.float32)   # MNIST-shaped input

    fwd = jax.jit(mnist_encoder_forward)
    out = jax.block_until_ready(fwd(params, x))
    assert out.shape == (B, 128) and out.dtype == jnp.float32

    ref = jax.block_until_ready(reference_forward(params, x))
    max_err = float(jnp.max(jnp.abs(out - ref)))
    # bf16 MXU operands with f32 accumulation -> relaxed tolerance vs f32 ref.
    assert jnp.allclose(out, ref, atol=5e-2, rtol=5e-2), max_err

    print("KERNEL_OK")
</pallas_src>

<mosaic_0001>
module attributes {stable_mosaic.version = 11 : i64} {
  func.func @_gemm_bias_prelu_kernel(%arg0: i32, %arg1: i32, %arg2: memref<464x9xbf16, #tpu.memory_space<vmem>>, %arg3: memref<9x128xbf16, #tpu.memory_space<vmem>>, %arg4: memref<1x128xf32, #tpu.memory_space<vmem>>, %arg5: memref<1xf32, #tpu.memory_space<smem>>, %arg6: memref<464x128xf32, #tpu.memory_space<vmem>>, %arg7: memref<464x128xf32, #tpu.memory_space<vmem>>) attributes {dimension_semantics = [#tpu.dimension_semantics<parallel>, #tpu.dimension_semantics<arbitrary>], iteration_bounds = array<i64: 6, 1>, scalar_prefetch = 0 : i64, scratch_operands = 1 : i64, tpu.core_type = #tpu.core_type<tc>, window_params = [{transform_indices = @transform_0, window_bounds = array<i64: 464, 9>}, {transform_indices = @transform_1, window_bounds = array<i64: 9, 128>}, {pipeline_mode = #tpu.pipeline_mode<synchronous>, transform_indices = @transform_2, window_bounds = array<i64: 1, 128>}, {transform_indices = @transform_3, window_bounds = array<i64: 1>}, {transform_indices = @transform_4, window_bounds = array<i64: 464, 128>}]} {
    %c0_i32 = arith.constant 0 : i32
    %0 = arith.cmpi eq, %arg1, %c0_i32 : i32
    %1 = arith.extui %0 : i1 to i32
    %c0_i32_0 = arith.constant 0 : i32
    %2 = arith.cmpi ne, %1, %c0_i32_0 : i32
    scf.if %2 {
      %cst_10 = arith.constant 0.000000e+00 : f32
      %12 = vector.broadcast %cst_10 : f32 to vector<464x128xf32>
      %c0_11 = arith.constant 0 : index
      %c0_12 = arith.constant 0 : index
      %13 = vector.load %arg7[%c0_11, %c0_12] : memref<464x128xf32, #tpu.memory_space<vmem>>, vector<464x128xf32>
      tpu.vector_store %arg7[%c0_11, %c0_12], %12 {strides = array<i32>} : memref<464x128xf32, #tpu.memory_space<vmem>>, vector<464x128xf32>,
    } else {
    }
    %c0 = arith.constant 0 : index
    %c0_1 = arith.constant 0 : index
    %3 = vector.load %arg7[%c0, %c0_1] : memref<464x128xf32, #tpu.memory_space<vmem>>, vector<464x128xf32>
    %c0_2 = arith.constant 0 : index
    %c0_3 = arith.constant 0 : index
    %4 = vector.load %arg2[%c0_2, %c0_3] : memref<464x9xbf16, #tpu.memory_space<vmem>>, vector<464x9xbf16>
    %c0_4 = arith.constant 0 : index
    %c0_5 = arith.constant 0 : index
    %5 = vector.load %arg3[%c0_4, %c0_5] : memref<9x128xbf16, #tpu.memory_space<vmem>>, vector<9x128xbf16>
    %cst = arith.constant dense<0.000000e+00> : vector<464x128xf32>
    %6 = tpu.matmul %4, %5, %cst {dimension_numbers = #tpu.dot_dimension_numbers<[1], [0], [0], [1], [0, 0, 1, 1], [], []>} : vector<464x9xbf16>, vector<9x128xbf16>, vector<464x128xf32> -> vector<464x128xf32>
    %7 = arith.addf %3, %6 : vector<464x128xf32>
    %c0_6 = arith.constant 0 : index
    %c0_7 = arith.constant 0 : index
    %8 = vector.load %arg7[%c0_6, %c0_7] : memref<464x128xf32, #tpu.memory_space<vmem>>, vector<464x128xf32>
    tpu.vector_store %arg7[%c0_6, %c0_7], %7 {strides = array<i32>} : memref<464x128xf32, #tpu.memory_space<vmem>>, vector<464x128xf32>,
    %c0_i32_8 = arith.constant 0 : i32
    %9 = arith.cmpi eq, %arg1, %c0_i32_8 : i32
    %10 = arith.extui %9 : i1 to i32
    %c0_i32_9 = arith.constant 0 : i32
    %11 = arith.cmpi ne, %10, %c0_i32_9 : i32
    scf.if %11 {
      %c0_10 = arith.constant 0 : index
      %c0_11 = arith.constant 0 : index
      %12 = vector.load %arg7[%c0_10, %c0_11] : memref<464x128xf32, #tpu.memory_space<vmem>>, vector<464x128xf32>
      %c0_12 = arith.constant 0 : index
      %c0_13 = arith.constant 0 : index
      %13 = vector.load %arg4[%c0_12, %c0_13] : memref<1x128xf32, #tpu.memory_space<vmem>>, vector<1x128xf32>
      %14 = vector.broadcast %13 : vector<1x128xf32> to vector<464x128xf32>
      %15 = arith.addf %12, %14 : vector<464x128xf32>
      %c0_14 = arith.constant 0 : index
      %16 = memref.load %arg5[%c0_14] : memref<1xf32, #tpu.memory_space<smem>>
      %cst_15 = arith.constant 0.000000e+00 : f32
      %17 = vector.broadcast %cst_15 : f32 to vector<464x128xf32>
      %18 = arith.cmpf oge, %15, %17 : vector<464x128xf32>
      %19 = vector.broadcast %16 : f32 to vector<464x128xf32>
      %20 = arith.mulf %19, %15 : vector<464x128xf32>
      %21 = arith.select %18, %15, %20 : vector<464x128xi1>, vector<464x128xf32>
      %c0_16 = arith.constant 0 : index
      %c0_17 = arith.constant 0 : index
      %22 = vector.load %arg6[%c0_16, %c0_17] : memref<464x128xf32, #tpu.memory_space<vmem>>, vector<464x128xf32>
      tpu.vector_store %arg6[%c0_16, %c0_17], %21 {strides = array<i32>} : memref<464x128xf32, #tpu.memory_space<vmem>>, vector<464x128xf32>,
    } else {
    }
    return
  }
  func.func @transform_0(%arg0: i32, %arg1: i32) -> (i32, i32) {
    %c0_i32 = arith.constant 0 : i32
    return %arg0, %arg1 : i32, i32
  }
  func.func @transform_1(%arg0: i32, %arg1: i32) -> (i32, i32) {
    %c0_i32 = arith.constant 0 : i32
    %c0_i32_0 = arith.constant 0 : i32
    return %arg1, %c0_i32 : i32, i32
  }
  func.func @transform_2(%arg0: i32, %arg1: i32) -> (i32, i32) {
    %c0_i32 = arith.constant 0 : i32
    %c0_i32_0 = arith.constant 0 : i32
    %c0_i32_1 = arith.constant 0 : i32
    return %c0_i32, %c0_i32_0 : i32, i32
  }
  func.func @transform_3(%arg0: i32, %arg1: i32) -> i32 {
    %c0_i32 = arith.constant 0 : i32
    %c0_i32_0 = arith.constant 0 : i32
    return %c0_i32 : i32
  }
  func.func @transform_4(%arg0: i32, %arg1: i32) -> (i32, i32) {
    %c0_i32 = arith.constant 0 : i32
    %c0_i32_0 = arith.constant 0 : i32
    return %arg0, %c0_i32 : i32, i32
  }
}

module attributes {stable_mosaic.version = 11 : i64} {
  func.func @_gemm_bias_prelu_kernel(%arg0: i32, %arg1: i32, %arg2: memref<288x288xbf16, #tpu.memory_space<vmem>>, %arg3: memref<288x128xbf16, #tpu.memory_space<vmem>>, %arg4: memref<1x128xf32, #tpu.memory_space<vmem>>, %arg5: memref<1xf32, #tpu.memory_space<smem>>, %arg6: memref<288x128xf32, #tpu.memory_space<vmem>>, %arg7: memref<288x128xf32, #tpu.memory_space<vmem>>) attributes {dimension_semantics = [#tpu.dimension_semantics<parallel>, #tpu.dimension_semantics<arbitrary>], iteration_bounds = array<i64: 2, 1>, scalar_prefetch = 0 : i64, scratch_operands = 1 : i64, tpu.core_type = #tpu.core_type<tc>, window_params = [{transform_indices = @transform_0, window_bounds = array<i64: 288, 288>}, {transform_indices = @transform_1, window_bounds = array<i64: 288, 128>}, {pipeline_mode = #tpu.pipeline_mode<synchronous>, transform_indices = @transform_2, window_bounds = array<i64: 1, 128>}, {transform_indices = @transform_3, window_bounds = array<i64: 1>}, {transform_indices = @transform_4, window_bounds = array<i64: 288, 128>}]} {
    %c0_i32 = arith.constant 0 : i32
    %0 = arith.cmpi eq, %arg1, %c0_i32 : i32
    %1 = arith.extui %0 : i1 to i32
    %c0_i32_0 = arith.constant 0 : i32
    %2 = arith.cmpi ne, %1, %c0_i32_0 : i32
    scf.if %2 {
      %cst_10 = arith.constant 0.000000e+00 : f32
      %12 = vector.broadcast %cst_10 : f32 to vector<288x128xf32>
      %c0_11 = arith.constant 0 : index
      %c0_12 = arith.constant 0 : index
      %13 = vector.load %arg7[%c0_11, %c0_12] : memref<288x128xf32, #tpu.memory_space<vmem>>, vector<288x128xf32>
      tpu.vector_store %arg7[%c0_11, %c0_12], %12 {strides = array<i32>} : memref<288x128xf32, #tpu.memory_space<vmem>>, vector<288x128xf32>,
    } else {
    }
    %c0 = arith.constant 0 : index
    %c0_1 = arith.constant 0 : index
    %3 = vector.load %arg7[%c0, %c0_1] : memref<288x128xf32, #tpu.memory_space<vmem>>, vector<288x128xf32>
    %c0_2 = arith.constant 0 : index
    %c0_3 = arith.constant 0 : index
    %4 = vector.load %arg2[%c0_2, %c0_3] : memref<288x288xbf16, #tpu.memory_space<vmem>>, vector<288x288xbf16>
    %c0_4 = arith.constant 0 : index
    %c0_5 = arith.constant 0 : index
    %5 = vector.load %arg3[%c0_4, %c0_5] : memref<288x128xbf16, #tpu.memory_space<vmem>>, vector<288x128xbf16>
    %cst = arith.constant dense<0.000000e+00> : vector<288x128xf32>
    %6 = tpu.matmul %4, %5, %cst {dimension_numbers = #tpu.dot_dimension_numbers<[1], [0], [0], [1], [0, 0, 1, 1], [], []>} : vector<288x288xbf16>, vector<288x128xbf16>, vector<288x128xf32> -> vector<288x128xf32>
    %7 = arith.addf %3, %6 : vector<288x128xf32>
    %c0_6 = arith.constant 0 : index
    %c0_7 = arith.constant 0 : index
    %8 = vector.load %arg7[%c0_6, %c0_7] : memref<288x128xf32, #tpu.memory_space<vmem>>, vector<288x128xf32>
    tpu.vector_store %arg7[%c0_6, %c0_7], %7 {strides = array<i32>} : memref<288x128xf32, #tpu.memory_space<vmem>>, vector<288x128xf32>,
    %c0_i32_8 = arith.constant 0 : i32
    %9 = arith.cmpi eq, %arg1, %c0_i32_8 : i32
    %10 = arith.extui %9 : i1 to i32
    %c0_i32_9 = arith.constant 0 : i32
    %11 = arith.cmpi ne, %10, %c0_i32_9 : i32
    scf.if %11 {
      %c0_10 = arith.constant 0 : index
      %c0_11 = arith.constant 0 : index
      %12 = vector.load %arg7[%c0_10, %c0_11] : memref<288x128xf32, #tpu.memory_space<vmem>>, vector<288x128xf32>
      %c0_12 = arith.constant 0 : index
      %c0_13 = arith.constant 0 : index
      %13 = vector.load %arg4[%c0_12, %c0_13] : memref<1x128xf32, #tpu.memory_space<vmem>>, vector<1x128xf32>
      %14 = vector.broadcast %13 : vector<1x128xf32> to vector<288x128xf32>
      %15 = arith.addf %12, %14 : vector<288x128xf32>
      %c0_14 = arith.constant 0 : index
      %16 = memref.load %arg5[%c0_14] : memref<1xf32, #tpu.memory_space<smem>>
      %cst_15 = arith.constant 0.000000e+00 : f32
      %17 = vector.broadcast %cst_15 : f32 to vector<288x128xf32>
      %18 = arith.cmpf oge, %15, %17 : vector<288x128xf32>
      %19 = vector.broadcast %16 : f32 to vector<288x128xf32>
      %20 = arith.mulf %19, %15 : vector<288x128xf32>
      %21 = arith.select %18, %15, %20 : vector<288x128xi1>, vector<288x128xf32>
      %c0_16 = arith.constant 0 : index
      %c0_17 = arith.constant 0 : index
      %22 = vector.load %arg6[%c0_16, %c0_17] : memref<288x128xf32, #tpu.memory_space<vmem>>, vector<288x128xf32>
      tpu.vector_store %arg6[%c0_16, %c0_17], %21 {strides = array<i32>} : memref<288x128xf32, #tpu.memory_space<vmem>>, vector<288x128xf32>,
    } else {
    }
    return
  }
  func.func @transform_0(%arg0: i32, %arg1: i32) -> (i32, i32) {
    %c0_i32 = arith.constant 0 : i32
    return %arg0, %arg1 : i32, i32
  }
  func.func @transform_1(%arg0: i32, %arg1: i32) -> (i32, i32) {
    %c0_i32 = arith.constant 0 : i32
    %c0_i32_0 = arith.constant 0 : i32
    return %arg1, %c0_i32 : i32, i32
  }
  func.func @transform_2(%arg0: i32, %arg1: i32) -> (i32, i32) {
    %c0_i32 = arith.constant 0 : i32
    %c0_i32_0 = arith.constant 0 : i32
    %c0_i32_1 = arith.constant 0 : i32
    return %c0_i32, %c0_i32_0 : i32, i32
  }
  func.func @transform_3(%arg0: i32, %arg1: i32) -> i32 {
    %c0_i32 = arith.constant 0 : i32
    %c0_i32_0 = arith.constant 0 : i32
    return %c0_i32 : i32
  }
  func.func @transform_4(%arg0: i32, %arg1: i32) -> (i32, i32) {
    %c0_i32 = arith.constant 0 : i32
    %c0_i32_0 = arith.constant 0 : i32
    return %arg0, %c0_i32 : i32, i32
  }
}

module attributes {stable_mosaic.version = 11 : i64} {
  func.func @_gemm_bias_prelu_kernel(%arg0: i32, %arg1: i32, %arg2: memref<208x288xbf16, #tpu.memory_space<vmem>>, %arg3: memref<288x128xbf16, #tpu.memory_space<vmem>>, %arg4: memref<1x128xf32, #tpu.memory_space<vmem>>, %arg5: memref<1xf32, #tpu.memory_space<smem>>, %arg6: memref<208x128xf32, #tpu.memory_space<vmem>>, %arg7: memref<208x128xf32, #tpu.memory_space<vmem>>) attributes {dimension_semantics = [#tpu.dimension_semantics<parallel>, #tpu.dimension_semantics<arbitrary>], iteration_bounds = array<i64: 2, 1>, scalar_prefetch = 0 : i64, scratch_operands = 1 : i64, tpu.core_type = #tpu.core_type<tc>, window_params = [{transform_indices = @transform_0, window_bounds = array<i64: 208, 288>}, {transform_indices = @transform_1, window_bounds = array<i64: 288, 128>}, {pipeline_mode = #tpu.pipeline_mode<synchronous>, transform_indices = @transform_2, window_bounds = array<i64: 1, 128>}, {transform_indices = @transform_3, window_bounds = array<i64: 1>}, {transform_indices = @transform_4, window_bounds = array<i64: 208, 128>}]} {
    %c0_i32 = arith.constant 0 : i32
    %0 = arith.cmpi eq, %arg1, %c0_i32 : i32
    %1 = arith.extui %0 : i1 to i32
    %c0_i32_0 = arith.constant 0 : i32
    %2 = arith.cmpi ne, %1, %c0_i32_0 : i32
    scf.if %2 {
      %cst_10 = arith.constant 0.000000e+00 : f32
      %12 = vector.broadcast %cst_10 : f32 to vector<208x128xf32>
      %c0_11 = arith.constant 0 : index
      %c0_12 = arith.constant 0 : index
      %13 = vector.load %arg7[%c0_11, %c0_12] : memref<208x128xf32, #tpu.memory_space<vmem>>, vector<208x128xf32>
      tpu.vector_store %arg7[%c0_11, %c0_12], %12 {strides = array<i32>} : memref<208x128xf32, #tpu.memory_space<vmem>>, vector<208x128xf32>,
    } else {
    }
    %c0 = arith.constant 0 : index
    %c0_1 = arith.constant 0 : index
    %3 = vector.load %arg7[%c0, %c0_1] : memref<208x128xf32, #tpu.memory_space<vmem>>, vector<208x128xf32>
    %c0_2 = arith.constant 0 : index
    %c0_3 = arith.constant 0 : index
    %4 = vector.load %arg2[%c0_2, %c0_3] : memref<208x288xbf16, #tpu.memory_space<vmem>>, vector<208x288xbf16>
    %c0_4 = arith.constant 0 : index
    %c0_5 = arith.constant 0 : index
    %5 = vector.load %arg3[%c0_4, %c0_5] : memref<288x128xbf16, #tpu.memory_space<vmem>>, vector<288x128xbf16>
    %cst = arith.constant dense<0.000000e+00> : vector<208x128xf32>
    %6 = tpu.matmul %4, %5, %cst {dimension_numbers = #tpu.dot_dimension_numbers<[1], [0], [0], [1], [0, 0, 1, 1], [], []>} : vector<208x288xbf16>, vector<288x128xbf16>, vector<208x128xf32> -> vector<208x128xf32>
    %7 = arith.addf %3, %6 : vector<208x128xf32>
    %c0_6 = arith.constant 0 : index
    %c0_7 = arith.constant 0 : index
    %8 = vector.load %arg7[%c0_6, %c0_7] : memref<208x128xf32, #tpu.memory_space<vmem>>, vector<208x128xf32>
    tpu.vector_store %arg7[%c0_6, %c0_7], %7 {strides = array<i32>} : memref<208x128xf32, #tpu.memory_space<vmem>>, vector<208x128xf32>,
    %c0_i32_8 = arith.constant 0 : i32
    %9 = arith.cmpi eq, %arg1, %c0_i32_8 : i32
    %10 = arith.extui %9 : i1 to i32
    %c0_i32_9 = arith.constant 0 : i32
    %11 = arith.cmpi ne, %10, %c0_i32_9 : i32
    scf.if %11 {
      %c0_10 = arith.constant 0 : index
      %c0_11 = arith.constant 0 : index
      %12 = vector.load %arg7[%c0_10, %c0_11] : memref<208x128xf32, #tpu.memory_space<vmem>>, vector<208x128xf32>
      %c0_12 = arith.constant 0 : index
      %c0_13 = arith.constant 0 : index
      %13 = vector.load %arg4[%c0_12, %c0_13] : memref<1x128xf32, #tpu.memory_space<vmem>>, vector<1x128xf32>
      %14 = vector.broadcast %13 : vector<1x128xf32> to vector<208x128xf32>
      %15 = arith.addf %12, %14 : vector<208x128xf32>
      %c0_14 = arith.constant 0 : index
      %16 = memref.load %arg5[%c0_14] : memref<1xf32, #tpu.memory_space<smem>>
      %cst_15 = arith.constant 0.000000e+00 : f32
      %17 = vector.broadcast %cst_15 : f32 to vector<208x128xf32>
      %18 = arith.cmpf oge, %15, %17 : vector<208x128xf32>
      %19 = vector.broadcast %16 : f32 to vector<208x128xf32>
      %20 = arith.mulf %19, %15 : vector<208x128xf32>
      %21 = arith.select %18, %15, %20 : vector<208x128xi1>, vector<208x128xf32>
      %c0_16 = arith.constant 0 : index
      %c0_17 = arith.constant 0 : index
      %22 = vector.load %arg6[%c0_16, %c0_17] : memref<208x128xf32, #tpu.memory_space<vmem>>, vector<208x128xf32>
      tpu.vector_store %arg6[%c0_16, %c0_17], %21 {strides = array<i32>} : memref<208x128xf32, #tpu.memory_space<vmem>>, vector<208x128xf32>,
    } else {
    }
    return
  }
  func.func @transform_0(%arg0: i32, %arg1: i32) -> (i32, i32) {
    %c0_i32 = arith.constant 0 : i32
    return %arg0, %arg1 : i32, i32
  }
  func.func @transform_1(%arg0: i32, %arg1: i32) -> (i32, i32) {
    %c0_i32 = arith.constant 0 : i32
    %c0_i32_0 = arith.constant 0 : i32
    return %arg1, %c0_i32 : i32, i32
  }
  func.func @transform_2(%arg0: i32, %arg1: i32) -> (i32, i32) {
    %c0_i32 = arith.constant 0 : i32
    %c0_i32_0 = arith.constant 0 : i32
    %c0_i32_1 = arith.constant 0 : i32
    return %c0_i32, %c0_i32_0 : i32, i32
  }
  func.func @transform_3(%arg0: i32, %arg1: i32) -> i32 {
    %c0_i32 = arith.constant 0 : i32
    %c0_i32_0 = arith.constant 0 : i32
    return %c0_i32 : i32
  }
  func.func @transform_4(%arg0: i32, %arg1: i32) -> (i32, i32) {
    %c0_i32 = arith.constant 0 : i32
    %c0_i32_0 = arith.constant 0 : i32
    return %arg0, %c0_i32 : i32, i32
  }
}

module attributes {stable_mosaic.version = 11 : i64} {
  func.func @_gemm_bias_prelu_kernel(%arg0: i32, %arg1: i32, %arg2: memref<16x1280xbf16, #tpu.memory_space<vmem>>, %arg3: memref<1280x128xbf16, #tpu.memory_space<vmem>>, %arg4: memref<1x128xf32, #tpu.memory_space<vmem>>, %arg5: memref<1xf32, #tpu.memory_space<smem>>, %arg6: memref<16x128xf32, #tpu.memory_space<vmem>>, %arg7: memref<16x128xf32, #tpu.memory_space<vmem>>) attributes {dimension_semantics = [#tpu.dimension_semantics<parallel>, #tpu.dimension_semantics<arbitrary>], iteration_bounds = array<i64: 1, 5>, scalar_prefetch = 0 : i64, scratch_operands = 1 : i64, tpu.core_type = #tpu.core_type<tc>, window_params = [{transform_indices = @transform_0, window_bounds = array<i64: 16, 1280>}, {transform_indices = @transform_1, window_bounds = array<i64: 1280, 128>}, {pipeline_mode = #tpu.pipeline_mode<synchronous>, transform_indices = @transform_2, window_bounds = array<i64: 1, 128>}, {transform_indices = @transform_3, window_bounds = array<i64: 1>}, {transform_indices = @transform_4, window_bounds = array<i64: 16, 128>}]} {
    %c0_i32 = arith.constant 0 : i32
    %0 = arith.cmpi eq, %arg1, %c0_i32 : i32
    %1 = arith.extui %0 : i1 to i32
    %c0_i32_0 = arith.constant 0 : i32
    %2 = arith.cmpi ne, %1, %c0_i32_0 : i32
    scf.if %2 {
      %cst_9 = arith.constant 0.000000e+00 : f32
      %12 = vector.broadcast %cst_9 : f32 to vector<16x128xf32>
      %c0_10 = arith.constant 0 : index
      %c0_11 = arith.constant 0 : index
      %13 = vector.load %arg7[%c0_10, %c0_11] : memref<16x128xf32, #tpu.memory_space<vmem>>, vector<16x128xf32>
      tpu.vector_store %arg7[%c0_10, %c0_11], %12 {strides = array<i32>} : memref<16x128xf32, #tpu.memory_space<vmem>>, vector<16x128xf32>,
    } else {
    }
    %c0 = arith.constant 0 : index
    %c0_1 = arith.constant 0 : index
    %3 = vector.load %arg7[%c0, %c0_1] : memref<16x128xf32, #tpu.memory_space<vmem>>, vector<16x128xf32>
    %c0_2 = arith.constant 0 : index
    %c0_3 = arith.constant 0 : index
    %4 = vector.load %arg2[%c0_2, %c0_3] : memref<16x1280xbf16, #tpu.memory_space<vmem>>, vector<16x1280xbf16>
    %c0_4 = arith.constant 0 : index
    %c0_5 = arith.constant 0 : index
    %5 = vector.load %arg3[%c0_4, %c0_5] : memref<1280x128xbf16, #tpu.memory_space<vmem>>, vector<1280x128xbf16>
    %cst = arith.constant dense<0.000000e+00> : vector<16x128xf32>
    %6 = tpu.matmul %4, %5, %cst {dimension_numbers = #tpu.dot_dimension_numbers<[1], [0], [0], [1], [0, 0, 1, 1], [], []>} : vector<16x1280xbf16>, vector<1280x128xbf16>, vector<16x128xf32> -> vector<16x128xf32>
    %7 = arith.addf %3, %6 : vector<16x128xf32>
    %c0_6 = arith.constant 0 : index
    %c0_7 = arith.constant 0 : index
    %8 = vector.load %arg7[%c0_6, %c0_7] : memref<16x128xf32, #tpu.memory_space<vmem>>, vector<16x128xf32>
    tpu.vector_store %arg7[%c0_6, %c0_7], %7 {strides = array<i32>} : memref<16x128xf32, #tpu.memory_space<vmem>>, vector<16x128xf32>,
    %c4_i32 = arith.constant 4 : i32
    %9 = arith.cmpi eq, %arg1, %c4_i32 : i32
    %10 = arith.extui %9 : i1 to i32
    %c0_i32_8 = arith.constant 0 : i32
    %11 = arith.cmpi ne, %10, %c0_i32_8 : i32
    scf.if %11 {
      %c0_9 = arith.constant 0 : index
      %c0_10 = arith.constant 0 : index
      %12 = vector.load %arg7[%c0_9, %c0_10] : memref<16x128xf32, #tpu.memory_space<vmem>>, vector<16x128xf32>
      %c0_11 = arith.constant 0 : index
      %c0_12 = arith.constant 0 : index
      %13 = vector.load %arg4[%c0_11, %c0_12] : memref<1x128xf32, #tpu.memory_space<vmem>>, vector<1x128xf32>
      %14 = vector.broadcast %13 : vector<1x128xf32> to vector<16x128xf32>
      %15 = arith.addf %12, %14 : vector<16x128xf32>
      %c0_13 = arith.constant 0 : index
      %16 = memref.load %arg5[%c0_13] : memref<1xf32, #tpu.memory_space<smem>>
      %cst_14 = arith.constant 0.000000e+00 : f32
      %17 = vector.broadcast %cst_14 : f32 to vector<16x128xf32>
      %18 = arith.cmpf oge, %15, %17 : vector<16x128xf32>
      %19 = vector.broadcast %16 : f32 to vector<16x128xf32>
      %20 = arith.mulf %19, %15 : vector<16x128xf32>
      %21 = arith.select %18, %15, %20 : vector<16x128xi1>, vector<16x128xf32>
      %c0_15 = arith.constant 0 : index
      %c0_16 = arith.constant 0 : index
      %22 = vector.load %arg6[%c0_15, %c0_16] : memref<16x128xf32, #tpu.memory_space<vmem>>, vector<16x128xf32>
      tpu.vector_store %arg6[%c0_15, %c0_16], %21 {strides = array<i32>} : memref<16x128xf32, #tpu.memory_space<vmem>>, vector<16x128xf32>,
    } else {
    }
    return
  }
  func.func @transform_0(%arg0: i32, %arg1: i32) -> (i32, i32) {
    %c0_i32 = arith.constant 0 : i32
    return %arg0, %arg1 : i32, i32
  }
  func.func @transform_1(%arg0: i32, %arg1: i32) -> (i32, i32) {
    %c0_i32 = arith.constant 0 : i32
    %c0_i32_0 = arith.constant 0 : i32
    return %arg1, %c0_i32 : i32, i32
  }
  func.func @transform_2(%arg0: i32, %arg1: i32) -> (i32, i32) {
    %c0_i32 = arith.constant 0 : i32
    %c0_i32_0 = arith.constant 0 : i32
    %c0_i32_1 = arith.constant 0 : i32
    return %c0_i32, %c0_i32_0 : i32, i32
  }
  func.func @transform_3(%arg0: i32, %arg1: i32) -> i32 {
    %c0_i32 = arith.constant 0 : i32
    %c0_i32_0 = arith.constant 0 : i32
    return %c0_i32 : i32
  }
  func.func @transform_4(%arg0: i32, %arg1: i32) -> (i32, i32) {
    %c0_i32 = arith.constant 0 : i32
    %c0_i32_0 = arith.constant 0 : i32
    return %arg0, %c0_i32 : i32, i32
  }
}

</mosaic_0001>

<llo_original>
// kernel: mnist_encoder_forward.4
$region0: #{mnist_encoder_forward.4}
  #allocation0 [shape = 'u32[]', space=smem, size = 0x4, offset = 0x4, fixed_abs, tag = 'smem constant byte address 0x4 - core index']
  #allocation1 [shape = 'u32[144,128]{1,0:T(1,128)}', space=vmem, size = 0x12000, scoped, tag = 'internal scratch']
  #allocation2 [shape = 'f32[464,128]{1,0:T(8,128)}', space=vmem, size = 0x3a000, scoped, tag = 'scratch operand']
  #allocation3 [shape = 'f32[1]{0:T(128)S(6)}', space=smem, size = 0x200, scoped, tag = 'scoped memory for mnist_encoder_forward.4']
  %s0 = inlined_call_operand.vmem [shape: bf16[2784,9], index: 0, kind: input, shape index: {}]
  %s1 = inlined_call_operand.vmem [shape: bf16[9,128], index: 1, kind: input, shape index: {}]
  %s2 = inlined_call_operand.vmem [shape: f32[1,128], index: 2, kind: input, shape index: {}]
  %s3 = inlined_call_operand.<no memory space> [shape: f32[1], index: 3, kind: input, shape index: {}]
  %s4 = inlined_call_operand.vmem [shape: f32[2784,128], index: 4, kind: output, shape index: {}]
  %s5 = sld [smem:[#allocation0]]
  $region57: #{mnist_encoder_forward.4} parent=0
    _
  %s7 = ssub.s32 1, %s5
  %s8 = scalar_select 0, %s7, %s5
  %9 = sst [smem:[#allocation3]] %s3
  loop: start=0, step=1, limit=8
  $region2: #{mnist_encoder_forward.4} parent=0 // loop_pre_header
    _
  $region3: #{mnist_encoder_forward.4} parent=0 // loop_header
    %s11 = sphi 0, %s15
    %p12 = scmp.ge.s32.totalorder %s11, 8
    %s18 = sphi 0, %s30
    %s19 = sphi 0, %s26
    %s20 = sphi 0, %s18
    %s21 = sphi 0, %s19
    %s22 = sphi 0, %s20
    %s23 = sphi 0, %s21
    %s35 = sphi 0, %s37
    %s38 = sphi 0, %s35
    %s39 = sphi 0, %s38
    %s55 = sphi 0, %s39
    %s61 = sphi 0, %s63
    %s64 = sphi 0, %s61
    %s65 = sphi 0, %s64
    %s81 = sphi 0, %s65
    %s85 = sphi 0, %s85
    %s87 = sphi 0, %s85
    %s88 = sphi 0, %s87
    %s102 = sphi 0, %s88
    %s106 = sphi 0, %s106
    %s108 = sphi 0, %s106
    %s109 = sphi 0, %s108
    %s123 = sphi 0, %s109
    %s129 = sphi 0, %s131
    %s132 = sphi 0, %s129
    %s133 = sphi 0, %s132
    %s149 = sphi 0, %s133
  $region4: #{mnist_encoder_forward.4} parent=0 // loop_header_branch
    %14 = sbr.rel (%p12) target = $region8
  $region5: #{mnist_encoder_forward.4} parent=0 // loop_body
    %s16 = ssub.s32 %s11, 1
    %s17 = ssub.s32 %s11, 2
    %s24 = sadd.s32 1, %s19
    %p25 = scmp.ge.s32.totalorder %s24, 1
    %s26 = scalar_select %p25, 0, %s24
    %s27 = sadd.s32 1, %s18
    %s28 = scalar_select %p25, %s27, %s18
    %p29 = scmp.ge.s32.totalorder %s28, 6
    %s30 = scalar_select %p29, 0, %s28
    %s31 = ssub.s32 %s18, %s30
    %s32 = ssub.s32 %s19, %s26
    %s33 = sor.u32 %s31, %s32
    %p34 = scmp.eq.s32.totalorder %s33, 0
    %s36 = sadd.s32 %s35, 1
    %s37 = scalar_select %p34, %s35, %s36
    %p40 = pneg %p34
    %p41 = scmp.eq.s32.totalorder %s11, 5
    %p42 = por %p40, %p41
    %p43 = scmp.ne.s32.totalorder %s35, %s38
    %p44 = scmp.eq.s32.totalorder %s11, 0
    %p45 = por %p43, %p44
    %p46 = scmp.ne.s32.totalorder %s35, %s38
    %p47 = scmp.eq.s32.totalorder %s16, 5
    %p48 = por %p46, %p47
    %p49 = scmp.ne.s32.totalorder %s38, %s39
    %p50 = scmp.eq.s32.totalorder %s16, 0
    %p51 = por %p49, %p50
    %p52 = scmp.ne.s32.totalorder %s38, %s39
    %p53 = scmp.eq.s32.totalorder %s17, 5
    %p54 = por %p52, %p53
    %p56 = scmp.ne.s32.totalorder %s39, %s55
    %p57 = scmp.eq.s32.totalorder %s17, 0
    %p58 = por %p56, %p57
    %s59 = ssub.s32 %s19, %s26
    %p60 = scmp.eq.s32.totalorder %s59, 0
    %s62 = sadd.s32 %s61, 1
    %s63 = scalar_select %p60, %s61, %s62
    %p66 = pneg %p60
    %p67 = scmp.eq.s32.totalorder %s11, 5
    %p68 = por %p66, %p67
    %p69 = scmp.ne.s32.totalorder %s61, %s64
    %p70 = scmp.eq.s32.totalorder %s11, 0
    %p71 = por %p69, %p70
    %p72 = scmp.ne.s32.totalorder %s61, %s64
    %p73 = scmp.eq.s32.totalorder %s16, 5
    %p74 = por %p72, %p73
    %p75 = scmp.ne.s32.totalorder %s64, %s65
    %p76 = scmp.eq.s32.totalorder %s16, 0
    %p77 = por %p75, %p76
    %p78 = scmp.ne.s32.totalorder %s64, %s65
    %p79 = scmp.eq.s32.totalorder %s17, 5
    %p80 = por %p78, %p79
    %p82 = scmp.ne.s32.totalorder %s65, %s81
    %p83 = scmp.eq.s32.totalorder %s17, 0
    %p84 = por %p82, %p83
    %s86 = sadd.s32 %s85, 1
    %p89 = scmp.eq.s32.totalorder %s11, 5
    %p90 = scmp.ne.s32.totalorder %s85, %s87
    %p91 = scmp.eq.s32.totalorder %s11, 0
    %p92 = por %p90, %p91
    %p93 = scmp.ne.s32.totalorder %s85, %s87
    %p94 = scmp.eq.s32.totalorder %s16, 5
    %p95 = por %p93, %p94
    %p96 = scmp.ne.s32.totalorder %s87, %s88
    %p97 = scmp.eq.s32.totalorder %s16, 0
    %p98 = por %p96, %p97
    %p99 = scmp.ne.s32.totalorder %s87, %s88
    %p100 = scmp.eq.s32.totalorder %s17, 5
    %p101 = por %p99, %p100
    %p103 = scmp.ne.s32.totalorder %s88, %s102
    %p104 = scmp.eq.s32.totalorder %s17, 0
    %p105 = por %p103, %p104
    %s107 = sadd.s32 %s106, 1
    %p110 = scmp.eq.s32.totalorder %s11, 5
    %p111 = scmp.ne.s32.totalorder %s106, %s108
    %p112 = scmp.eq.s32.totalorder %s11, 0
    %p113 = por %p111, %p112
    %p114 = scmp.ne.s32.totalorder %s106, %s108
    %p115 = scmp.eq.s32.totalorder %s16, 5
    %p116 = por %p114, %p115
    %p117 = scmp.ne.s32.totalorder %s108, %s109
    %p118 = scmp.eq.s32.totalorder %s16, 0
    %p119 = por %p117, %p118
    %p120 = scmp.ne.s32.totalorder %s108, %s109
    %p121 = scmp.eq.s32.totalorder %s17, 5
    %p122 = por %p120, %p121
    %p124 = scmp.ne.s32.totalorder %s109, %s123
    %p125 = scmp.eq.s32.totalorder %s17, 0
    %p126 = por %p124, %p125
    %s127 = ssub.s32 %s18, %s30
    %p128 = scmp.eq.s32.totalorder %s127, 0
    %s130 = sadd.s32 %s129, 1
    %s131 = scalar_select %p128, %s129, %s130
    %p134 = pneg %p128
    %p135 = scmp.eq.s32.totalorder %s11, 5
    %p136 = por %p134, %p135
    %p137 = scmp.ne.s32.totalorder %s129, %s132
    %p138 = scmp.eq.s32.totalorder %s11, 0
    %p139 = por %p137, %p138
    %p140 = scmp.ne.s32.totalorder %s129, %s132
    %p141 = scmp.eq.s32.totalorder %s16, 5
    %p142 = por %p140, %p141
    %p143 = scmp.ne.s32.totalorder %s132, %s133
    %p144 = scmp.eq.s32.totalorder %s16, 0
    %p145 = por %p143, %p144
    %p146 = scmp.ne.s32.totalorder %s132, %s133
    %p147 = scmp.eq.s32.totalorder %s17, 5
    %p148 = por %p146, %p147
    %p150 = scmp.ne.s32.totalorder %s133, %s149
    %p151 = scmp.eq.s32.totalorder %s17, 0
    %p152 = por %p150, %p151
    %p153 = scmp.le.s32.totalorder 1, %s11
    %p154 = scmp.lt.s32.totalorder %s11, 7
    %p155 = pnand %p153, %p154
    %p156 = pneg %p155
    // Predicated region
    $region9: #{mnist_encoder_forward.4} parent=5 // pred_check
      _
    $region10: #{mnist_encoder_forward.4} parent=5 // pred_check_branch
      %158 = sbr.rel (%p155) target = $region12
    $region11: #{mnist_encoder_forward.4} parent=5 // pred_region
      %s159 = ssub.s32 %s11, 1
      // Predicated region
      $region13: #{mnist_encoder_forward.4} parent=11 // pred_check
        %p160 = pneg %p77
      $region14: #{mnist_encoder_forward.4} parent=11 // pred_check_branch
        %162 = sbr.rel (%p160) target = $region16
      $region15: #{mnist_encoder_forward.4} parent=11 // pred_region
        %s163 = smul.u32 2, %s21
        %p164 = scmp.lt.s32.totalorder %s163, 1
        %s165 = scalar_select %p164, %s163, 1
        %s166 = smul.addr %s165, 4
        %s167 = scalar_lea.vmem %s1, %s166
        %s168 = smul.u32 2, %s21
      $region16: #{mnist_encoder_forward.4} parent=11 // pred_fallthru
        _
      // Predicated region
      $region17: #{mnist_encoder_forward.4} parent=11 // pred_check
        %p169 = pneg %p98
      $region18: #{mnist_encoder_forward.4} parent=11 // pred_check_branch
        %171 = sbr.rel (%p169) target = $region20
      $region19: #{mnist_encoder_forward.4} parent=11 // pred_region
        _
      $region20: #{mnist_encoder_forward.4} parent=11 // pred_fallthru
        _
      // Predicated region
      $region21: #{mnist_encoder_forward.4} parent=11 // pred_check
        %p172 = pneg %p119
      $region22: #{mnist_encoder_forward.4} parent=11 // pred_check_branch
        %174 = sbr.rel (%p172) target = $region24
      $region23: #{mnist_encoder_forward.4} parent=11 // pred_region
        _
      $region24: #{mnist_encoder_forward.4} parent=11 // pred_fallthru
        _
    $region12: #{mnist_encoder_forward.4} parent=5 // pred_fallthru
      _
    %p175 = scmp.lt.s32.totalorder %s11, 6
    // Predicated region
    $region25: #{mnist_encoder_forward.4} parent=5 // pred_check
      %p176 = pneg %p175
    $region26: #{mnist_encoder_forward.4} parent=5 // pred_check_branch
      %178 = sbr.rel (%p176) target = $region28
    $region27: #{mnist_encoder_forward.4} parent=5 // pred_region
      // Predicated region
      $region29: #{mnist_encoder_forward.4} parent=27 // pred_check
        %p179 = pneg %p45
      $region30: #{mnist_encoder_forward.4} parent=27 // pred_check_branch
        %181 = sbr.rel (%p179) target = $region32
      $region31: #{mnist_encoder_forward.4} parent=27 // pred_region
        %s182 = smul.u32 58, %s18
        %p183 = scmp.lt.s32.totalorder %s182, 347
        %s184 = scalar_select %p183, %s182, 347
        %p185 = scmp.lt.s32.totalorder %s19, 0
        %s186 = scalar_select %p185, %s19, 0
        %s187 = sadd.s32 %s186, %s184
        %s188 = smul.addr %s187, 4
        %s189 = scalar_lea.vmem %s0, %s188
        %s190 = smul.u32 58, %s18
      $region32: #{mnist_encoder_forward.4} parent=27 // pred_fallthru
        _
    $region28: #{mnist_encoder_forward.4} parent=5 // pred_fallthru
      _
    %p191 = scmp.le.s32.totalorder 1, %s11
    %p192 = scmp.lt.s32.totalorder %s11, 7
    %p193 = pnand %p191, %p192
    %p194 = pneg %p193
    // Predicated region
    $region33: #{mnist_encoder_forward.4} parent=5 // pred_check
      _
    $region34: #{mnist_encoder_forward.4} parent=5 // pred_check_branch
      %196 = sbr.rel (%p193) target = $region36
    $region35: #{mnist_encoder_forward.4} parent=5 // pred_region
      %s197 = ssub.s32 %s11, 1
      %s198 = smul.u32 58, %s20
      %p199 = scmp.lt.s32.totalorder %s198, 347
      %s200 = scalar_select %p199, %s198, 347
      %p201 = scmp.lt.s32.totalorder %s21, 0
      %s202 = scalar_select %p201, %s21, 0
      %s203 = sadd.s32 %s202, %s200
      %s204 = smul.addr %s203, 4
      %s205 = scalar_lea.vmem %s0, %s204
      %p206 = pneg %p51
      %p207 = pneg %p48
      %s208 = smul.u32 2, %s21
      %p209 = scmp.lt.s32.totalorder %s208, 1
      %s210 = scalar_select %p209, %s208, 1
      %s211 = smul.addr %s210, 4
      %s212 = scalar_lea.vmem %s1, %s211
      %p213 = pneg %p77
      %p214 = pneg %p74
      %p215 = pneg %p98
      %p216 = pneg %p95
      %p217 = pneg %p119
      %p218 = pneg %p116
      %p219 = pneg %p145
      %p220 = pneg %p142
      %s221 = smul.u32 58, %s20
      %p222 = scmp.lt.s32.totalorder %s221, 347
      %s223 = scalar_select %p222, %s221, 347
      %s224 = smul.addr %s223, 8
      %s225 = scalar_lea.vmem %s4, %s224
      %s226 = smul.u32 58, %s20
      %p227 = scmp.lt.s32.totalorder %s226, 347
      %s228 = scalar_select %p227, %s226, 347
      %p229 = scmp.lt.s32.totalorder %s21, 0
      %s230 = scalar_select %p229, %s21, 0
      %s231 = sadd.s32 %s230, %s228
      %s232 = smul.addr %s231, 4
      %s233 = scalar_lea.vmem %s0, %s232
      %s234 = smul.u32 58, %s20
      %s235 = smul.u32 2, %s21
      %p236 = scmp.lt.s32.totalorder %s235, 1
      %s237 = scalar_select %p236, %s235, 1
      %s238 = smul.addr %s237, 4
      %s239 = scalar_lea.vmem %s1, %s238
      %s240 = smul.u32 2, %s21
      %s241 = smul.u32 58, %s20
      %p242 = scmp.lt.s32.totalorder %s241, 347
      %s243 = scalar_select %p242, %s241, 347
      %s244 = smul.addr %s243, 8
      %s245 = scalar_lea.vmem %s4, %s244
      %s246 = smul.u32 58, %s20
      %p248 = scmp.eq.s32.totalorder %s21, 0
      // Predicated region
      $region37: #{mnist_encoder_forward.4} parent=35 // pred_check
        %p249 = pneg %p248
      $region38: #{mnist_encoder_forward.4} parent=35 // pred_check_branch
        %251 = sbr.rel (%p249) target = $region40
      $region39: #{mnist_encoder_forward.4} parent=35 // pred_region
        %252 = vst [vmem:[#allocation2] sm:$0xff] 0.0
        %253 = vst [vmem:[#allocation2 + $0x8] sm:$0xff] 0.0
        %254 = vst [vmem:[#allocation2 + $0x10] sm:$0xff] 0.0
        %255 = vst [vmem:[#allocation2 + $0x18] sm:$0xff] 0.0
        %256 = vst [vmem:[#allocation2 + $0x20] sm:$0xff] 0.0
        %257 = vst [vmem:[#allocation2 + $0x28] sm:$0xff] 0.0
        %258 = vst [vmem:[#allocation2 + $0x30] sm:$0xff] 0.0
        %259 = vst [vmem:[#allocation2 + $0x38] sm:$0xff] 0.0
        %260 = vst [vmem:[#allocation2 + $0x40] sm:$0xff] 0.0
        %261 = vst [vmem:[#allocation2 + $0x48] sm:$0xff] 0.0
        %262 = vst [vmem:[#allocation2 + $0x50] sm:$0xff] 0.0
        %263 = vst [vmem:[#allocation2 + $0x58] sm:$0xff] 0.0
        %264 = vst [vmem:[#allocation2 + $0x60] sm:$0xff] 0.0
        %265 = vst [vmem:[#allocation2 + $0x68] sm:$0xff] 0.0
        %266 = vst [vmem:[#allocation2 + $0x70] sm:$0xff] 0.0
        %267 = vst [vmem:[#allocation2 + $0x78] sm:$0xff] 0.0
        %268 = vst [vmem:[#allocation2 + $0x80] sm:$0xff] 0.0
        %269 = vst [vmem:[#allocation2 + $0x88] sm:$0xff] 0.0
        %270 = vst [vmem:[#allocation2 + $0x90] sm:$0xff] 0.0
        %271 = vst [vmem:[#allocation2 + $0x98] sm:$0xff] 0.0
        %272 = vst [vmem:[#allocation2 + $0xa0] sm:$0xff] 0.0
        %273 = vst [vmem:[#allocation2 + $0xa8] sm:$0xff] 0.0
        %274 = vst [vmem:[#allocation2 + $0xb0] sm:$0xff] 0.0
        %275 = vst [vmem:[#allocation2 + $0xb8] sm:$0xff] 0.0
        %276 = vst [vmem:[#allocation2 + $0xc0] sm:$0xff] 0.0
        %277 = vst [vmem:[#allocation2 + $0xc8] sm:$0xff] 0.0
        %278 = vst [vmem:[#allocation2 + $0xd0] sm:$0xff] 0.0
        %279 = vst [vmem:[#allocation2 + $0xd8] sm:$0xff] 0.0
        %280 = vst [vmem:[#allocation2 + $0xe0] sm:$0xff] 0.0
        %281 = vst [vmem:[#allocation2 + $0xe8] sm:$0xff] 0.0
        %282 = vst [vmem:[#allocation2 + $0xf0] sm:$0xff] 0.0
        %283 = vst [vmem:[#allocation2 + $0xf8] sm:$0xff] 0.0
        %284 = vst [vmem:[#allocation2 + $0x100] sm:$0xff] 0.0
        %285 = vst [vmem:[#allocation2 + $0x108] sm:$0xff] 0.0
        %286 = vst [vmem:[#allocation2 + $0x110] sm:$0xff] 0.0
        %287 = vst [vmem:[#allocation2 + $0x118] sm:$0xff] 0.0
        %288 = vst [vmem:[#allocation2 + $0x120] sm:$0xff] 0.0
        %289 = vst [vmem:[#allocation2 + $0x128] sm:$0xff] 0.0
        %290 = vst [vmem:[#allocation2 + $0x130] sm:$0xff] 0.0
        %291 = vst [vmem:[#allocation2 + $0x138] sm:$0xff] 0.0
        %292 = vst [vmem:[#allocation2 + $0x140] sm:$0xff] 0.0
        %293 = vst [vmem:[#allocation2 + $0x148] sm:$0xff] 0.0
        %294 = vst [vmem:[#allocation2 + $0x150] sm:$0xff] 0.0
        %295 = vst [vmem:[#allocation2 + $0x158] sm:$0xff] 0.0
        %296 = vst [vmem:[#allocation2 + $0x160] sm:$0xff] 0.0
        %297 = vst [vmem:[#allocation2 + $0x168] sm:$0xff] 0.0
        %298 = vst [vmem:[#allocation2 + $0x170] sm:$0xff] 0.0
        %299 = vst [vmem:[#allocation2 + $0x178] sm:$0xff] 0.0
        %300 = vst [vmem:[#allocation2 + $0x180] sm:$0xff] 0.0
        %301 = vst [vmem:[#allocation2 + $0x188] sm:$0xff] 0.0
        %302 = vst [vmem:[#allocation2 + $0x190] sm:$0xff] 0.0
        %303 = vst [vmem:[#allocation2 + $0x198] sm:$0xff] 0.0
        %304 = vst [vmem:[#allocation2 + $0x1a0] sm:$0xff] 0.0
        %305 = vst [vmem:[#allocation2 + $0x1a8] sm:$0xff] 0.0
        %306 = vst [vmem:[#allocation2 + $0x1b0] sm:$0xff] 0.0
        %307 = vst [vmem:[#allocation2 + $0x1b8] sm:$0xff] 0.0
        %308 = vst [vmem:[#allocation2 + $0x1c0] sm:$0xff] 0.0
        %309 = vst [vmem:[#allocation2 + $0x1c8] sm:$0xff] 0.0
      $region40: #{mnist_encoder_forward.4} parent=35 // pred_fallthru
        _
      %v310 = vld [vmem:[#allocation2] sm:$0xff]
      %v311 = vld [vmem:[#allocation2 + $0x8] sm:$0xff]
      %v312 = vld [vmem:[#allocation2 + $0x10] sm:$0xff]
      %v313 = vld [vmem:[#allocation2 + $0x18] sm:$0xff]
      %v314 = vld [vmem:[#allocation2 + $0x20] sm:$0xff]
      %v315 = vld [vmem:[#allocation2 + $0x28] sm:$0xff]
      %v316 = vld [vmem:[#allocation2 + $0x30] sm:$0xff]
      %v317 = vld [vmem:[#allocation2 + $0x38] sm:$0xff]
      %v318 = vld [vmem:[#allocation2 + $0x40] sm:$0xff]
      %v319 = vld [vmem:[#allocation2 + $0x48] sm:$0xff]
      %v320 = vld [vmem:[#allocation2 + $0x50] sm:$0xff]
      %v321 = vld [vmem:[#allocation2 + $0x58] sm:$0xff]
      %v322 = vld [vmem:[#allocation2 + $0x60] sm:$0xff]
      %v323 = vld [vmem:[#allocation2 + $0x68] sm:$0xff]
      %v324 = vld [vmem:[#allocation2 + $0x70] sm:$0xff]
      %v325 = vld [vmem:[#allocation2 + $0x78] sm:$0xff]
      %v326 = vld [vmem:[#allocation2 + $0x80] sm:$0xff]
      %v327 = vld [vmem:[#allocation2 + $0x88] sm:$0xff]
      %v328 = vld [vmem:[#allocation2 + $0x90] sm:$0xff]
      %v329 = vld [vmem:[#allocation2 + $0x98] sm:$0xff]
      %v330 = vld [vmem:[#allocation2 + $0xa0] sm:$0xff]
      %v331 = vld [vmem:[#allocation2 + $0xa8] sm:$0xff]
      %v332 = vld [vmem:[#allocation2 + $0xb0] sm:$0xff]
      %v333 = vld [vmem:[#allocation2 + $0xb8] sm:$0xff]
      %v334 = vld [vmem:[#allocation2 + $0xc0] sm:$0xff]
      %v335 = vld [vmem:[#allocation2 + $0xc8] sm:$0xff]
      %v336 = vld [vmem:[#allocation2 + $0xd0] sm:$0xff]
      %v337 = vld [vmem:[#allocation2 + $0xd8] sm:$0xff]
      %v338 = vld [vmem:[#allocation2 + $0xe0] sm:$0xff]
      %v339 = vld [vmem:[#allocation2 + $0xe8] sm:$0xff]
      %v340 = vld [vmem:[#allocation2 + $0xf0] sm:$0xff]
      %v341 = vld [vmem:[#allocation2 + $0xf8] sm:$0xff]
      %v342 = vld [vmem:[#allocation2 + $0x100] sm:$0xff]
      %v343 = vld [vmem:[#allocation2 + $0x108] sm:$0xff]
      %v344 = vld [vmem:[#allocation2 + $0x110] sm:$0xff]
      %v345 = vld [vmem:[#allocation2 + $0x118] sm:$0xff]
      %v346 = vld [vmem:[#allocation2 + $0x120] sm:$0xff]
      %v347 = vld [vmem:[#allocation2 + $0x128] sm:$0xff]
      %v348 = vld [vmem:[#allocation2 + $0x130] sm:$0xff]
      %v349 = vld [vmem:[#allocation2 + $0x138] sm:$0xff]
      %v350 = vld [vmem:[#allocation2 + $0x140] sm:$0xff]
      %v351 = vld [vmem:[#allocation2 + $0x148] sm:$0xff]
      %v352 = vld [vmem:[#allocation2 + $0x150] sm:$0xff]
      %v353 = vld [vmem:[#allocation2 + $0x158] sm:$0xff]
      %v354 = vld [vmem:[#allocation2 + $0x160] sm:$0xff]
      %v355 = vld [vmem:[#allocation2 + $0x168] sm:$0xff]
      %v356 = vld [vmem:[#allocation2 + $0x170] sm:$0xff]
      %v357 = vld [vmem:[#allocation2 + $0x178] sm:$0xff]
      %v358 = vld [vmem:[#allocation2 + $0x180] sm:$0xff]
      %v359 = vld [vmem:[#allocation2 + $0x188] sm:$0xff]
      %v360 = vld [vmem:[#allocation2 + $0x190] sm:$0xff]
      %v361 = vld [vmem:[#allocation2 + $0x198] sm:$0xff]
      %v362 = vld [vmem:[#allocation2 + $0x1a0] sm:$0xff]
      %v363 = vld [vmem:[#allocation2 + $0x1a8] sm:$0xff]
      %v364 = vld [vmem:[#allocation2 + $0x1b0] sm:$0xff]
      %v365 = vld [vmem:[#allocation2 + $0x1b8] sm:$0xff]
      %v366 = vld [vmem:[#allocation2 + $0x1c0] sm:$0xff]
      %v367 = vld [vmem:[#allocation2 + $0x1c8] sm:$0xff]
      %v368 = vld [vmem:[%s233] sm:$0xf]
      %v369 = vld [vmem:[%s233 + $0x4] sm:$0xf]
      %v370 = vld [vmem:[%s233 + $0x8] sm:$0xf]
      %v371 = vld [vmem:[%s233 + $0xc] sm:$0xf]
      %v372 = vld [vmem:[%s233 + $0x10] sm:$0xf]
      %v373 = vld [vmem:[%s233 + $0x14] sm:$0xf]
      %v374 = vld [vmem:[%s233 + $0x18] sm:$0xf]
      %v375 = vld [vmem:[%s233 + $0x1c] sm:$0xf]
      %v376 = vld [vmem:[%s233 + $0x20] sm:$0xf]
      %v377 = vld [vmem:[%s233 + $0x24] sm:$0xf]
      %v378 = vld [vmem:[%s233 + $0x28] sm:$0xf]
      %v379 = vld [vmem:[%s233 + $0x2c] sm:$0xf]
      %v380 = vld [vmem:[%s233 + $0x30] sm:$0xf]
      %v381 = vld [vmem:[%s233 + $0x34] sm:$0xf]
      %v382 = vld [vmem:[%s233 + $0x38] sm:$0xf]
      %v383 = vld [vmem:[%s233 + $0x3c] sm:$0xf]
      %v384 = vld [vmem:[%s233 + $0x40] sm:$0xf]
      %v385 = vld [vmem:[%s233 + $0x44] sm:$0xf]
      %v386 = vld [vmem:[%s233 + $0x48] sm:$0xf]
      %v387 = vld [vmem:[%s233 + $0x4c] sm:$0xf]
      %v388 = vld [vmem:[%s233 + $0x50] sm:$0xf]
      %v389 = vld [vmem:[%s233 + $0x54] sm:$0xf]
      %v390 = vld [vmem:[%s233 + $0x58] sm:$0xf]
      %v391 = vld [vmem:[%s233 + $0x5c] sm:$0xf]
      %v392 = vld [vmem:[%s233 + $0x60] sm:$0xf]
      %v393 = vld [vmem:[%s233 + $0x64] sm:$0xf]
      %v394 = vld [vmem:[%s233 + $0x68] sm:$0xf]
      %v395 = vld [vmem:[%s233 + $0x6c] sm:$0xf]
      %v396 = vld [vmem:[%s233 + $0x70] sm:$0xf]
      %v397 = vld [vmem:[%s233 + $0x74] sm:$0xf]
      %v398 = vld [vmem:[%s233 + $0x78] sm:$0xf]
      %v399 = vld [vmem:[%s233 + $0x7c] sm:$0xf]
      %v400 = vld [vmem:[%s233 + $0x80] sm:$0xf]
      %v401 = vld [vmem:[%s233 + $0x84] sm:$0xf]
      %v402 = vld [vmem:[%s233 + $0x88] sm:$0xf]
      %v403 = vld [vmem:[%s233 + $0x8c] sm:$0xf]
      %v404 = vld [vmem:[%s233 + $0x90] sm:$0xf]
      %v405 = vld [vmem:[%s233 + $0x94] sm:$0xf]
      %v406 = vld [vmem:[%s233 + $0x98] sm:$0xf]
      %v407 = vld [vmem:[%s233 + $0x9c] sm:$0xf]
      %v408 = vld [vmem:[%s233 + $0xa0] sm:$0xf]
      %v409 = vld [vmem:[%s233 + $0xa4] sm:$0xf]
      %v410 = vld [vmem:[%s233 + $0xa8] sm:$0xf]
      %v411 = vld [vmem:[%s233 + $0xac] sm:$0xf]
      %v412 = vld [vmem:[%s233 + $0xb0] sm:$0xf]
      %v413 = vld [vmem:[%s233 + $0xb4] sm:$0xf]
      %v414 = vld [vmem:[%s233 + $0xb8] sm:$0xf]
      %v415 = vld [vmem:[%s233 + $0xbc] sm:$0xf]
      %v416 = vld [vmem:[%s233 + $0xc0] sm:$0xf]
      %v417 = vld [vmem:[%s233 + $0xc4] sm:$0xf]
      %v418 = vld [vmem:[%s233 + $0xc8] sm:$0xf]
      %v419 = vld [vmem:[%s233 + $0xcc] sm:$0xf]
      %v420 = vld [vmem:[%s233 + $0xd0] sm:$0xf]
      %v421 = vld [vmem:[%s233 + $0xd4] sm:$0xf]
      %v422 = vld [vmem:[%s233 + $0xd8] sm:$0xf]
      %v423 = vld [vmem:[%s233 + $0xdc] sm:$0xf]
      %v424 = vld [vmem:[%s233 + $0xe0] sm:$0xf]
      %v425 = vld [vmem:[%s233 + $0xe4] sm:$0xf]
      %v426 = vld [vmem:[%s239] sm:$0xf]
      %v427 = vld [vmem:[%s239 + $0x4] sm:$0x1]
      %v486 = vunpack.c.l.b16 %v368
      %v487 = vunpack.c.l.b16 %v369
      %v488 = vunpack.c.l.b16 %v370
      %v489 = vunpack.c.l.b16 %v371
      %v490 = vunpack.c.l.b16 %v372
      %v491 = vunpack.c.l.b16 %v373
      %v492 = vunpack.c.l.b16 %v374
      %v493 = vunpack.c.l.b16 %v375
      %v494 = vunpack.c.l.b16 %v376
      %v495 = vunpack.c.l.b16 %v377
      %v496 = vunpack.c.l.b16 %v378
      %v497 = vunpack.c.l.b16 %v379
      %v498 = vunpack.c.l.b16 %v380
      %v499 = vunpack.c.l.b16 %v381
      %v500 = vunpack.c.l.b16 %v382
      %v501 = vunpack.c.l.b16 %v383
      %v502 = vunpack.c.l.b16 %v384
      %v503 = vunpack.c.l.b16 %v385
      %v504 = vunpack.c.l.b16 %v386
      %v505 = vunpack.c.l.b16 %v387
      %v506 = vunpack.c.l.b16 %v388
      %v507 = vunpack.c.l.b16 %v389
      %v508 = vunpack.c.l.b16 %v390
      %v509 = vunpack.c.l.b16 %v391
      %v510 = vunpack.c.l.b16 %v392
      %v511 = vunpack.c.l.b16 %v393
      %v512 = vunpack.c.l.b16 %v394
      %v513 = vunpack.c.l.b16 %v395
      %v514 = vunpack.c.l.b16 %v396
      %v515 = vunpack.c.l.b16 %v397
      %v516 = vunpack.c.l.b16 %v398
      %v517 = vunpack.c.l.b16 %v399
      %v518 = vunpack.c.l.b16 %v400
      %v519 = vunpack.c.l.b16 %v401
      %v520 = vunpack.c.l.b16 %v402
      %v521 = vunpack.c.l.b16 %v403
      %v522 = vunpack.c.l.b16 %v404
      %v523 = vunpack.c.l.b16 %v405
      %v524 = vunpack.c.l.b16 %v406
      %v525 = vunpack.c.l.b16 %v407
      %v526 = vunpack.c.l.b16 %v408
      %v527 = vunpack.c.l.b16 %v409
      %v528 = vunpack.c.l.b16 %v410
      %v529 = vunpack.c.l.b16 %v411
      %v530 = vunpack.c.l.b16 %v412
      %v531 = vunpack.c.l.b16 %v413
      %v532 = vunpack.c.l.b16 %v414
      %v533 = vunpack.c.l.b16 %v415
      %v534 = vunpack.c.l.b16 %v416
      %v535 = vunpack.c.l.b16 %v417
      %v536 = vunpack.c.l.b16 %v418
      %v537 = vunpack.c.l.b16 %v419
      %v538 = vunpack.c.l.b16 %v420
      %v539 = vunpack.c.l.b16 %v421
      %v540 = vunpack.c.l.b16 %v422
      %v541 = vunpack.c.l.b16 %v423
      %v542 = vunpack.c.l.b16 %v424
      %v543 = vunpack.c.l.b16 %v425
      %v544 = vpack.c.b16 %v487, %v486
      %v545 = vpack.c.b16 %v489, %v488
      %v546 = vpack.c.b16 %v491, %v490
      %v547 = vpack.c.b16 %v493, %v492
      %v548 = vpack.c.b16 %v495, %v494
      %v549 = vpack.c.b16 %v497, %v496
      %v550 = vpack.c.b16 %v499, %v498
      %v551 = vpack.c.b16 %v501, %v500
      %v552 = vpack.c.b16 %v503, %v502
      %v553 = vpack.c.b16 %v505, %v504
      %v554 = vpack.c.b16 %v507, %v506
      %v555 = vpack.c.b16 %v509, %v508
      %v556 = vpack.c.b16 %v511, %v510
      %v557 = vpack.c.b16 %v513, %v512
      %v558 = vpack.c.b16 %v515, %v514
      %v559 = vpack.c.b16 %v517, %v516
      %v560 = vpack.c.b16 %v519, %v518
      %v561 = vpack.c.b16 %v521, %v520
      %v562 = vpack.c.b16 %v523, %v522
      %v563 = vpack.c.b16 %v525, %v524
      %v564 = vpack.c.b16 %v527, %v526
      %v565 = vpack.c.b16 %v529, %v528
      %v566 = vpack.c.b16 %v531, %v530
      %v567 = vpack.c.b16 %v533, %v532
      %v568 = vpack.c.b16 %v535, %v534
      %v569 = vpack.c.b16 %v537, %v536
      %v570 = vpack.c.b16 %v539, %v538
      %v571 = vpack.c.b16 %v541, %v540
      %v572 = vpack.c.b16 %v543, %v542
      %v575 = vunpack.c.l.b16 %v426
      %v576 = vunpack.c.l.b16 %v427
      %v577 = vpack.c.b16 %v576, %v575
      %vm578 = vcmask 72704
      %v580 = vsel %vm578, %v544, 0
      %v583 = vsel %vm578, %v545, 0
      %v586 = vsel %vm578, %v546, 0
      %v589 = vsel %vm578, %v547, 0
      %v592 = vsel %vm578, %v548, 0
      %v595 = vsel %vm578, %v549, 0
      %v598 = vsel %vm578, %v550, 0
      %v601 = vsel %vm578, %v551, 0
      %v604 = vsel %vm578, %v552, 0
      %v607 = vsel %vm578, %v553, 0
      %v610 = vsel %vm578, %v554, 0
      %v613 = vsel %vm578, %v555, 0
      %v616 = vsel %vm578, %v556, 0
      %v619 = vsel %vm578, %v557, 0
      %v622 = vsel %vm578, %v558, 0
      %v625 = vsel %vm578, %v559, 0
      %v628 = vsel %vm578, %v560, 0
      %v631 = vsel %vm578, %v561, 0
      %v634 = vsel %vm578, %v562, 0
      %v637 = vsel %vm578, %v563, 0
      %v640 = vsel %vm578, %v564, 0
      %v643 = vsel %vm578, %v565, 0
      %v646 = vsel %vm578, %v566, 0
      %v649 = vsel %vm578, %v567, 0
      %v652 = vsel %vm578, %v568, 0
      %v655 = vsel %vm578, %v569, 0
      %v658 = vsel %vm578, %v570, 0
      %v661 = vsel %vm578, %v571, 0
      %v664 = vsel %vm578, %v572, 0
      %vm666 = vcmask 1043456
      %vm667 = vcmask 1044480
      %v668 = vsel %vm666, 4294967295, 65535
      %v669 = vsel %vm667, %v668, 0
      %v671 = vand.u32 %v577, %v669
      %673 = vmatprep.subr.bf16.mxu0 0
      %674 = vmatpush1.bf16.msra.mxu0 %v671
      %675 = vmatprep.subr.bf16.mxu0 0
      %676 = vmatpush1.bf16.msra.mxu0 0
      %677 = vmatprep.subr.bf16.mxu0 0
      %678 = vmatpush1.bf16.msra.mxu0 0
      %679 = vmatprep.subr.bf16.mxu0 0
      %680 = vmatpush1.bf16.msra.mxu0 0
      %681 = vmatprep.subr.bf16.mxu0 0
      %682 = vmatpush1.bf16.msra.mxu0 0
      %683 = vmatprep.subr.bf16.mxu0 0
      %684 = vmatpush1.bf16.msra.mxu0 0
      %685 = vmatprep.subr.bf16.mxu0 0
      %686 = vmatpush1.bf16.msra.mxu0 0
      %687 = vmatprep.subr.bf16.mxu0 0
      %688 = vmatpush1.bf16.msra.mxu0 0
      %689 = vmatprep.subr.bf16.mxu0 0
      %690 = vmatpush1.bf16.msra.mxu0 0
      %691 = vmatprep.subr.bf16.mxu0 0
      %692 = vmatpush1.bf16.msra.mxu0 0
      %693 = vmatprep.subr.bf16.mxu0 0
      %694 = vmatpush1.bf16.msra.mxu0 0
      %695 = vmatprep.subr.bf16.mxu0 0
      %696 = vmatpush1.bf16.msra.mxu0 0
      %697 = vmatprep.subr.bf16.mxu0 0
      %698 = vmatpush1.bf16.msra.mxu0 0
      %699 = vmatprep.subr.bf16.mxu0 0
      %700 = vmatpush1.bf16.msra.mxu0 0
      %701 = vmatprep.subr.bf16.mxu0 0
      %702 = vmatpush1.bf16.msra.mxu0 0
      %703 = vmatprep.subr.bf16.mxu0 0
      %704 = vmatpush1.bf16.msra.mxu0 0
      %705 = vmatprep.mubr.bf16.mxu0 0
      %706 = vmatmul.mubr.bf16.gmra.mrb[0].mxu0 %v580
      %v707 = vpop.f32.mrb[0].mxu0
      %v708 = vadd.f32 0.0, %v707
      %v709 = vpop.f32.mrb[0].mxu0
      %v710 = vpop.f32.mrb[0].mxu0
      %v711 = vadd.f32 0.0, %v710
      %v712 = vpop.f32.mrb[0].mxu0
      %713 = vmatprep.mubr.bf16.mxu0 0
      %714 = vmatmul.mubr.bf16.gmra.mrb[0].mxu0 %v583
      %v715 = vpop.f32.mrb[0].mxu0
      %v716 = vadd.f32 0.0, %v715
      %v717 = vpop.f32.mrb[0].mxu0
      %v718 = vpop.f32.mrb[0].mxu0
      %v719 = vadd.f32 0.0, %v718
      %v720 = vpop.f32.mrb[0].mxu0
      %721 = vmatprep.mubr.bf16.mxu0 0
      %722 = vmatmul.mubr.bf16.gmra.mrb[0].mxu0 %v586
      %v723 = vpop.f32.mrb[0].mxu0
      %v724 = vadd.f32 0.0, %v723
      %v725 = vpop.f32.mrb[0].mxu0
      %v726 = vpop.f32.mrb[0].mxu0
      %v727 = vadd.f32 0.0, %v726
      %v728 = vpop.f32.mrb[0].mxu0
      %729 = vmatprep.mubr.bf16.mxu0 0
      %730 = vmatmul.mubr.bf16.gmra.mrb[0].mxu0 %v589
      %v731 = vpop.f32.mrb[0].mxu0
      %v732 = vadd.f32 0.0, %v731
      %v733 = vpop.f32.mrb[0].mxu0
      %v734 = vpop.f32.mrb[0].mxu0
      %v735 = vadd.f32 0.0, %v734
      %v736 = vpop.f32.mrb[0].mxu0
      %737 = vmatprep.mubr.bf16.mxu0 0
      %738 = vmatmul.mubr.bf16.gmra.mrb[0].mxu0 %v592
      %v739 = vpop.f32.mrb[0].mxu0
      %v740 = vadd.f32 0.0, %v739
      %v741 = vpop.f32.mrb[0].mxu0
      %v742 = vpop.f32.mrb[0].mxu0
      %v743 = vadd.f32 0.0, %v742
      %v744 = vpop.f32.mrb[0].mxu0
      %745 = vmatprep.mubr.bf16.mxu0 0
      %746 = vmatmul.mubr.bf16.gmra.mrb[0].mxu0 %v595
      %v747 = vpop.f32.mrb[0].mxu0
      %v748 = vadd.f32 0.0, %v747
      %v749 = vpop.f32.mrb[0].mxu0
      %v750 = vpop.f32.mrb[0].mxu0
      %v751 = vadd.f32 0.0, %v750
      %v752 = vpop.f32.mrb[0].mxu0
      %753 = vmatprep.mubr.bf16.mxu0 0
      %754 = vmatmul.mubr.bf16.gmra.mrb[0].mxu0 %v598
      %v755 = vpop.f32.mrb[0].mxu0
      %v756 = vadd.f32 0.0, %v755
      %v757 = vpop.f32.mrb[0].mxu0
      %v758 = vpop.f32.mrb[0].mxu0
      %v759 = vadd.f32 0.0, %v758
      %v760 = vpop.f32.mrb[0].mxu0
      %761 = vmatprep.mubr.bf16.mxu0 0
      %762 = vmatmul.mubr.bf16.gmra.mrb[0].mxu0 %v601
      %v763 = vpop.f32.mrb[0].mxu0
      %v764 = vadd.f32 0.0, %v763
      %v765 = vpop.f32.mrb[0].mxu0
      %v766 = vpop.f32.mrb[0].mxu0
      %v767 = vadd.f32 0.0, %v766
      %v768 = vpop.f32.mrb[0].mxu0
      %769 = vmatprep.mubr.bf16.mxu0 0
      %770 = vmatmul.mubr.bf16.gmra.mrb[0].mxu0 %v604
      %v771 = vpop.f32.mrb[0].mxu0
      %v772 = vadd.f32 0.0, %v771
      %v773 = vpop.f32.mrb[0].mxu0
      %v774 = vpop.f32.mrb[0].mxu0
      %v775 = vadd.f32 0.0, %v774
      %v776 = vpop.f32.mrb[0].mxu0
      %777 = vmatprep.mubr.bf16.mxu0 0
      %778 = vmatmul.mubr.bf16.gmra.mrb[0].mxu0 %v607
      %v779 = vpop.f32.mrb[0].mxu0
      %v780 = vadd.f32 0.0, %v779
      %v781 = vpop.f32.mrb[0].mxu0
      %v782 = vpop.f32.mrb[0].mxu0
      %v783 = vadd.f32 0.0, %v782
      %v784 = vpop.f32.mrb[0].mxu0
      %785 = vmatprep.mubr.bf16.mxu0 0
      %786 = vmatmul.mubr.bf16.gmra.mrb[0].mxu0 %v610
      %v787 = vpop.f32.mrb[0].mxu0
      %v788 = vadd.f32 0.0, %v787
      %v789 = vpop.f32.mrb[0].mxu0
      %v790 = vpop.f32.mrb[0].mxu0
      %v791 = vadd.f32 0.0, %v790
      %v792 = vpop.f32.mrb[0].mxu0
      %793 = vmatprep.mubr.bf16.mxu0 0
      %794 = vmatmul.mubr.bf16.gmra.mrb[0].mxu0 %v613
      %v795 = vpop.f32.mrb[0].mxu0
      %v796 = vadd.f32 0.0, %v795
      %v797 = vpop.f32.mrb[0].mxu0
      %v798 = vpop.f32.mrb[0].mxu0
      %v799 = vadd.f32 0.0, %v798
      %v800 = vpop.f32.mrb[0].mxu0
      %801 = vmatprep.mubr.bf16.mxu0 0
      %802 = vmatmul.mubr.bf16.gmra.mrb[0].mxu0 %v616
      %v803 = vpop.f32.mrb[0].mxu0
      %v804 = vadd.f32 0.0, %v803
      %v805 = vpop.f32.mrb[0].mxu0
      %v806 = vpop.f32.mrb[0].mxu0
      %v807 = vadd.f32 0.0, %v806
      %v808 = vpop.f32.mrb[0].mxu0
      %809 = vmatprep.mubr.bf16.mxu0 0
      %810 = vmatmul.mubr.bf16.gmra.mrb[0].mxu0 %v619
      %v811 = vpop.f32.mrb[0].mxu0
      %v812 = vadd.f32 0.0, %v811
      %v813 = vpop.f32.mrb[0].mxu0
      %v814 = vpop.f32.mrb[0].mxu0
      %v815 = vadd.f32 0.0, %v814
      %v816 = vpop.f32.mrb[0].mxu0
      %817 = vmatprep.mubr.bf16.mxu0 0
      %818 = vmatmul.mubr.bf16.gmra.mrb[0].mxu0 %v622
      %v819 = vpop.f32.mrb[0].mxu0
      %v820 = vadd.f32 0.0, %v819
      %v821 = vpop.f32.mrb[0].mxu0
      %v822 = vpop.f32.mrb[0].mxu0
      %v823 = vadd.f32 0.0, %v822
      %v824 = vpop.f32.mrb[0].mxu0
      %825 = vmatprep.mubr.bf16.mxu0 0
      %826 = vmatmul.mubr.bf16.gmra.mrb[0].mxu0 %v625
      %v827 = vpop.f32.mrb[0].mxu0
      %v828 = vadd.f32 0.0, %v827
      %v829 = vpop.f32.mrb[0].mxu0
      %v830 = vpop.f32.mrb[0].mxu0
      %v831 = vadd.f32 0.0, %v830
      %v832 = vpop.f32.mrb[0].mxu0
      %833 = vmatprep.mubr.bf16.mxu0 0
      %834 = vmatmul.mubr.bf16.gmra.mrb[0].mxu0 %v628
      %v835 = vpop.f32.mrb[0].mxu0
      %v836 = vadd.f32 0.0, %v835
      %v837 = vpop.f32.mrb[0].mxu0
      %v838 = vpop.f32.mrb[0].mxu0
      %v839 = vadd.f32 0.0, %v838
      %v840 = vpop.f32.mrb[0].mxu0
      %841 = vmatprep.mubr.bf16.mxu0 0
      %842 = vmatmul.mubr.bf16.gmra.mrb[0].mxu0 %v631
      %v843 = vpop.f32.mrb[0].mxu0
      %v844 = vadd.f32 0.0, %v843
      %v845 = vpop.f32.mrb[0].mxu0
      %v846 = vpop.f32.mrb[0].mxu0
      %v847 = vadd.f32 0.0, %v846
      %v848 = vpop.f32.mrb[0].mxu0
      %849 = vmatprep.mubr.bf16.mxu0 0
      %850 = vmatmul.mubr.bf16.gmra.mrb[0].mxu0 %v634
      %v851 = vpop.f32.mrb[0].mxu0
      %v852 = vadd.f32 0.0, %v851
      %v853 = vpop.f32.mrb[0].mxu0
      %v854 = vpop.f32.mrb[0].mxu0
      %v855 = vadd.f32 0.0, %v854
      %v856 = vpop.f32.mrb[0].mxu0
      %857 = vmatprep.mubr.bf16.mxu0 0
      %858 = vmatmul.mubr.bf16.gmra.mrb[0].mxu0 %v637
      %v859 = vpop.f32.mrb[0].mxu0
      %v860 = vadd.f32 0.0, %v859
      %v861 = vpop.f32.mrb[0].mxu0
      %v862 = vpop.f32.mrb[0].mxu0
      %v863 = vadd.f32 0.0, %v862
      %v864 = vpop.f32.mrb[0].mxu0
      %865 = vmatprep.mubr.bf16.mxu0 0
      %866 = vmatmul.mubr.bf16.gmra.mrb[0].mxu0 %v640
      %v867 = vpop.f32.mrb[0].mxu0
      %v868 = vadd.f32 0.0, %v867
      %v869 = vpop.f32.mrb[0].mxu0
      %v870 = vpop.f32.mrb[0].mxu0
      %v871 = vadd.f32 0.0, %v870
      %v872 = vpop.f32.mrb[0].mxu0
      %873 = vmatprep.mubr.bf16.mxu0 0
      %874 = vmatmul.mubr.bf16.gmra.mrb[0].mxu0 %v643
      %v875 = vpop.f32.mrb[0].mxu0
      %v876 = vadd.f32 0.0, %v875
      %v877 = vpop.f32.mrb[0].mxu0
      %v878 = vpop.f32.mrb[0].mxu0
      %v879 = vadd.f32 0.0, %v878
      %v880 = vpop.f32.mrb[0].mxu0
      %881 = vmatprep.mubr.bf16.mxu0 0
      %882 = vmatmul.mubr.bf16.gmra.mrb[0].mxu0 %v646
      %v883 = vpop.f32.mrb[0].mxu0
      %v884 = vadd.f32 0.0, %v883
      %v885 = vpop.f32.mrb[0].mxu0
      %v886 = vpop.f32.mrb[0].mxu0
      %v887 = vadd.f32 0.0, %v886
      %v888 = vpop.f32.mrb[0].mxu0
      %889 = vmatprep.mubr.bf16.mxu0 0
      %890 = vmatmul.mubr.bf16.gmra.mrb[0].mxu0 %v649
      %v891 = vpop.f32.mrb[0].mxu0
      %v892 = vadd.f32 0.0, %v891
      %v893 = vpop.f32.mrb[0].mxu0
      %v894 = vpop.f32.mrb[0].mxu0
      %v895 = vadd.f32 0.0, %v894
      %v896 = vpop.f32.mrb[0].mxu0
      %897 = vmatprep.mubr.bf16.mxu0 0
      %898 = vmatmul.mubr.bf16.gmra.mrb[0].mxu0 %v652
      %v899 = vpop.f32.mrb[0].mxu0
      %v900 = vadd.f32 0.0, %v899
      %v901 = vpop.f32.mrb[0].mxu0
      %v902 = vpop.f32.mrb[0].mxu0
      %v903 = vadd.f32 0.0, %v902
      %v904 = vpop.f32.mrb[0].mxu0
      %905 = vmatprep.mubr.bf16.mxu0 0
      %906 = vmatmul.mubr.bf16.gmra.mrb[0].mxu0 %v655
      %v907 = vpop.f32.mrb[0].mxu0
      %v908 = vadd.f32 0.0, %v907
      %v909 = vpop.f32.mrb[0].mxu0
      %v910 = vpop.f32.mrb[0].mxu0
      %v911 = vadd.f32 0.0, %v910
      %v912 = vpop.f32.mrb[0].mxu0
      %913 = vmatprep.mubr.bf16.mxu0 0
      %914 = vmatmul.mubr.bf16.gmra.mrb[0].mxu0 %v658
      %v915 = vpop.f32.mrb[0].mxu0
      %v916 = vadd.f32 0.0, %v915
      %v917 = vpop.f32.mrb[0].mxu0
      %v918 = vpop.f32.mrb[0].mxu0
      %v919 = vadd.f32 0.0, %v918
      %v920 = vpop.f32.mrb[0].mxu0
      %921 = vmatprep.mubr.bf16.mxu0 0
      %922 = vmatmul.mubr.bf16.gmra.mrb[0].mxu0 %v661
      %v923 = vpop.f32.mrb[0].mxu0
      %v924 = vadd.f32 0.0, %v923
      %v925 = vpop.f32.mrb[0].mxu0
      %v926 = vpop.f32.mrb[0].mxu0
      %v927 = vadd.f32 0.0, %v926
      %v928 = vpop.f32.mrb[0].mxu0
      %929 = vmatprep.mubr.bf16.mxu0 0
      %930 = vmatmul.mubr.bf16.gmra.mrb[0].mxu0 %v664
      %v931 = vpop.f32.mrb[0].mxu0
      %v932 = vadd.f32 0.0, %v931
      %v933 = vpop.f32.mrb[0].mxu0
      %v934 = vpop.f32.mrb[0].mxu0
      %v935 = vadd.f32 0.0, %v934
      %v936 = vpop.f32.mrb[0].mxu0
      %937 = vdwg.mxu0
      %v938 = vadd.f32 %v310, %v708
      %v939 = vadd.f32 %v311, %v711
      %v940 = vadd.f32 %v312, %v716
      %v941 = vadd.f32 %v313, %v719
      %v942 = vadd.f32 %v314, %v724
      %v943 = vadd.f32 %v315, %v727
      %v944 = vadd.f32 %v316, %v732
      %v945 = vadd.f32 %v317, %v735
      %v946 = vadd.f32 %v318, %v740
      %v947 = vadd.f32 %v319, %v743
      %v948 = vadd.f32 %v320, %v748
      %v949 = vadd.f32 %v321, %v751
      %v950 = vadd.f32 %v322, %v756
      %v951 = vadd.f32 %v323, %v759
      %v952 = vadd.f32 %v324, %v764
      %v953 = vadd.f32 %v325, %v767
      %v954 = vadd.f32 %v326, %v772
      %v955 = vadd.f32 %v327, %v775
      %v956 = vadd.f32 %v328, %v780
      %v957 = vadd.f32 %v329, %v783
      %v958 = vadd.f32 %v330, %v788
      %v959 = vadd.f32 %v331, %v791
      %v960 = vadd.f32 %v332, %v796
      %v961 = vadd.f32 %v333, %v799
      %v962 = vadd.f32 %v334, %v804
      %v963 = vadd.f32 %v335, %v807
      %v964 = vadd.f32 %v336, %v812
      %v965 = vadd.f32 %v337, %v815
      %v966 = vadd.f32 %v338, %v820
      %v967 = vadd.f32 %v339, %v823
      %v968 = vadd.f32 %v340, %v828
      %v969 = vadd.f32 %v341, %v831
      %v970 = vadd.f32 %v342, %v836
      %v971 = vadd.f32 %v343, %v839
      %v972 = vadd.f32 %v344, %v844
      %v973 = vadd.f32 %v345, %v847
      %v974 = vadd.f32 %v346, %v852
      %v975 = vadd.f32 %v347, %v855
      %v976 = vadd.f32 %v348, %v860
      %v977 = vadd.f32 %v349, %v863
      %v978 = vadd.f32 %v350, %v868
      %v979 = vadd.f32 %v351, %v871
      %v980 = vadd.f32 %v352, %v876
      %v981 = vadd.f32 %v353, %v879
      %v982 = vadd.f32 %v354, %v884
      %v983 = vadd.f32 %v355, %v887
      %v984 = vadd.f32 %v356, %v892
      %v985 = vadd.f32 %v357, %v895
      %v986 = vadd.f32 %v358, %v900
      %v987 = vadd.f32 %v359, %v903
      %v988 = vadd.f32 %v360, %v908
      %v989 = vadd.f32 %v361, %v911
      %v990 = vadd.f32 %v362, %v916
      %v991 = vadd.f32 %v363, %v919
      %v992 = vadd.f32 %v364, %v924
      %v993 = vadd.f32 %v365, %v927
      %v994 = vadd.f32 %v366, %v932
      %v995 = vadd.f32 %v367, %v935
      %996 = vst [vmem:[#allocation2] sm:$0xff] %v938
      %997 = vst [vmem:[#allocation2 + $0x8] sm:$0xff] %v939
      %998 = vst [vmem:[#allocation2 + $0x10] sm:$0xff] %v940
      %999 = vst [vmem:[#allocation2 + $0x18] sm:$0xff] %v941
      %1000 = vst [vmem:[#allocation2 + $0x20] sm:$0xff] %v942
      %1001 = vst [vmem:[#allocation2 + $0x28] sm:$0xff] %v943
      %1002 = vst [vmem:[#allocation2 + $0x30] sm:$0xff] %v944
      %1003 = vst [vmem:[#allocation2 + $0x38] sm:$0xff] %v945
      %1004 = vst [vmem:[#allocation2 + $0x40] sm:$0xff] %v946
      %1005 = vst [vmem:[#allocation2 + $0x48] sm:$0xff] %v947
      %1006 = vst [vmem:[#allocation2 + $0x50] sm:$0xff] %v948
      %1007 = vst [vmem:[#allocation2 + $0x58] sm:$0xff] %v949
      %1008 = vst [vmem:[#allocation2 + $0x60] sm:$0xff] %v950
      %1009 = vst [vmem:[#allocation2 + $0x68] sm:$0xff] %v951
      %1010 = vst [vmem:[#allocation2 + $0x70] sm:$0xff] %v952
      %1011 = vst [vmem:[#allocation2 + $0x78] sm:$0xff] %v953
      %1012 = vst [vmem:[#allocation2 + $0x80] sm:$0xff] %v954
      %1013 = vst [vmem:[#allocation2 + $0x88] sm:$0xff] %v955
      %1014 = vst [vmem:[#allocation2 + $0x90] sm:$0xff] %v956
      %1015 = vst [vmem:[#allocation2 + $0x98] sm:$0xff] %v957
      %1016 = vst [vmem:[#allocation2 + $0xa0] sm:$0xff] %v958
      %1017 = vst [vmem:[#allocation2 + $0xa8] sm:$0xff] %v959
      %1018 = vst [vmem:[#allocation2 + $0xb0] sm:$0xff] %v960
      %1019 = vst [vmem:[#allocation2 + $0xb8] sm:$0xff] %v961
      %1020 = vst [vmem:[#allocation2 + $0xc0] sm:$0xff] %v962
      %1021 = vst [vmem:[#allocation2 + $0xc8] sm:$0xff] %v963
      %1022 = vst [vmem:[#allocation2 + $0xd0] sm:$0xff] %v964
      %1023 = vst [vmem:[#allocation2 + $0xd8] sm:$0xff] %v965
      %1024 = vst [vmem:[#allocation2 + $0xe0] sm:$0xff] %v966
      %1025 = vst [vmem:[#allocation2 + $0xe8] sm:$0xff] %v967
      %1026 = vst [vmem:[#allocation2 + $0xf0] sm:$0xff] %v968
      %1027 = vst [vmem:[#allocation2 + $0xf8] sm:$0xff] %v969
      %1028 = vst [vmem:[#allocation2 + $0x100] sm:$0xff] %v970
      %1029 = vst [vmem:[#allocation2 + $0x108] sm:$0xff] %v971
      %1030 = vst [vmem:[#allocation2 + $0x110] sm:$0xff] %v972
      %1031 = vst [vmem:[#allocation2 + $0x118] sm:$0xff] %v973
      %1032 = vst [vmem:[#allocation2 + $0x120] sm:$0xff] %v974
      %1033 = vst [vmem:[#allocation2 + $0x128] sm:$0xff] %v975
      %1034 = vst [vmem:[#allocation2 + $0x130] sm:$0xff] %v976
      %1035 = vst [vmem:[#allocation2 + $0x138] sm:$0xff] %v977
      %1036 = vst [vmem:[#allocation2 + $0x140] sm:$0xff] %v978
      %1037 = vst [vmem:[#allocation2 + $0x148] sm:$0xff] %v979
      %1038 = vst [vmem:[#allocation2 + $0x150] sm:$0xff] %v980
      %1039 = vst [vmem:[#allocation2 + $0x158] sm:$0xff] %v981
      %1040 = vst [vmem:[#allocation2 + $0x160] sm:$0xff] %v982
      %1041 = vst [vmem:[#allocation2 + $0x168] sm:$0xff] %v983
      %1042 = vst [vmem:[#allocation2 + $0x170] sm:$0xff] %v984
      %1043 = vst [vmem:[#allocation2 + $0x178] sm:$0xff] %v985
      %1044 = vst [vmem:[#allocation2 + $0x180] sm:$0xff] %v986
      %1045 = vst [vmem:[#allocation2 + $0x188] sm:$0xff] %v987
      %1046 = vst [vmem:[#allocation2 + $0x190] sm:$0xff] %v988
      %1047 = vst [vmem:[#allocation2 + $0x198] sm:$0xff] %v989
      %1048 = vst [vmem:[#allocation2 + $0x1a0] sm:$0xff] %v990
      %1049 = vst [vmem:[#allocation2 + $0x1a8] sm:$0xff] %v991
      %1050 = vst [vmem:[#allocation2 + $0x1b0] sm:$0xff] %v992
      %1051 = vst [vmem:[#allocation2 + $0x1b8] sm:$0xff] %v993
      %1052 = vst [vmem:[#allocation2 + $0x1c0] sm:$0xff] %v994
      %1053 = vst [vmem:[#allocation2 + $0x1c8] sm:$0xff] %v995
      // Predicated region
      $region41: #{mnist_encoder_forward.4} parent=35 // pred_check
        %p1054 = pneg %p248
      $region42: #{mnist_encoder_forward.4} parent=35 // pred_check_branch
        %1056 = sbr.rel (%p1054) target = $region44
      $region43: #{mnist_encoder_forward.4} parent=35 // pred_region
        %v1057 = vld [vmem:[#allocation2] sm:$0xff]
        %v1058 = vld [vmem:[#allocation2 + $0x8] sm:$0xff]
        %v1059 = vld [vmem:[#allocation2 + $0x10] sm:$0xff]
        %v1060 = vld [vmem:[#allocation2 + $0x18] sm:$0xff]
        %v1061 = vld [vmem:[#allocation2 + $0x20] sm:$0xff]
        %v1062 = vld [vmem:[#allocation2 + $0x28] sm:$0xff]
        %v1063 = vld [vmem:[#allocation2 + $0x30] sm:$0xff]
        %v1064 = vld [vmem:[#allocation2 + $0x38] sm:$0xff]
        %v1065 = vld [vmem:[#allocation2 + $0x40] sm:$0xff]
        %v1066 = vld [vmem:[#allocation2 + $0x48] sm:$0xff]
        %v1067 = vld [vmem:[#allocation2 + $0x50] sm:$0xff]
        %v1068 = vld [vmem:[#allocation2 + $0x58] sm:$0xff]
        %v1069 = vld [vmem:[#allocation2 + $0x60] sm:$0xff]
        %v1070 = vld [vmem:[#allocation2 + $0x68] sm:$0xff]
        %v1071 = vld [vmem:[#allocation2 + $0x70] sm:$0xff]
        %v1072 = vld [vmem:[#allocation2 + $0x78] sm:$0xff]
        %v1073 = vld [vmem:[#allocation2 + $0x80] sm:$0xff]
        %v1074 = vld [vmem:[#allocation2 + $0x88] sm:$0xff]
        %v1075 = vld [vmem:[#allocation2 + $0x90] sm:$0xff]
        %v1076 = vld [vmem:[#allocation2 + $0x98] sm:$0xff]
        %v1077 = vld [vmem:[#allocation2 + $0xa0] sm:$0xff]
        %v1078 = vld [vmem:[#allocation2 + $0xa8] sm:$0xff]
        %v1079 = vld [vmem:[#allocation2 + $0xb0] sm:$0xff]
        %v1080 = vld [vmem:[#allocation2 + $0xb8] sm:$0xff]
        %v1081 = vld [vmem:[#allocation2 + $0xc0] sm:$0xff]
        %v1082 = vld [vmem:[#allocation2 + $0xc8] sm:$0xff]
        %v1083 = vld [vmem:[#allocation2 + $0xd0] sm:$0xff]
        %v1084 = vld [vmem:[#allocation2 + $0xd8] sm:$0xff]
        %v1085 = vld [vmem:[#allocation2 + $0xe0] sm:$0xff]
        %v1086 = vld [vmem:[#allocation2 + $0xe8] sm:$0xff]
        %v1087 = vld [vmem:[#allocation2 + $0xf0] sm:$0xff]
        %v1088 = vld [vmem:[#allocation2 + $0xf8] sm:$0xff]
        %v1089 = vld [vmem:[#allocation2 + $0x100] sm:$0xff]
        %v1090 = vld [vmem:[#allocation2 + $0x108] sm:$0xff]
        %v1091 = vld [vmem:[#allocation2 + $0x110] sm:$0xff]
        %v1092 = vld [vmem:[#allocation2 + $0x118] sm:$0xff]
        %v1093 = vld [vmem:[#allocation2 + $0x120] sm:$0xff]
        %v1094 = vld [vmem:[#allocation2 + $0x128] sm:$0xff]
        %v1095 = vld [vmem:[#allocation2 + $0x130] sm:$0xff]
        %v1096 = vld [vmem:[#allocation2 + $0x138] sm:$0xff]
        %v1097 = vld [vmem:[#allocation2 + $0x140] sm:$0xff]
        %v1098 = vld [vmem:[#allocation2 + $0x148] sm:$0xff]
        %v1099 = vld [vmem:[#allocation2 + $0x150] sm:$0xff]
        %v1100 = vld [vmem:[#allocation2 + $0x158] sm:$0xff]
        %v1101 = vld [vmem:[#allocation2 + $0x160] sm:$0xff]
        %v1102 = vld [vmem:[#allocation2 + $0x168] sm:$0xff]
        %v1103 = vld [vmem:[#allocation2 + $0x170] sm:$0xff]
        %v1104 = vld [vmem:[#allocation2 + $0x178] sm:$0xff]
        %v1105 = vld [vmem:[#allocation2 + $0x180] sm:$0xff]
        %v1106 = vld [vmem:[#allocation2 + $0x188] sm:$0xff]
        %v1107 = vld [vmem:[#allocation2 + $0x190] sm:$0xff]
        %v1108 = vld [vmem:[#allocation2 + $0x198] sm:$0xff]
        %v1109 = vld [vmem:[#allocation2 + $0x1a0] sm:$0xff]
        %v1110 = vld [vmem:[#allocation2 + $0x1a8] sm:$0xff]
        %v1111 = vld [vmem:[#allocation2 + $0x1b0] sm:$0xff]
        %v1112 = vld [vmem:[#allocation2 + $0x1b8] sm:$0xff]
        %v1113 = vld [vmem:[#allocation2 + $0x1c0] sm:$0xff]
        %v1114 = vld [vmem:[#allocation2 + $0x1c8] sm:$0xff]
        %v1115 = vld [vmem:[%s2] sm:$0x1]
        %v1117 = vlaneseq
        %v1118 = vshrl.u32 %v1117, 7
        %v1119 = vsub.s32 0, %v1118
        %v1120 = vrot.slane %v1115, %v1119
        %v1122 = vadd.f32 %v1057, %v1120
        %v1123 = vadd.f32 %v1058, %v1120
        %v1124 = vadd.f32 %v1059, %v1120
        %v1125 = vadd.f32 %v1060, %v1120
        %v1126 = vadd.f32 %v1061, %v1120
        %v1127 = vadd.f32 %v1062, %v1120
        %v1128 = vadd.f32 %v1063, %v1120
        %v1129 = vadd.f32 %v1064, %v1120
        %v1130 = vadd.f32 %v1065, %v1120
        %v1131 = vadd.f32 %v1066, %v1120
        %v1132 = vadd.f32 %v1067, %v1120
        %v1133 = vadd.f32 %v1068, %v1120
        %v1134 = vadd.f32 %v1069, %v1120
        %v1135 = vadd.f32 %v1070, %v1120
        %v1136 = vadd.f32 %v1071, %v1120
        %v1137 = vadd.f32 %v1072, %v1120
        %v1138 = vadd.f32 %v1073, %v1120
        %v1139 = vadd.f32 %v1074, %v1120
        %v1140 = vadd.f32 %v1075, %v1120
        %v1141 = vadd.f32 %v1076, %v1120
        %v1142 = vadd.f32 %v1077, %v1120
        %v1143 = vadd.f32 %v1078, %v1120
        %v1144 = vadd.f32 %v1079, %v1120
        %v1145 = vadd.f32 %v1080, %v1120
        %v1146 = vadd.f32 %v1081, %v1120
        %v1147 = vadd.f32 %v1082, %v1120
        %v1148 = vadd.f32 %v1083, %v1120
        %v1149 = vadd.f32 %v1084, %v1120
        %v1150 = vadd.f32 %v1085, %v1120
        %v1151 = vadd.f32 %v1086, %v1120
        %v1152 = vadd.f32 %v1087, %v1120
        %v1153 = vadd.f32 %v1088, %v1120
        %v1154 = vadd.f32 %v1089, %v1120
        %v1155 = vadd.f32 %v1090, %v1120
        %v1156 = vadd.f32 %v1091, %v1120
        %v1157 = vadd.f32 %v1092, %v1120
        %v1158 = vadd.f32 %v1093, %v1120
        %v1159 = vadd.f32 %v1094, %v1120
        %v1160 = vadd.f32 %v1095, %v1120
        %v1161 = vadd.f32 %v1096, %v1120
        %v1162 = vadd.f32 %v1097, %v1120
        %v1163 = vadd.f32 %v1098, %v1120
        %v1164 = vadd.f32 %v1099, %v1120
        %v1165 = vadd.f32 %v1100, %v1120
        %v1166 = vadd.f32 %v1101, %v1120
        %v1167 = vadd.f32 %v1102, %v1120
        %v1168 = vadd.f32 %v1103, %v1120
        %v1169 = vadd.f32 %v1104, %v1120
        %v1170 = vadd.f32 %v1105, %v1120
        %v1171 = vadd.f32 %v1106, %v1120
        %v1172 = vadd.f32 %v1107, %v1120
        %v1173 = vadd.f32 %v1108, %v1120
        %v1174 = vadd.f32 %v1109, %v1120
        %v1175 = vadd.f32 %v1110, %v1120
        %v1176 = vadd.f32 %v1111, %v1120
        %v1177 = vadd.f32 %v1112, %v1120
        %v1178 = vadd.f32 %v1113, %v1120
        %v1179 = vadd.f32 %v1114, %v1120
        %s1180 = sld [smem:[#allocation3]]
        %vm1181 = vcmp.ge.f32.partialorder %v1122, 0.0
        %vm1182 = vcmp.ge.f32.partialorder %v1123, 0.0
        %vm1183 = vcmp.ge.f32.partialorder %v1124, 0.0
        %vm1184 = vcmp.ge.f32.partialorder %v1125, 0.0
        %vm1185 = vcmp.ge.f32.partialorder %v1126, 0.0
        %vm1186 = vcmp.ge.f32.partialorder %v1127, 0.0
        %vm1187 = vcmp.ge.f32.partialorder %v1128, 0.0
        %vm1188 = vcmp.ge.f32.partialorder %v1129, 0.0
        %vm1189 = vcmp.ge.f32.partialorder %v1130, 0.0
        %vm1190 = vcmp.ge.f32.partialorder %v1131, 0.0
        %vm1191 = vcmp.ge.f32.partialorder %v1132, 0.0
        %vm1192 = vcmp.ge.f32.partialorder %v1133, 0.0
        %vm1193 = vcmp.ge.f32.partialorder %v1134, 0.0
        %vm1194 = vcmp.ge.f32.partialorder %v1135, 0.0
        %vm1195 = vcmp.ge.f32.partialorder %v1136, 0.0
        %vm1196 = vcmp.ge.f32.partialorder %v1137, 0.0
        %vm1197 = vcmp.ge.f32.partialorder %v1138, 0.0
        %vm1198 = vcmp.ge.f32.partialorder %v1139, 0.0
        %vm1199 = vcmp.ge.f32.partialorder %v1140, 0.0
        %vm1200 = vcmp.ge.f32.partialorder %v1141, 0.0
        %vm1201 = vcmp.ge.f32.partialorder %v1142, 0.0
        %vm1202 = vcmp.ge.f32.partialorder %v1143, 0.0
        %vm1203 = vcmp.ge.f32.partialorder %v1144, 0.0
        %vm1204 = vcmp.ge.f32.partialorder %v1145, 0.0
        %vm1205 = vcmp.ge.f32.partialorder %v1146, 0.0
        %vm1206 = vcmp.ge.f32.partialorder %v1147, 0.0
        %vm1207 = vcmp.ge.f32.partialorder %v1148, 0.0
        %vm1208 = vcmp.ge.f32.partialorder %v1149, 0.0
        %vm1209 = vcmp.ge.f32.partialorder %v1150, 0.0
        %vm1210 = vcmp.ge.f32.partialorder %v1151, 0.0
        %vm1211 = vcmp.ge.f32.partialorder %v1152, 0.0
        %vm1212 = vcmp.ge.f32.partialorder %v1153, 0.0
        %vm1213 = vcmp.ge.f32.partialorder %v1154, 0.0
        %vm1214 = vcmp.ge.f32.partialorder %v1155, 0.0
        %vm1215 = vcmp.ge.f32.partialorder %v1156, 0.0
        %vm1216 = vcmp.ge.f32.partialorder %v1157, 0.0
        %vm1217 = vcmp.ge.f32.partialorder %v1158, 0.0
        %vm1218 = vcmp.ge.f32.partialorder %v1159, 0.0
        %vm1219 = vcmp.ge.f32.partialorder %v1160, 0.0
        %vm1220 = vcmp.ge.f32.partialorder %v1161, 0.0
        %vm1221 = vcmp.ge.f32.partialorder %v1162, 0.0
        %vm1222 = vcmp.ge.f32.partialorder %v1163, 0.0
        %vm1223 = vcmp.ge.f32.partialorder %v1164, 0.0
        %vm1224 = vcmp.ge.f32.partialorder %v1165, 0.0
        %vm1225 = vcmp.ge.f32.partialorder %v1166, 0.0
        %vm1226 = vcmp.ge.f32.partialorder %v1167, 0.0
        %vm1227 = vcmp.ge.f32.partialorder %v1168, 0.0
        %vm1228 = vcmp.ge.f32.partialorder %v1169, 0.0
        %vm1229 = vcmp.ge.f32.partialorder %v1170, 0.0
        %vm1230 = vcmp.ge.f32.partialorder %v1171, 0.0
        %vm1231 = vcmp.ge.f32.partialorder %v1172, 0.0
        %vm1232 = vcmp.ge.f32.partialorder %v1173, 0.0
        %vm1233 = vcmp.ge.f32.partialorder %v1174, 0.0
        %vm1234 = vcmp.ge.f32.partialorder %v1175, 0.0
        %vm1235 = vcmp.ge.f32.partialorder %v1176, 0.0
        %vm1236 = vcmp.ge.f32.partialorder %v1177, 0.0
        %vm1237 = vcmp.ge.f32.partialorder %v1178, 0.0
        %vm1238 = vcmp.ge.f32.partialorder %v1179, 0.0
        %v1239 = vstv %s1180
        %v1240 = vmul.f32 %v1239, %v1122
        %v1241 = vmul.f32 %v1239, %v1123
        %v1242 = vmul.f32 %v1239, %v1124
        %v1243 = vmul.f32 %v1239, %v1125
        %v1244 = vmul.f32 %v1239, %v1126
        %v1245 = vmul.f32 %v1239, %v1127
        %v1246 = vmul.f32 %v1239, %v1128
        %v1247 = vmul.f32 %v1239, %v1129
        %v1248 = vmul.f32 %v1239, %v1130
        %v1249 = vmul.f32 %v1239, %v1131
        %v1250 = vmul.f32 %v1239, %v1132
        %v1251 = vmul.f32 %v1239, %v1133
        %v1252 = vmul.f32 %v1239, %v1134
        %v1253 = vmul.f32 %v1239, %v1135
        %v1254 = vmul.f32 %v1239, %v1136
        %v1255 = vmul.f32 %v1239, %v1137
        %v1256 = vmul.f32 %v1239, %v1138
        %v1257 = vmul.f32 %v1239, %v1139
        %v1258 = vmul.f32 %v1239, %v1140
        %v1259 = vmul.f32 %v1239, %v1141
        %v1260 = vmul.f32 %v1239, %v1142
        %v1261 = vmul.f32 %v1239, %v1143
        %v1262 = vmul.f32 %v1239, %v1144
        %v1263 = vmul.f32 %v1239, %v1145
        %v1264 = vmul.f32 %v1239, %v1146
        %v1265 = vmul.f32 %v1239, %v1147
        %v1266 = vmul.f32 %v1239, %v1148
        %v1267 = vmul.f32 %v1239, %v1149
        %v1268 = vmul.f32 %v1239, %v1150
        %v1269 = vmul.f32 %v1239, %v1151
        %v1270 = vmul.f32 %v1239, %v1152
        %v1271 = vmul.f32 %v1239, %v1153
        %v1272 = vmul.f32 %v1239, %v1154
        %v1273 = vmul.f32 %v1239, %v1155
        %v1274 = vmul.f32 %v1239, %v1156
        %v1275 = vmul.f32 %v1239, %v1157
        %v1276 = vmul.f32 %v1239, %v1158
        %v1277 = vmul.f32 %v1239, %v1159
        %v1278 = vmul.f32 %v1239, %v1160
        %v1279 = vmul.f32 %v1239, %v1161
        %v1280 = vmul.f32 %v1239, %v1162
        %v1281 = vmul.f32 %v1239, %v1163
        %v1282 = vmul.f32 %v1239, %v1164
        %v1283 = vmul.f32 %v1239, %v1165
        %v1284 = vmul.f32 %v1239, %v1166
        %v1285 = vmul.f32 %v1239, %v1167
        %v1286 = vmul.f32 %v1239, %v1168
        %v1287 = vmul.f32 %v1239, %v1169
        %v1288 = vmul.f32 %v1239, %v1170
        %v1289 = vmul.f32 %v1239, %v1171
        %v1290 = vmul.f32 %v1239, %v1172
        %v1291 = vmul.f32 %v1239, %v1173
        %v1292 = vmul.f32 %v1239, %v1174
        %v1293 = vmul.f32 %v1239, %v1175
        %v1294 = vmul.f32 %v1239, %v1176
        %v1295 = vmul.f32 %v1239, %v1177
        %v1296 = vmul.f32 %v1239, %v1178
        %v1297 = vmul.f32 %v1239, %v1179
        %v1298 = vsel %vm1181, %v1122, %v1240
        %v1299 = vsel %vm1182, %v1123, %v1241
        %v1300 = vsel %vm1183, %v1124, %v1242
        %v1301 = vsel %vm1184, %v1125, %v1243
        %v1302 = vsel %vm1185, %v1126, %v1244
        %v1303 = vsel %vm1186, %v1127, %v1245
        %v1304 = vsel %vm1187, %v1128, %v1246
        %v1305 = vsel %vm1188, %v1129, %v1247
        %v1306 = vsel %vm1189, %v1130, %v1248
        %v1307 = vsel %vm1190, %v1131, %v1249
        %v1308 = vsel %vm1191, %v1132, %v1250
        %v1309 = vsel %vm1192, %v1133, %v1251
        %v1310 = vsel %vm1193, %v1134, %v1252
        %v1311 = vsel %vm1194, %v1135, %v1253
        %v1312 = vsel %vm1195, %v1136, %v1254
        %v1313 = vsel %vm1196, %v1137, %v1255
        %v1314 = vsel %vm1197, %v1138, %v1256
        %v1315 = vsel %vm1198, %v1139, %v1257
        %v1316 = vsel %vm1199, %v1140, %v1258
        %v1317 = vsel %vm1200, %v1141, %v1259
        %v1318 = vsel %vm1201, %v1142, %v1260
        %v1319 = vsel %vm1202, %v1143, %v1261
        %v1320 = vsel %vm1203, %v1144, %v1262
        %v1321 = vsel %vm1204, %v1145, %v1263
        %v1322 = vsel %vm1205, %v1146, %v1264
        %v1323 = vsel %vm1206, %v1147, %v1265
        %v1324 = vsel %vm1207, %v1148, %v1266
        %v1325 = vsel %vm1208, %v1149, %v1267
        %v1326 = vsel %vm1209, %v1150, %v1268
        %v1327 = vsel %vm1210, %v1151, %v1269
        %v1328 = vsel %vm1211, %v1152, %v1270
        %v1329 = vsel %vm1212, %v1153, %v1271
        %v1330 = vsel %vm1213, %v1154, %v1272
        %v1331 = vsel %vm1214, %v1155, %v1273
        %v1332 = vsel %vm1215, %v1156, %v1274
        %v1333 = vsel %vm1216, %v1157, %v1275
        %v1334 = vsel %vm1217, %v1158, %v1276
        %v1335 = vsel %vm1218, %v1159, %v1277
        %v1336 = vsel %vm1219, %v1160, %v1278
        %v1337 = vsel %vm1220, %v1161, %v1279
        %v1338 = vsel %vm1221, %v1162, %v1280
        %v1339 = vsel %vm1222, %v1163, %v1281
        %v1340 = vsel %vm1223, %v1164, %v1282
        %v1341 = vsel %vm1224, %v1165, %v1283
        %v1342 = vsel %vm1225, %v1166, %v1284
        %v1343 = vsel %vm1226, %v1167, %v1285
        %v1344 = vsel %vm1227, %v1168, %v1286
        %v1345 = vsel %vm1228, %v1169, %v1287
        %v1346 = vsel %vm1229, %v1170, %v1288
        %v1347 = vsel %vm1230, %v1171, %v1289
        %v1348 = vsel %vm1231, %v1172, %v1290
        %v1349 = vsel %vm1232, %v1173, %v1291
        %v1350 = vsel %vm1233, %v1174, %v1292
        %v1351 = vsel %vm1234, %v1175, %v1293
        %v1352 = vsel %vm1235, %v1176, %v1294
        %v1353 = vsel %vm1236, %v1177, %v1295
        %v1354 = vsel %vm1237, %v1178, %v1296
        %v1355 = vsel %vm1238, %v1179, %v1297
        %1356 = vst [vmem:[%s245] sm:$0xff] %v1298
        %1357 = vst [vmem:[%s245 + $0x8] sm:$0xff] %v1299
        %1358 = vst [vmem:[%s245 + $0x10] sm:$0xff] %v1300
        %1359 = vst [vmem:[%s245 + $0x18] sm:$0xff] %v1301
        %1360 = vst [vmem:[%s245 + $0x20] sm:$0xff] %v1302
        %1361 = vst [vmem:[%s245 + $0x28] sm:$0xff] %v1303
        %1362 = vst [vmem:[%s245 + $0x30] sm:$0xff] %v1304
        %1363 = vst [vmem:[%s245 + $0x38] sm:$0xff] %v1305
        %1364 = vst [vmem:[%s245 + $0x40] sm:$0xff] %v1306
        %1365 = vst [vmem:[%s245 + $0x48] sm:$0xff] %v1307
        %1366 = vst [vmem:[%s245 + $0x50] sm:$0xff] %v1308
        %1367 = vst [vmem:[%s245 + $0x58] sm:$0xff] %v1309
        %1368 = vst [vmem:[%s245 + $0x60] sm:$0xff] %v1310
        %1369 = vst [vmem:[%s245 + $0x68] sm:$0xff] %v1311
        %1370 = vst [vmem:[%s245 + $0x70] sm:$0xff] %v1312
        %1371 = vst [vmem:[%s245 + $0x78] sm:$0xff] %v1313
        %1372 = vst [vmem:[%s245 + $0x80] sm:$0xff] %v1314
        %1373 = vst [vmem:[%s245 + $0x88] sm:$0xff] %v1315
        %1374 = vst [vmem:[%s245 + $0x90] sm:$0xff] %v1316
        %1375 = vst [vmem:[%s245 + $0x98] sm:$0xff] %v1317
        %1376 = vst [vmem:[%s245 + $0xa0] sm:$0xff] %v1318
        %1377 = vst [vmem:[%s245 + $0xa8] sm:$0xff] %v1319
        %1378 = vst [vmem:[%s245 + $0xb0] sm:$0xff] %v1320
        %1379 = vst [vmem:[%s245 + $0xb8] sm:$0xff] %v1321
        %1380 = vst [vmem:[%s245 + $0xc0] sm:$0xff] %v1322
        %1381 = vst [vmem:[%s245 + $0xc8] sm:$0xff] %v1323
        %1382 = vst [vmem:[%s245 + $0xd0] sm:$0xff] %v1324
        %1383 = vst [vmem:[%s245 + $0xd8] sm:$0xff] %v1325
        %1384 = vst [vmem:[%s245 + $0xe0] sm:$0xff] %v1326
        %1385 = vst [vmem:[%s245 + $0xe8] sm:$0xff] %v1327
        %1386 = vst [vmem:[%s245 + $0xf0] sm:$0xff] %v1328
        %1387 = vst [vmem:[%s245 + $0xf8] sm:$0xff] %v1329
        %1388 = vst [vmem:[%s245 + $0x100] sm:$0xff] %v1330
        %1389 = vst [vmem:[%s245 + $0x108] sm:$0xff] %v1331
        %1390 = vst [vmem:[%s245 + $0x110] sm:$0xff] %v1332
        %1391 = vst [vmem:[%s245 + $0x118] sm:$0xff] %v1333
        %1392 = vst [vmem:[%s245 + $0x120] sm:$0xff] %v1334
        %1393 = vst [vmem:[%s245 + $0x128] sm:$0xff] %v1335
        %1394 = vst [vmem:[%s245 + $0x130] sm:$0xff] %v1336
        %1395 = vst [vmem:[%s245 + $0x138] sm:$0xff] %v1337
        %1396 = vst [vmem:[%s245 + $0x140] sm:$0xff] %v1338
        %1397 = vst [vmem:[%s245 + $0x148] sm:$0xff] %v1339
        %1398 = vst [vmem:[%s245 + $0x150] sm:$0xff] %v1340
        %1399 = vst [vmem:[%s245 + $0x158] sm:$0xff] %v1341
        %1400 = vst [vmem:[%s245 + $0x160] sm:$0xff] %v1342
        %1401 = vst [vmem:[%s245 + $0x168] sm:$0xff] %v1343
        %1402 = vst [vmem:[%s245 + $0x170] sm:$0xff] %v1344
        %1403 = vst [vmem:[%s245 + $0x178] sm:$0xff] %v1345
        %1404 = vst [vmem:[%s245 + $0x180] sm:$0xff] %v1346
        %1405 = vst [vmem:[%s245 + $0x188] sm:$0xff] %v1347
        %1406 = vst [vmem:[%s245 + $0x190] sm:$0xff] %v1348
        %1407 = vst [vmem:[%s245 + $0x198] sm:$0xff] %v1349
        %1408 = vst [vmem:[%s245 + $0x1a0] sm:$0xff] %v1350
        %1409 = vst [vmem:[%s245 + $0x1a8] sm:$0xff] %v1351
        %1410 = vst [vmem:[%s245 + $0x1b0] sm:$0xff] %v1352
        %1411 = vst [vmem:[%s245 + $0x1b8] sm:$0xff] %v1353
        %1412 = vst [vmem:[%s245 + $0x1c0] sm:$0xff] %v1354
        %1413 = vst [vmem:[%s245 + $0x1c8] sm:$0xff] %v1355
      $region44: #{mnist_encoder_forward.4} parent=35 // pred_fallthru
        _
      %s1414 = smul.u32 58, %s20
      %p1415 = scmp.lt.s32.totalorder %s1414, 347
      %s1416 = scalar_select %p1415, %s1414, 347
      %s1417 = smul.addr %s1416, 8
      %s1418 = scalar_lea.vmem %s4, %s1417
      // Predicated region
      $region45: #{mnist_encoder_forward.4} parent=35 // pred_check
        %p1419 = pneg %p142
      $region46: #{mnist_encoder_forward.4} parent=35 // pred_check_branch
        %1421 = sbr.rel (%p1419) target = $region48
      $region47: #{mnist_encoder_forward.4} parent=35 // pred_region
        %s1422 = smul.u32 58, %s20
      $region48: #{mnist_encoder_forward.4} parent=35 // pred_fallthru
        _
    $region36: #{mnist_encoder_forward.4} parent=5 // pred_fallthru
      _
    %p1423 = scmp.le.s32.totalorder 2, %s11
    // Predicated region
    $region49: #{mnist_encoder_forward.4} parent=5 // pred_check
      %p1424 = pneg %p1423
    $region50: #{mnist_encoder_forward.4} parent=5 // pred_check_branch
      %1426 = sbr.rel (%p1424) target = $region52
    $region51: #{mnist_encoder_forward.4} parent=5 // pred_region
      %s1427 = ssub.s32 %s11, 2
      // Predicated region
      $region53: #{mnist_encoder_forward.4} parent=51 // pred_check
        %p1428 = pneg %p148
      $region54: #{mnist_encoder_forward.4} parent=51 // pred_check_branch
        %1430 = sbr.rel (%p1428) target = $region56
      $region55: #{mnist_encoder_forward.4} parent=51 // pred_region
        %s1431 = smul.u32 58, %s22
        %p1432 = scmp.lt.s32.totalorder %s1431, 347
        %s1433 = scalar_select %p1432, %s1431, 347
        %s1434 = smul.addr %s1433, 8
        %s1435 = scalar_lea.vmem %s4, %s1434
      $region56: #{mnist_encoder_forward.4} parent=51 // pred_fallthru
        _
    $region52: #{mnist_encoder_forward.4} parent=5 // pred_fallthru
      _
  $region6: #{mnist_encoder_forward.4} parent=0 // loop_footer
    %s15 = sadd.s32 1, %s11
  $region7: #{mnist_encoder_forward.4} parent=0 // loop_footer_branch
    %10 = sbr.rel target = $region3
  $region8: #{mnist_encoder_forward.4} parent=0 // loop_exit
    _

// kernel: mnist_encoder_forward.5
$region0: #{mnist_encoder_forward.5}
  #allocation0 [shape = 'u32[]', space=smem, size = 0x4, offset = 0x4, fixed_abs, tag = 'smem constant byte address 0x4 - core index']
  #allocation1 [shape = 'u32[144,128]{1,0:T(1,128)}', space=vmem, size = 0x12000, scoped, tag = 'internal scratch']
  #allocation2 [shape = 'f32[288,128]{1,0:T(8,128)}', space=vmem, size = 0x24000, scoped, tag = 'scratch operand']
  #allocation3 [shape = 'f32[1]{0:T(128)S(6)}', space=smem, size = 0x200, scoped, tag = 'scoped memory for mnist_encoder_forward.5']
  %s0 = inlined_call_operand.vmem [shape: bf16[576,288], index: 0, kind: input, shape index: {}]
  %s1 = inlined_call_operand.vmem [shape: bf16[288,128], index: 1, kind: input, shape index: {}]
  %s2 = inlined_call_operand.vmem [shape: f32[1,128], index: 2, kind: input, shape index: {}]
  %s3 = inlined_call_operand.<no memory space> [shape: f32[1], index: 3, kind: input, shape index: {}]
  %s4 = inlined_call_operand.vmem [shape: f32[576,128], index: 4, kind: output, shape index: {}]
  %s5 = sld [smem:[#allocation0]]
  $region57: #{mnist_encoder_forward.5} parent=0
    _
  %s7 = ssub.s32 1, %s5
  %s8 = scalar_select 0, %s7, %s5
  %9 = sst [smem:[#allocation3]] %s3
  loop: start=0, step=1, limit=4
  $region2: #{mnist_encoder_forward.5} parent=0 // loop_pre_header
    _
  $region3: #{mnist_encoder_forward.5} parent=0 // loop_header
    %s11 = sphi 0, %s15
    %p12 = scmp.ge.s32.totalorder %s11, 4
    %s18 = sphi 0, %s30
    %s19 = sphi 0, %s26
    %s20 = sphi 0, %s18
    %s21 = sphi 0, %s19
    %s22 = sphi 0, %s20
    %s23 = sphi 0, %s21
    %s35 = sphi 0, %s37
    %s38 = sphi 0, %s35
    %s39 = sphi 0, %s38
    %s55 = sphi 0, %s39
    %s61 = sphi 0, %s63
    %s64 = sphi 0, %s61
    %s65 = sphi 0, %s64
    %s81 = sphi 0, %s65
    %s85 = sphi 0, %s85
    %s87 = sphi 0, %s85
    %s88 = sphi 0, %s87
    %s102 = sphi 0, %s88
    %s106 = sphi 0, %s106
    %s108 = sphi 0, %s106
    %s109 = sphi 0, %s108
    %s123 = sphi 0, %s109
    %s129 = sphi 0, %s131
    %s132 = sphi 0, %s129
    %s133 = sphi 0, %s132
    %s149 = sphi 0, %s133
  $region4: #{mnist_encoder_forward.5} parent=0 // loop_header_branch
    %14 = sbr.rel (%p12) target = $region8
  $region5: #{mnist_encoder_forward.5} parent=0 // loop_body
    %s16 = ssub.s32 %s11, 1
    %s17 = ssub.s32 %s11, 2
    %s24 = sadd.s32 1, %s19
    %p25 = scmp.ge.s32.totalorder %s24, 1
    %s26 = scalar_select %p25, 0, %s24
    %s27 = sadd.s32 1, %s18
    %s28 = scalar_select %p25, %s27, %s18
    %p29 = scmp.ge.s32.totalorder %s28, 2
    %s30 = scalar_select %p29, 0, %s28
    %s31 = ssub.s32 %s18, %s30
    %s32 = ssub.s32 %s19, %s26
    %s33 = sor.u32 %s31, %s32
    %p34 = scmp.eq.s32.totalorder %s33, 0
    %s36 = sadd.s32 %s35, 1
    %s37 = scalar_select %p34, %s35, %s36
    %p40 = pneg %p34
    %p41 = scmp.eq.s32.totalorder %s11, 1
    %p42 = por %p40, %p41
    %p43 = scmp.ne.s32.totalorder %s35, %s38
    %p44 = scmp.eq.s32.totalorder %s11, 0
    %p45 = por %p43, %p44
    %p46 = scmp.ne.s32.totalorder %s35, %s38
    %p47 = scmp.eq.s32.totalorder %s16, 1
    %p48 = por %p46, %p47
    %p49 = scmp.ne.s32.totalorder %s38, %s39
    %p50 = scmp.eq.s32.totalorder %s16, 0
    %p51 = por %p49, %p50
    %p52 = scmp.ne.s32.totalorder %s38, %s39
    %p53 = scmp.eq.s32.totalorder %s17, 1
    %p54 = por %p52, %p53
    %p56 = scmp.ne.s32.totalorder %s39, %s55
    %p57 = scmp.eq.s32.totalorder %s17, 0
    %p58 = por %p56, %p57
    %s59 = ssub.s32 %s19, %s26
    %p60 = scmp.eq.s32.totalorder %s59, 0
    %s62 = sadd.s32 %s61, 1
    %s63 = scalar_select %p60, %s61, %s62
    %p66 = pneg %p60
    %p67 = scmp.eq.s32.totalorder %s11, 1
    %p68 = por %p66, %p67
    %p69 = scmp.ne.s32.totalorder %s61, %s64
    %p70 = scmp.eq.s32.totalorder %s11, 0
    %p71 = por %p69, %p70
    %p72 = scmp.ne.s32.totalorder %s61, %s64
    %p73 = scmp.eq.s32.totalorder %s16, 1
    %p74 = por %p72, %p73
    %p75 = scmp.ne.s32.totalorder %s64, %s65
    %p76 = scmp.eq.s32.totalorder %s16, 0
    %p77 = por %p75, %p76
    %p78 = scmp.ne.s32.totalorder %s64, %s65
    %p79 = scmp.eq.s32.totalorder %s17, 1
    %p80 = por %p78, %p79
    %p82 = scmp.ne.s32.totalorder %s65, %s81
    %p83 = scmp.eq.s32.totalorder %s17, 0
    %p84 = por %p82, %p83
    %s86 = sadd.s32 %s85, 1
    %p89 = scmp.eq.s32.totalorder %s11, 1
    %p90 = scmp.ne.s32.totalorder %s85, %s87
    %p91 = scmp.eq.s32.totalorder %s11, 0
    %p92 = por %p90, %p91
    %p93 = scmp.ne.s32.totalorder %s85, %s87
    %p94 = scmp.eq.s32.totalorder %s16, 1
    %p95 = por %p93, %p94
    %p96 = scmp.ne.s32.totalorder %s87, %s88
    %p97 = scmp.eq.s32.totalorder %s16, 0
    %p98 = por %p96, %p97
    %p99 = scmp.ne.s32.totalorder %s87, %s88
    %p100 = scmp.eq.s32.totalorder %s17, 1
    %p101 = por %p99, %p100
    %p103 = scmp.ne.s32.totalorder %s88, %s102
    %p104 = scmp.eq.s32.totalorder %s17, 0
    %p105 = por %p103, %p104
    %s107 = sadd.s32 %s106, 1
    %p110 = scmp.eq.s32.totalorder %s11, 1
    %p111 = scmp.ne.s32.totalorder %s106, %s108
    %p112 = scmp.eq.s32.totalorder %s11, 0
    %p113 = por %p111, %p112
    %p114 = scmp.ne.s32.totalorder %s106, %s108
    %p115 = scmp.eq.s32.totalorder %s16, 1
    %p116 = por %p114, %p115
    %p117 = scmp.ne.s32.totalorder %s108, %s109
    %p118 = scmp.eq.s32.totalorder %s16, 0
    %p119 = por %p117, %p118
    %p120 = scmp.ne.s32.totalorder %s108, %s109
    %p121 = scmp.eq.s32.totalorder %s17, 1
    %p122 = por %p120, %p121
    %p124 = scmp.ne.s32.totalorder %s109, %s123
    %p125 = scmp.eq.s32.totalorder %s17, 0
    %p126 = por %p124, %p125
    %s127 = ssub.s32 %s18, %s30
    %p128 = scmp.eq.s32.totalorder %s127, 0
    %s130 = sadd.s32 %s129, 1
    %s131 = scalar_select %p128, %s129, %s130
    %p134 = pneg %p128
    %p135 = scmp.eq.s32.totalorder %s11, 1
    %p136 = por %p134, %p135
    %p137 = scmp.ne.s32.totalorder %s129, %s132
    %p138 = scmp.eq.s32.totalorder %s11, 0
    %p139 = por %p137, %p138
    %p140 = scmp.ne.s32.totalorder %s129, %s132
    %p141 = scmp.eq.s32.totalorder %s16, 1
    %p142 = por %p140, %p141
    %p143 = scmp.ne.s32.totalorder %s132, %s133
    %p144 = scmp.eq.s32.totalorder %s16, 0
    %p145 = por %p143, %p144
    %p146 = scmp.ne.s32.totalorder %s132, %s133
    %p147 = scmp.eq.s32.totalorder %s17, 1
    %p148 = por %p146, %p147
    %p150 = scmp.ne.s32.totalorder %s133, %s149
    %p151 = scmp.eq.s32.totalorder %s17, 0
    %p152 = por %p150, %p151
    %p153 = scmp.le.s32.totalorder 1, %s11
    %p154 = scmp.lt.s32.totalorder %s11, 3
    %p155 = pnand %p153, %p154
    %p156 = pneg %p155
    // Predicated region
    $region9: #{mnist_encoder_forward.5} parent=5 // pred_check
      _
    $region10: #{mnist_encoder_forward.5} parent=5 // pred_check_branch
      %158 = sbr.rel (%p155) target = $region12
    $region11: #{mnist_encoder_forward.5} parent=5 // pred_region
      %s159 = ssub.s32 %s11, 1
      // Predicated region
      $region13: #{mnist_encoder_forward.5} parent=11 // pred_check
        %p160 = pneg %p77
      $region14: #{mnist_encoder_forward.5} parent=11 // pred_check_branch
        %162 = sbr.rel (%p160) target = $region16
      $region15: #{mnist_encoder_forward.5} parent=11 // pred_region
        %s163 = smul.u32 36, %s21
        %p164 = scmp.lt.s32.totalorder %s163, 35
        %s165 = scalar_select %p164, %s163, 35
        %s166 = smul.addr %s165, 4
        %s167 = scalar_lea.vmem %s1, %s166
        %s168 = smul.u32 36, %s21
      $region16: #{mnist_encoder_forward.5} parent=11 // pred_fallthru
        _
      // Predicated region
      $region17: #{mnist_encoder_forward.5} parent=11 // pred_check
        %p169 = pneg %p98
      $region18: #{mnist_encoder_forward.5} parent=11 // pred_check_branch
        %171 = sbr.rel (%p169) target = $region20
      $region19: #{mnist_encoder_forward.5} parent=11 // pred_region
        _
      $region20: #{mnist_encoder_forward.5} parent=11 // pred_fallthru
        _
      // Predicated region
      $region21: #{mnist_encoder_forward.5} parent=11 // pred_check
        %p172 = pneg %p119
      $region22: #{mnist_encoder_forward.5} parent=11 // pred_check_branch
        %174 = sbr.rel (%p172) target = $region24
      $region23: #{mnist_encoder_forward.5} parent=11 // pred_region
        _
      $region24: #{mnist_encoder_forward.5} parent=11 // pred_fallthru
        _
    $region12: #{mnist_encoder_forward.5} parent=5 // pred_fallthru
      _
    %p175 = scmp.lt.s32.totalorder %s11, 2
    // Predicated region
    $region25: #{mnist_encoder_forward.5} parent=5 // pred_check
      %p176 = pneg %p175
    $region26: #{mnist_encoder_forward.5} parent=5 // pred_check_branch
      %178 = sbr.rel (%p176) target = $region28
    $region27: #{mnist_encoder_forward.5} parent=5 // pred_region
      // Predicated region
      $region29: #{mnist_encoder_forward.5} parent=27 // pred_check
        %p179 = pneg %p45
      $region30: #{mnist_encoder_forward.5} parent=27 // pred_check_branch
        %181 = sbr.rel (%p179) target = $region32
      $region31: #{mnist_encoder_forward.5} parent=27 // pred_region
        %s182 = smul.u32 36, %s18
        %s183 = smul.u32 3, %s19
        %p184 = scmp.lt.s32.totalorder %s182, 71
        %s185 = scalar_select %p184, %s182, 71
        %p186 = scmp.lt.s32.totalorder %s183, 2
        %s187 = scalar_select %p186, %s183, 2
        %s188 = smul.addr %s185, 3
        %s189 = sadd.s32 %s187, %s188
        %s190 = smul.addr %s189, 4
        %s191 = scalar_lea.vmem %s0, %s190
        %s192 = smul.u32 36, %s18
        %s193 = smul.u32 3, %s19
      $region32: #{mnist_encoder_forward.5} parent=27 // pred_fallthru
        _
    $region28: #{mnist_encoder_forward.5} parent=5 // pred_fallthru
      _
    %p194 = scmp.le.s32.totalorder 1, %s11
    %p195 = scmp.lt.s32.totalorder %s11, 3
    %p196 = pnand %p194, %p195
    %p197 = pneg %p196
    // Predicated region
    $region33: #{mnist_encoder_forward.5} parent=5 // pred_check
      _
    $region34: #{mnist_encoder_forward.5} parent=5 // pred_check_branch
      %199 = sbr.rel (%p196) target = $region36
    $region35: #{mnist_encoder_forward.5} parent=5 // pred_region
      %s200 = ssub.s32 %s11, 1
      %s201 = smul.u32 36, %s20
      %s202 = smul.u32 3, %s21
      %p203 = scmp.lt.s32.totalorder %s201, 71
      %s204 = scalar_select %p203, %s201, 71
      %p205 = scmp.lt.s32.totalorder %s202, 2
      %s206 = scalar_select %p205, %s202, 2
      %s207 = smul.addr %s204, 3
      %s208 = sadd.s32 %s206, %s207
      %s209 = smul.addr %s208, 4
      %s210 = scalar_lea.vmem %s0, %s209
      %p211 = pneg %p51
      %p212 = pneg %p48
      %s213 = smul.u32 36, %s21
      %p214 = scmp.lt.s32.totalorder %s213, 35
      %s215 = scalar_select %p214, %s213, 35
      %s216 = smul.addr %s215, 4
      %s217 = scalar_lea.vmem %s1, %s216
      %p218 = pneg %p77
      %p219 = pneg %p74
      %p220 = pneg %p98
      %p221 = pneg %p95
      %p222 = pneg %p119
      %p223 = pneg %p116
      %p224 = pneg %p145
      %p225 = pneg %p142
      %s226 = smul.u32 36, %s20
      %p227 = scmp.lt.s32.totalorder %s226, 71
      %s228 = scalar_select %p227, %s226, 71
      %s229 = smul.addr %s228, 8
      %s230 = scalar_lea.vmem %s4, %s229
      %s231 = smul.u32 36, %s20
      %s232 = smul.u32 3, %s21
      %p233 = scmp.lt.s32.totalorder %s231, 71
      %s234 = scalar_select %p233, %s231, 71
      %p235 = scmp.lt.s32.totalorder %s232, 2
      %s236 = scalar_select %p235, %s232, 2
      %s237 = smul.addr %s234, 3
      %s238 = sadd.s32 %s236, %s237
      %s239 = smul.addr %s238, 4
      %s240 = scalar_lea.vmem %s0, %s239
      %s241 = smul.u32 36, %s20
      %s242 = smul.u32 3, %s21
      %s243 = smul.u32 36, %s21
      %p244 = scmp.lt.s32.totalorder %s243, 35
      %s245 = scalar_select %p244, %s243, 35
      %s246 = smul.addr %s245, 4
      %s247 = scalar_lea.vmem %s1, %s246
      %s248 = smul.u32 36, %s21
      %s249 = smul.u32 36, %s20
      %p250 = scmp.lt.s32.totalorder %s249, 71
      %s251 = scalar_select %p250, %s249, 71
      %s252 = smul.addr %s251, 8
      %s253 = scalar_lea.vmem %s4, %s252
      %s254 = smul.u32 36, %s20
      %p256 = scmp.eq.s32.totalorder %s21, 0
      // Predicated region
      $region37: #{mnist_encoder_forward.5} parent=35 // pred_check
        %p257 = pneg %p256
      $region38: #{mnist_encoder_forward.5} parent=35 // pred_check_branch
        %259 = sbr.rel (%p257) target = $region40
      $region39: #{mnist_encoder_forward.5} parent=35 // pred_region
        %260 = vst [vmem:[#allocation2] sm:$0xff] 0.0
        %261 = vst [vmem:[#allocation2 + $0x8] sm:$0xff] 0.0
        %262 = vst [vmem:[#allocation2 + $0x10] sm:$0xff] 0.0
        %263 = vst [vmem:[#allocation2 + $0x18] sm:$0xff] 0.0
        %264 = vst [vmem:[#allocation2 + $0x20] sm:$0xff] 0.0
        %265 = vst [vmem:[#allocation2 + $0x28] sm:$0xff] 0.0
        %266 = vst [vmem:[#allocation2 + $0x30] sm:$0xff] 0.0
        %267 = vst [vmem:[#allocation2 + $0x38] sm:$0xff] 0.0
        %268 = vst [vmem:[#allocation2 + $0x40] sm:$0xff] 0.0
        %269 = vst [vmem:[#allocation2 + $0x48] sm:$0xff] 0.0
        %270 = vst [vmem:[#allocation2 + $0x50] sm:$0xff] 0.0
        %271 = vst [vmem:[#allocation2 + $0x58] sm:$0xff] 0.0
        %272 = vst [vmem:[#allocation2 + $0x60] sm:$0xff] 0.0
        %273 = vst [vmem:[#allocation2 + $0x68] sm:$0xff] 0.0
        %274 = vst [vmem:[#allocation2 + $0x70] sm:$0xff] 0.0
        %275 = vst [vmem:[#allocation2 + $0x78] sm:$0xff] 0.0
        %276 = vst [vmem:[#allocation2 + $0x80] sm:$0xff] 0.0
        %277 = vst [vmem:[#allocation2 + $0x88] sm:$0xff] 0.0
        %278 = vst [vmem:[#allocation2 + $0x90] sm:$0xff] 0.0
        %279 = vst [vmem:[#allocation2 + $0x98] sm:$0xff] 0.0
        %280 = vst [vmem:[#allocation2 + $0xa0] sm:$0xff] 0.0
        %281 = vst [vmem:[#allocation2 + $0xa8] sm:$0xff] 0.0
        %282 = vst [vmem:[#allocation2 + $0xb0] sm:$0xff] 0.0
        %283 = vst [vmem:[#allocation2 + $0xb8] sm:$0xff] 0.0
        %284 = vst [vmem:[#allocation2 + $0xc0] sm:$0xff] 0.0
        %285 = vst [vmem:[#allocation2 + $0xc8] sm:$0xff] 0.0
        %286 = vst [vmem:[#allocation2 + $0xd0] sm:$0xff] 0.0
        %287 = vst [vmem:[#allocation2 + $0xd8] sm:$0xff] 0.0
        %288 = vst [vmem:[#allocation2 + $0xe0] sm:$0xff] 0.0
        %289 = vst [vmem:[#allocation2 + $0xe8] sm:$0xff] 0.0
        %290 = vst [vmem:[#allocation2 + $0xf0] sm:$0xff] 0.0
        %291 = vst [vmem:[#allocation2 + $0xf8] sm:$0xff] 0.0
        %292 = vst [vmem:[#allocation2 + $0x100] sm:$0xff] 0.0
        %293 = vst [vmem:[#allocation2 + $0x108] sm:$0xff] 0.0
        %294 = vst [vmem:[#allocation2 + $0x110] sm:$0xff] 0.0
        %295 = vst [vmem:[#allocation2 + $0x118] sm:$0xff] 0.0
      $region40: #{mnist_encoder_forward.5} parent=35 // pred_fallthru
        _
      %v296 = vld [vmem:[#allocation2] sm:$0xff]
      %v297 = vld [vmem:[#allocation2 + $0x8] sm:$0xff]
      %v298 = vld [vmem:[#allocation2 + $0x10] sm:$0xff]
      %v299 = vld [vmem:[#allocation2 + $0x18] sm:$0xff]
      %v300 = vld [vmem:[#allocation2 + $0x20] sm:$0xff]
      %v301 = vld [vmem:[#allocation2 + $0x28] sm:$0xff]
      %v302 = vld [vmem:[#allocation2 + $0x30] sm:$0xff]
      %v303 = vld [vmem:[#allocation2 + $0x38] sm:$0xff]
      %v304 = vld [vmem:[#allocation2 + $0x40] sm:$0xff]
      %v305 = vld [vmem:[#allocation2 + $0x48] sm:$0xff]
      %v306 = vld [vmem:[#allocation2 + $0x50] sm:$0xff]
      %v307 = vld [vmem:[#allocation2 + $0x58] sm:$0xff]
      %v308 = vld [vmem:[#allocation2 + $0x60] sm:$0xff]
      %v309 = vld [vmem:[#allocation2 + $0x68] sm:$0xff]
      %v310 = vld [vmem:[#allocation2 + $0x70] sm:$0xff]
      %v311 = vld [vmem:[#allocation2 + $0x78] sm:$0xff]
      %v312 = vld [vmem:[#allocation2 + $0x80] sm:$0xff]
      %v313 = vld [vmem:[#allocation2 + $0x88] sm:$0xff]
      %v314 = vld [vmem:[#allocation2 + $0x90] sm:$0xff]
      %v315 = vld [vmem:[#allocation2 + $0x98] sm:$0xff]
      %v316 = vld [vmem:[#allocation2 + $0xa0] sm:$0xff]
      %v317 = vld [vmem:[#allocation2 + $0xa8] sm:$0xff]
      %v318 = vld [vmem:[#allocation2 + $0xb0] sm:$0xff]
      %v319 = vld [vmem:[#allocation2 + $0xb8] sm:$0xff]
      %v320 = vld [vmem:[#allocation2 + $0xc0] sm:$0xff]
      %v321 = vld [vmem:[#allocation2 + $0xc8] sm:$0xff]
      %v322 = vld [vmem:[#allocation2 + $0xd0] sm:$0xff]
      %v323 = vld [vmem:[#allocation2 + $0xd8] sm:$0xff]
      %v324 = vld [vmem:[#allocation2 + $0xe0] sm:$0xff]
      %v325 = vld [vmem:[#allocation2 + $0xe8] sm:$0xff]
      %v326 = vld [vmem:[#allocation2 + $0xf0] sm:$0xff]
      %v327 = vld [vmem:[#allocation2 + $0xf8] sm:$0xff]
      %v328 = vld [vmem:[#allocation2 + $0x100] sm:$0xff]
      %v329 = vld [vmem:[#allocation2 + $0x108] sm:$0xff]
      %v330 = vld [vmem:[#allocation2 + $0x110] sm:$0xff]
      %v331 = vld [vmem:[#allocation2 + $0x118] sm:$0xff]
      %v332 = vld [vmem:[%s240] sm:$0xff]
      %v333 = vld [vmem:[%s240 + $0x8] sm:$0xf]
      %v334 = vld [vmem:[%s240 + $0xc] sm:$0xff]
      %v335 = vld [vmem:[%s240 + $0x14] sm:$0xf]
      %v336 = vld [vmem:[%s240 + $0x18] sm:$0xff]
      %v337 = vld [vmem:[%s240 + $0x20] sm:$0xf]
      %v338 = vld [vmem:[%s240 + $0x24] sm:$0xff]
      %v339 = vld [vmem:[%s240 + $0x2c] sm:$0xf]
      %v340 = vld [vmem:[%s240 + $0x30] sm:$0xff]
      %v341 = vld [vmem:[%s240 + $0x38] sm:$0xf]
      %v342 = vld [vmem:[%s240 + $0x3c] sm:$0xff]
      %v343 = vld [vmem:[%s240 + $0x44] sm:$0xf]
      %v344 = vld [vmem:[%s240 + $0x48] sm:$0xff]
      %v345 = vld [vmem:[%s240 + $0x50] sm:$0xf]
      %v346 = vld [vmem:[%s240 + $0x54] sm:$0xff]
      %v347 = vld [vmem:[%s240 + $0x5c] sm:$0xf]
      %v348 = vld [vmem:[%s240 + $0x60] sm:$0xff]
      %v349 = vld [vmem:[%s240 + $0x68] sm:$0xf]
      %v350 = vld [vmem:[%s240 + $0x6c] sm:$0xff]
      %v351 = vld [vmem:[%s240 + $0x74] sm:$0xf]
      %v352 = vld [vmem:[%s240 + $0x78] sm:$0xff]
      %v353 = vld [vmem:[%s240 + $0x80] sm:$0xf]
      %v354 = vld [vmem:[%s240 + $0x84] sm:$0xff]
      %v355 = vld [vmem:[%s240 + $0x8c] sm:$0xf]
      %v356 = vld [vmem:[%s240 + $0x90] sm:$0xff]
      %v357 = vld [vmem:[%s240 + $0x98] sm:$0xf]
      %v358 = vld [vmem:[%s240 + $0x9c] sm:$0xff]
      %v359 = vld [vmem:[%s240 + $0xa4] sm:$0xf]
      %v360 = vld [vmem:[%s240 + $0xa8] sm:$0xff]
      %v361 = vld [vmem:[%s240 + $0xb0] sm:$0xf]
      %v362 = vld [vmem:[%s240 + $0xb4] sm:$0xff]
      %v363 = vld [vmem:[%s240 + $0xbc] sm:$0xf]
      %v364 = vld [vmem:[%s240 + $0xc0] sm:$0xff]
      %v365 = vld [vmem:[%s240 + $0xc8] sm:$0xf]
      %v366 = vld [vmem:[%s240 + $0xcc] sm:$0xff]
      %v367 = vld [vmem:[%s240 + $0xd4] sm:$0xf]
      %v368 = vld [vmem:[%s240 + $0xd8] sm:$0xff]
      %v369 = vld [vmem:[%s240 + $0xe0] sm:$0xf]
      %v370 = vld [vmem:[%s240 + $0xe4] sm:$0xff]
      %v371 = vld [vmem:[%s240 + $0xec] sm:$0xf]
      %v372 = vld [vmem:[%s240 + $0xf0] sm:$0xff]
      %v373 = vld [vmem:[%s240 + $0xf8] sm:$0xf]
      %v374 = vld [vmem:[%s240 + $0xfc] sm:$0xff]
      %v375 = vld [vmem:[%s240 + $0x104] sm:$0xf]
      %v376 = vld [vmem:[%s240 + $0x108] sm:$0xff]
      %v377 = vld [vmem:[%s240 + $0x110] sm:$0xf]
      %v378 = vld [vmem:[%s240 + $0x114] sm:$0xff]
      %v379 = vld [vmem:[%s240 + $0x11c] sm:$0xf]
      %v380 = vld [vmem:[%s240 + $0x120] sm:$0xff]
      %v381 = vld [vmem:[%s240 + $0x128] sm:$0xf]
      %v382 = vld [vmem:[%s240 + $0x12c] sm:$0xff]
      %v383 = vld [vmem:[%s240 + $0x134] sm:$0xf]
      %v384 = vld [vmem:[%s240 + $0x138] sm:$0xff]
      %v385 = vld [vmem:[%s240 + $0x140] sm:$0xf]
      %v386 = vld [vmem:[%s240 + $0x144] sm:$0xff]
      %v387 = vld [vmem:[%s240 + $0x14c] sm:$0xf]
      %v388 = vld [vmem:[%s240 + $0x150] sm:$0xff]
      %v389 = vld [vmem:[%s240 + $0x158] sm:$0xf]
      %v390 = vld [vmem:[%s240 + $0x15c] sm:$0xff]
      %v391 = vld [vmem:[%s240 + $0x164] sm:$0xf]
      %v392 = vld [vmem:[%s240 + $0x168] sm:$0xff]
      %v393 = vld [vmem:[%s240 + $0x170] sm:$0xf]
      %v394 = vld [vmem:[%s240 + $0x174] sm:$0xff]
      %v395 = vld [vmem:[%s240 + $0x17c] sm:$0xf]
      %v396 = vld [vmem:[%s240 + $0x180] sm:$0xff]
      %v397 = vld [vmem:[%s240 + $0x188] sm:$0xf]
      %v398 = vld [vmem:[%s240 + $0x18c] sm:$0xff]
      %v399 = vld [vmem:[%s240 + $0x194] sm:$0xf]
      %v400 = vld [vmem:[%s240 + $0x198] sm:$0xff]
      %v401 = vld [vmem:[%s240 + $0x1a0] sm:$0xf]
      %v402 = vld [vmem:[%s240 + $0x1a4] sm:$0xff]
      %v403 = vld [vmem:[%s240 + $0x1ac] sm:$0xf]
      %v404 = vld [vmem:[%s247] sm:$0xf]
      %v405 = vld [vmem:[%s247 + $0x4] sm:$0xf]
      %v406 = vld [vmem:[%s247 + $0x8] sm:$0xf]
      %v407 = vld [vmem:[%s247 + $0xc] sm:$0xf]
      %v408 = vld [vmem:[%s247 + $0x10] sm:$0xf]
      %v409 = vld [vmem:[%s247 + $0x14] sm:$0xf]
      %v410 = vld [vmem:[%s247 + $0x18] sm:$0xf]
      %v411 = vld [vmem:[%s247 + $0x1c] sm:$0xf]
      %v412 = vld [vmem:[%s247 + $0x20] sm:$0xf]
      %v413 = vld [vmem:[%s247 + $0x24] sm:$0xf]
      %v414 = vld [vmem:[%s247 + $0x28] sm:$0xf]
      %v415 = vld [vmem:[%s247 + $0x2c] sm:$0xf]
      %v416 = vld [vmem:[%s247 + $0x30] sm:$0xf]
      %v417 = vld [vmem:[%s247 + $0x34] sm:$0xf]
      %v418 = vld [vmem:[%s247 + $0x38] sm:$0xf]
      %v419 = vld [vmem:[%s247 + $0x3c] sm:$0xf]
      %v420 = vld [vmem:[%s247 + $0x40] sm:$0xf]
      %v421 = vld [vmem:[%s247 + $0x44] sm:$0xf]
      %v422 = vld [vmem:[%s247 + $0x48] sm:$0xf]
      %v423 = vld [vmem:[%s247 + $0x4c] sm:$0xf]
      %v424 = vld [vmem:[%s247 + $0x50] sm:$0xf]
      %v425 = vld [vmem:[%s247 + $0x54] sm:$0xf]
      %v426 = vld [vmem:[%s247 + $0x58] sm:$0xf]
      %v427 = vld [vmem:[%s247 + $0x5c] sm:$0xf]
      %v428 = vld [vmem:[%s247 + $0x60] sm:$0xf]
      %v429 = vld [vmem:[%s247 + $0x64] sm:$0xf]
      %v430 = vld [vmem:[%s247 + $0x68] sm:$0xf]
      %v431 = vld [vmem:[%s247 + $0x6c] sm:$0xf]
      %v432 = vld [vmem:[%s247 + $0x70] sm:$0xf]
      %v433 = vld [vmem:[%s247 + $0x74] sm:$0xf]
      %v434 = vld [vmem:[%s247 + $0x78] sm:$0xf]
      %v435 = vld [vmem:[%s247 + $0x7c] sm:$0xf]
      %v436 = vld [vmem:[%s247 + $0x80] sm:$0xf]
      %v437 = vld [vmem:[%s247 + $0x84] sm:$0xf]
      %v438 = vld [vmem:[%s247 + $0x88] sm:$0xf]
      %v439 = vld [vmem:[%s247 + $0x8c] sm:$0xf]
      %v512 = vunpack.c.l.b16 %v332
      %v513 = vunpack.c.h.b16 %v332
      %v514 = vunpack.c.l.b16 %v333
      %v515 = vunpack.c.l.b16 %v334
      %v516 = vunpack.c.h.b16 %v334
      %v517 = vunpack.c.l.b16 %v335
      %v518 = vunpack.c.l.b16 %v336
      %v519 = vunpack.c.h.b16 %v336
      %v520 = vunpack.c.l.b16 %v337
      %v521 = vunpack.c.l.b16 %v338
      %v522 = vunpack.c.h.b16 %v338
      %v523 = vunpack.c.l.b16 %v339
      %v524 = vunpack.c.l.b16 %v340
      %v525 = vunpack.c.h.b16 %v340
      %v526 = vunpack.c.l.b16 %v341
      %v527 = vunpack.c.l.b16 %v342
      %v528 = vunpack.c.h.b16 %v342
      %v529 = vunpack.c.l.b16 %v343
      %v530 = vunpack.c.l.b16 %v344
      %v531 = vunpack.c.h.b16 %v344
      %v532 = vunpack.c.l.b16 %v345
      %v533 = vunpack.c.l.b16 %v346
      %v534 = vunpack.c.h.b16 %v346
      %v535 = vunpack.c.l.b16 %v347
      %v536 = vunpack.c.l.b16 %v348
      %v537 = vunpack.c.h.b16 %v348
      %v538 = vunpack.c.l.b16 %v349
      %v539 = vunpack.c.l.b16 %v350
      %v540 = vunpack.c.h.b16 %v350
      %v541 = vunpack.c.l.b16 %v351
      %v542 = vunpack.c.l.b16 %v352
      %v543 = vunpack.c.h.b16 %v352
      %v544 = vunpack.c.l.b16 %v353
      %v545 = vunpack.c.l.b16 %v354
      %v546 = vunpack.c.h.b16 %v354
      %v547 = vunpack.c.l.b16 %v355
      %v548 = vunpack.c.l.b16 %v356
      %v549 = vunpack.c.h.b16 %v356
      %v550 = vunpack.c.l.b16 %v357
      %v551 = vunpack.c.l.b16 %v358
      %v552 = vunpack.c.h.b16 %v358
      %v553 = vunpack.c.l.b16 %v359
      %v554 = vunpack.c.l.b16 %v360
      %v555 = vunpack.c.h.b16 %v360
      %v556 = vunpack.c.l.b16 %v361
      %v557 = vunpack.c.l.b16 %v362
      %v558 = vunpack.c.h.b16 %v362
      %v559 = vunpack.c.l.b16 %v363
      %v560 = vunpack.c.l.b16 %v364
      %v561 = vunpack.c.h.b16 %v364
      %v562 = vunpack.c.l.b16 %v365
      %v563 = vunpack.c.l.b16 %v366
      %v564 = vunpack.c.h.b16 %v366
      %v565 = vunpack.c.l.b16 %v367
      %v566 = vunpack.c.l.b16 %v368
      %v567 = vunpack.c.h.b16 %v368
      %v568 = vunpack.c.l.b16 %v369
      %v569 = vunpack.c.l.b16 %v370
      %v570 = vunpack.c.h.b16 %v370
      %v571 = vunpack.c.l.b16 %v371
      %v572 = vunpack.c.l.b16 %v372
      %v573 = vunpack.c.h.b16 %v372
      %v574 = vunpack.c.l.b16 %v373
      %v575 = vunpack.c.l.b16 %v374
      %v576 = vunpack.c.h.b16 %v374
      %v577 = vunpack.c.l.b16 %v375
      %v578 = vunpack.c.l.b16 %v376
      %v579 = vunpack.c.h.b16 %v376
      %v580 = vunpack.c.l.b16 %v377
      %v581 = vunpack.c.l.b16 %v378
      %v582 = vunpack.c.h.b16 %v378
      %v583 = vunpack.c.l.b16 %v379
      %v584 = vunpack.c.l.b16 %v380
      %v585 = vunpack.c.h.b16 %v380
      %v586 = vunpack.c.l.b16 %v381
      %v587 = vunpack.c.l.b16 %v382
      %v588 = vunpack.c.h.b16 %v382
      %v589 = vunpack.c.l.b16 %v383
      %v590 = vunpack.c.l.b16 %v384
      %v591 = vunpack.c.h.b16 %v384
      %v592 = vunpack.c.l.b16 %v385
      %v593 = vunpack.c.l.b16 %v386
      %v594 = vunpack.c.h.b16 %v386
      %v595 = vunpack.c.l.b16 %v387
      %v596 = vunpack.c.l.b16 %v388
      %v597 = vunpack.c.h.b16 %v388
      %v598 = vunpack.c.l.b16 %v389
      %v599 = vunpack.c.l.b16 %v390
      %v600 = vunpack.c.h.b16 %v390
      %v601 = vunpack.c.l.b16 %v391
      %v602 = vunpack.c.l.b16 %v392
      %v603 = vunpack.c.h.b16 %v392
      %v604 = vunpack.c.l.b16 %v393
      %v605 = vunpack.c.l.b16 %v394
      %v606 = vunpack.c.h.b16 %v394
      %v607 = vunpack.c.l.b16 %v395
      %v608 = vunpack.c.l.b16 %v396
      %v609 = vunpack.c.h.b16 %v396
      %v610 = vunpack.c.l.b16 %v397
      %v611 = vunpack.c.l.b16 %v398
      %v612 = vunpack.c.h.b16 %v398
      %v613 = vunpack.c.l.b16 %v399
      %v614 = vunpack.c.l.b16 %v400
      %v615 = vunpack.c.h.b16 %v400
      %v616 = vunpack.c.l.b16 %v401
      %v617 = vunpack.c.l.b16 %v402
      %v618 = vunpack.c.h.b16 %v402
      %v619 = vunpack.c.l.b16 %v403
      %v620 = vpack.c.b16 %v515, %v512
      %v621 = vpack.c.b16 %v516, %v513
      %v622 = vpack.c.b16 %v517, %v514
      %v623 = vpack.c.b16 %v521, %v518
      %v624 = vpack.c.b16 %v522, %v519
      %v625 = vpack.c.b16 %v523, %v520
      %v626 = vpack.c.b16 %v527, %v524
      %v627 = vpack.c.b16 %v528, %v525
      %v628 = vpack.c.b16 %v529, %v526
      %v629 = vpack.c.b16 %v533, %v530
      %v630 = vpack.c.b16 %v534, %v531
      %v631 = vpack.c.b16 %v535, %v532
      %v632 = vpack.c.b16 %v539, %v536
      %v633 = vpack.c.b16 %v540, %v537
      %v634 = vpack.c.b16 %v541, %v538
      %v635 = vpack.c.b16 %v545, %v542
      %v636 = vpack.c.b16 %v546, %v543
      %v637 = vpack.c.b16 %v547, %v544
      %v638 = vpack.c.b16 %v551, %v548
      %v639 = vpack.c.b16 %v552, %v549
      %v640 = vpack.c.b16 %v553, %v550
      %v641 = vpack.c.b16 %v557, %v554
      %v642 = vpack.c.b16 %v558, %v555
      %v643 = vpack.c.b16 %v559, %v556
      %v644 = vpack.c.b16 %v563, %v560
      %v645 = vpack.c.b16 %v564, %v561
      %v646 = vpack.c.b16 %v565, %v562
      %v647 = vpack.c.b16 %v569, %v566
      %v648 = vpack.c.b16 %v570, %v567
      %v649 = vpack.c.b16 %v571, %v568
      %v650 = vpack.c.b16 %v575, %v572
      %v651 = vpack.c.b16 %v576, %v573
      %v652 = vpack.c.b16 %v577, %v574
      %v653 = vpack.c.b16 %v581, %v578
      %v654 = vpack.c.b16 %v582, %v579
      %v655 = vpack.c.b16 %v583, %v580
      %v656 = vpack.c.b16 %v587, %v584
      %v657 = vpack.c.b16 %v588, %v585
      %v658 = vpack.c.b16 %v589, %v586
      %v659 = vpack.c.b16 %v593, %v590
      %v660 = vpack.c.b16 %v594, %v591
      %v661 = vpack.c.b16 %v595, %v592
      %v662 = vpack.c.b16 %v599, %v596
      %v663 = vpack.c.b16 %v600, %v597
      %v664 = vpack.c.b16 %v601, %v598
      %v665 = vpack.c.b16 %v605, %v602
      %v666 = vpack.c.b16 %v606, %v603
      %v667 = vpack.c.b16 %v607, %v604
      %v668 = vpack.c.b16 %v611, %v608
      %v669 = vpack.c.b16 %v612, %v609
      %v670 = vpack.c.b16 %v613, %v610
      %v671 = vpack.c.b16 %v617, %v614
      %v672 = vpack.c.b16 %v618, %v615
      %v673 = vpack.c.b16 %v619, %v616
      %v746 = vunpack.c.l.b16 %v404
      %v747 = vunpack.c.l.b16 %v405
      %v748 = vunpack.c.l.b16 %v406
      %v749 = vunpack.c.l.b16 %v407
      %v750 = vunpack.c.l.b16 %v408
      %v751 = vunpack.c.l.b16 %v409
      %v752 = vunpack.c.l.b16 %v410
      %v753 = vunpack.c.l.b16 %v411
      %v754 = vunpack.c.l.b16 %v412
      %v755 = vunpack.c.l.b16 %v413
      %v756 = vunpack.c.l.b16 %v414
      %v757 = vunpack.c.l.b16 %v415
      %v758 = vunpack.c.l.b16 %v416
      %v759 = vunpack.c.l.b16 %v417
      %v760 = vunpack.c.l.b16 %v418
      %v761 = vunpack.c.l.b16 %v419
      %v762 = vunpack.c.l.b16 %v420
      %v763 = vunpack.c.l.b16 %v421
      %v764 = vunpack.c.l.b16 %v422
      %v765 = vunpack.c.l.b16 %v423
      %v766 = vunpack.c.l.b16 %v424
      %v767 = vunpack.c.l.b16 %v425
      %v768 = vunpack.c.l.b16 %v426
      %v769 = vunpack.c.l.b16 %v427
      %v770 = vunpack.c.l.b16 %v428
      %v771 = vunpack.c.l.b16 %v429
      %v772 = vunpack.c.l.b16 %v430
      %v773 = vunpack.c.l.b16 %v431
      %v774 = vunpack.c.l.b16 %v432
      %v775 = vunpack.c.l.b16 %v433
      %v776 = vunpack.c.l.b16 %v434
      %v777 = vunpack.c.l.b16 %v435
      %v778 = vunpack.c.l.b16 %v436
      %v779 = vunpack.c.l.b16 %v437
      %v780 = vunpack.c.l.b16 %v438
      %v781 = vunpack.c.l.b16 %v439
      %v782 = vpack.c.b16 %v747, %v746
      %v783 = vpack.c.b16 %v749, %v748
      %v784 = vpack.c.b16 %v751, %v750
      %v785 = vpack.c.b16 %v753, %v752
      %v786 = vpack.c.b16 %v755, %v754
      %v787 = vpack.c.b16 %v757, %v756
      %v788 = vpack.c.b16 %v759, %v758
      %v789 = vpack.c.b16 %v761, %v760
      %v790 = vpack.c.b16 %v763, %v762
      %v791 = vpack.c.b16 %v765, %v764
      %v792 = vpack.c.b16 %v767, %v766
      %v793 = vpack.c.b16 %v769, %v768
      %v794 = vpack.c.b16 %v771, %v770
      %v795 = vpack.c.b16 %v773, %v772
      %v796 = vpack.c.b16 %v775, %v774
      %v797 = vpack.c.b16 %v777, %v776
      %v798 = vpack.c.b16 %v779, %v778
      %v799 = vpack.c.b16 %v781, %v780
      %vm818 = vcmask 261120
      %v820 = vsel %vm818, %v622, 0
      %v823 = vsel %vm818, %v625, 0
      %v826 = vsel %vm818, %v628, 0
      %v829 = vsel %vm818, %v631, 0
      %v832 = vsel %vm818, %v634, 0
      %v835 = vsel %vm818, %v637, 0
      %v838 = vsel %vm818, %v640, 0
      %v841 = vsel %vm818, %v643, 0
      %v844 = vsel %vm818, %v646, 0
      %v847 = vsel %vm818, %v649, 0
      %v850 = vsel %vm818, %v652, 0
      %v853 = vsel %vm818, %v655, 0
      %v856 = vsel %vm818, %v658, 0
      %v859 = vsel %vm818, %v661, 0
      %v862 = vsel %vm818, %v664, 0
      %v865 = vsel %vm818, %v667, 0
      %v868 = vsel %vm818, %v670, 0
      %v871 = vsel %vm818, %v673, 0
      %873 = vmatprep.subr.bf16.mxu0 0
      %874 = vmatpush1.bf16.msra.mxu0 %v782
      %875 = vmatprep.subr.bf16.mxu0 0
      %876 = vmatpush1.bf16.msra.mxu0 %v783
      %877 = vmatprep.subr.bf16.mxu0 0
      %878 = vmatpush1.bf16.msra.mxu0 %v784
      %879 = vmatprep.subr.bf16.mxu0 0
      %880 = vmatpush1.bf16.msra.mxu0 %v785
      %881 = vmatprep.subr.bf16.mxu0 0
      %882 = vmatpush1.bf16.msra.mxu0 %v786
      %883 = vmatprep.subr.bf16.mxu0 0
      %884 = vmatpush1.bf16.msra.mxu0 %v787
      %885 = vmatprep.subr.bf16.mxu0 0
      %886 = vmatpush1.bf16.msra.mxu0 %v788
      %887 = vmatprep.subr.bf16.mxu0 0
      %888 = vmatpush1.bf16.msra.mxu0 %v789
      %889 = vmatprep.subr.bf16.mxu0 0
      %890 = vmatpush1.bf16.msra.mxu0 %v790
      %891 = vmatprep.subr.bf16.mxu0 0
      %892 = vmatpush1.bf16.msra.mxu0 %v791
      %893 = vmatprep.subr.bf16.mxu0 0
      %894 = vmatpush1.bf16.msra.mxu0 %v792
      %895 = vmatprep.subr.bf16.mxu0 0
      %896 = vmatpush1.bf16.msra.mxu0 %v793
      %897 = vmatprep.subr.bf16.mxu0 0
      %898 = vmatpush1.bf16.msra.mxu0 %v794
      %899 = vmatprep.subr.bf16.mxu0 0
      %900 = vmatpush1.bf16.msra.mxu0 %v795
      %901 = vmatprep.subr.bf16.mxu0 0
      %902 = vmatpush1.bf16.msra.mxu0 %v796
      %903 = vmatprep.subr.bf16.mxu0 0
      %904 = vmatpush1.bf16.msra.mxu0 %v797
      %905 = vmatprep.mubr.bf16.mxu0 %v621
      %906 = vmatmul.mubr.bf16.gmra.mrb[0].mxu0 %v620
      %v907 = vpop.f32.mrb[0].mxu0
      %v908 = vadd.f32 0.0, %v907
      %v909 = vpop.f32.mrb[0].mxu0
      %v910 = vpop.f32.mrb[0].mxu0
      %v911 = vadd.f32 0.0, %v910
      %v912 = vpop.f32.mrb[0].mxu0
      %913 = vmatprep.mubr.bf16.mxu0 %v624
      %914 = vmatmul.mubr.bf16.gmra.mrb[0].mxu0 %v623
      %v915 = vpop.f32.mrb[0].mxu0
      %v916 = vadd.f32 0.0, %v915
      %v917 = vpop.f32.mrb[0].mxu0
      %v918 = vpop.f32.mrb[0].mxu0
      %v919 = vadd.f32 0.0, %v918
      %v920 = vpop.f32.mrb[0].mxu0
      %921 = vmatprep.mubr.bf16.mxu0 %v627
      %922 = vmatmul.mubr.bf16.gmra.mrb[0].mxu0 %v626
      %v923 = vpop.f32.mrb[0].mxu0
      %v924 = vadd.f32 0.0, %v923
      %v925 = vpop.f32.mrb[0].mxu0
      %v926 = vpop.f32.mrb[0].mxu0
      %v927 = vadd.f32 0.0, %v926
      %v928 = vpop.f32.mrb[0].mxu0
      %929 = vmatprep.mubr.bf16.mxu0 %v630
      %930 = vmatmul.mubr.bf16.gmra.mrb[0].mxu0 %v629
      %v931 = vpop.f32.mrb[0].mxu0
      %v932 = vadd.f32 0.0, %v931
      %v933 = vpop.f32.mrb[0].mxu0
      %v934 = vpop.f32.mrb[0].mxu0
      %v935 = vadd.f32 0.0, %v934
      %v936 = vpop.f32.mrb[0].mxu0
      %937 = vmatprep.mubr.bf16.mxu0 %v633
      %938 = vmatmul.mubr.bf16.gmra.mrb[0].mxu0 %v632
      %v939 = vpop.f32.mrb[0].mxu0
      %v940 = vadd.f32 0.0, %v939
      %v941 = vpop.f32.mrb[0].mxu0
      %v942 = vpop.f32.mrb[0].mxu0
      %v943 = vadd.f32 0.0, %v942
      %v944 = vpop.f32.mrb[0].mxu0
      %945 = vmatprep.mubr.bf16.mxu0 %v636
      %946 = vmatmul.mubr.bf16.gmra.mrb[0].mxu0 %v635
      %v947 = vpop.f32.mrb[0].mxu0
      %v948 = vadd.f32 0.0, %v947
      %v949 = vpop.f32.mrb[0].mxu0
      %v950 = vpop.f32.mrb[0].mxu0
      %v951 = vadd.f32 0.0, %v950
      %v952 = vpop.f32.mrb[0].mxu0
      %953 = vmatprep.mubr.bf16.mxu0 %v639
      %954 = vmatmul.mubr.bf16.gmra.mrb[0].mxu0 %v638
      %v955 = vpop.f32.mrb[0].mxu0
      %v956 = vadd.f32 0.0, %v955
      %v957 = vpop.f32.mrb[0].mxu0
      %v958 = vpop.f32.mrb[0].mxu0
      %v959 = vadd.f32 0.0, %v958
      %v960 = vpop.f32.mrb[0].mxu0
      %961 = vmatprep.mubr.bf16.mxu0 %v642
      %962 = vmatmul.mubr.bf16.gmra.mrb[0].mxu0 %v641
      %v963 = vpop.f32.mrb[0].mxu0
      %v964 = vadd.f32 0.0, %v963
      %v965 = vpop.f32.mrb[0].mxu0
      %v966 = vpop.f32.mrb[0].mxu0
      %v967 = vadd.f32 0.0, %v966
      %v968 = vpop.f32.mrb[0].mxu0
      %969 = vmatprep.mubr.bf16.mxu0 %v645
      %970 = vmatmul.mubr.bf16.gmra.mrb[0].mxu0 %v644
      %v971 = vpop.f32.mrb[0].mxu0
      %v972 = vadd.f32 0.0, %v971
      %v973 = vpop.f32.mrb[0].mxu0
      %v974 = vpop.f32.mrb[0].mxu0
      %v975 = vadd.f32 0.0, %v974
      %v976 = vpop.f32.mrb[0].mxu0
      %977 = vmatprep.mubr.bf16.mxu0 %v648
      %978 = vmatmul.mubr.bf16.gmra.mrb[0].mxu0 %v647
      %v979 = vpop.f32.mrb[0].mxu0
      %v980 = vadd.f32 0.0, %v979
      %v981 = vpop.f32.mrb[0].mxu0
      %v982 = vpop.f32.mrb[0].mxu0
      %v983 = vadd.f32 0.0, %v982
      %v984 = vpop.f32.mrb[0].mxu0
      %985 = vmatprep.mubr.bf16.mxu0 %v651
      %986 = vmatmul.mubr.bf16.gmra.mrb[0].mxu0 %v650
      %v987 = vpop.f32.mrb[0].mxu0
      %v988 = vadd.f32 0.0, %v987
      %v989 = vpop.f32.mrb[0].mxu0
      %v990 = vpop.f32.mrb[0].mxu0
      %v991 = vadd.f32 0.0, %v990
      %v992 = vpop.f32.mrb[0].mxu0
      %993 = vmatprep.mubr.bf16.mxu0 %v654
      %994 = vmatmul.mubr.bf16.gmra.mrb[0].mxu0 %v653
      %v995 = vpop.f32.mrb[0].mxu0
      %v996 = vadd.f32 0.0, %v995
      %v997 = vpop.f32.mrb[0].mxu0
      %v998 = vpop.f32.mrb[0].mxu0
      %v999 = vadd.f32 0.0, %v998
      %v1000 = vpop.f32.mrb[0].mxu0
      %1001 = vmatprep.mubr.bf16.mxu0 %v657
      %1002 = vmatmul.mubr.bf16.gmra.mrb[0].mxu0 %v656
      %v1003 = vpop.f32.mrb[0].mxu0
      %v1004 = vadd.f32 0.0, %v1003
      %v1005 = vpop.f32.mrb[0].mxu0
      %v1006 = vpop.f32.mrb[0].mxu0
      %v1007 = vadd.f32 0.0, %v1006
      %v1008 = vpop.f32.mrb[0].mxu0
      %1009 = vmatprep.mubr.bf16.mxu0 %v660
      %1010 = vmatmul.mubr.bf16.gmra.mrb[0].mxu0 %v659
      %v1011 = vpop.f32.mrb[0].mxu0
      %v1012 = vadd.f32 0.0, %v1011
      %v1013 = vpop.f32.mrb[0].mxu0
      %v1014 = vpop.f32.mrb[0].mxu0
      %v1015 = vadd.f32 0.0, %v1014
      %v1016 = vpop.f32.mrb[0].mxu0
      %1017 = vmatprep.mubr.bf16.mxu0 %v663
      %1018 = vmatmul.mubr.bf16.gmra.mrb[0].mxu0 %v662
      %v1019 = vpop.f32.mrb[0].mxu0
      %v1020 = vadd.f32 0.0, %v1019
      %v1021 = vpop.f32.mrb[0].mxu0
      %v1022 = vpop.f32.mrb[0].mxu0
      %v1023 = vadd.f32 0.0, %v1022
      %v1024 = vpop.f32.mrb[0].mxu0
      %1025 = vmatprep.mubr.bf16.mxu0 %v666
      %1026 = vmatmul.mubr.bf16.gmra.mrb[0].mxu0 %v665
      %v1027 = vpop.f32.mrb[0].mxu0
      %v1028 = vadd.f32 0.0, %v1027
      %v1029 = vpop.f32.mrb[0].mxu0
      %v1030 = vpop.f32.mrb[0].mxu0
      %v1031 = vadd.f32 0.0, %v1030
      %v1032 = vpop.f32.mrb[0].mxu0
      %1033 = vmatprep.mubr.bf16.mxu0 %v669
      %1034 = vmatmul.mubr.bf16.gmra.mrb[0].mxu0 %v668
      %v1035 = vpop.f32.mrb[0].mxu0
      %v1036 = vadd.f32 0.0, %v1035
      %v1037 = vpop.f32.mrb[0].mxu0
      %v1038 = vpop.f32.mrb[0].mxu0
      %v1039 = vadd.f32 0.0, %v1038
      %v1040 = vpop.f32.mrb[0].mxu0
      %1041 = vmatprep.mubr.bf16.mxu0 %v672
      %1042 = vmatmul.mubr.bf16.gmra.mrb[0].mxu0 %v671
      %v1043 = vpop.f32.mrb[0].mxu0
      %v1044 = vadd.f32 0.0, %v1043
      %v1045 = vpop.f32.mrb[0].mxu0
      %v1046 = vpop.f32.mrb[0].mxu0
      %v1047 = vadd.f32 0.0, %v1046
      %v1048 = vpop.f32.mrb[0].mxu0
      %1049 = vdwg.mxu0
      %1050 = vmatprep.subr.bf16.mxu0 0
      %1051 = vmatpush1.bf16.msra.mxu0 %v798
      %1052 = vmatprep.subr.bf16.mxu0 0
      %1053 = vmatpush1.bf16.msra.mxu0 %v799
      %1054 = vmatprep.subr.bf16.mxu0 0
      %1055 = vmatpush1.bf16.msra.mxu0 0
      %1056 = vmatprep.subr.bf16.mxu0 0
      %1057 = vmatpush1.bf16.msra.mxu0 0
      %1058 = vmatprep.subr.bf16.mxu0 0
      %1059 = vmatpush1.bf16.msra.mxu0 0
      %1060 = vmatprep.subr.bf16.mxu0 0
      %1061 = vmatpush1.bf16.msra.mxu0 0
      %1062 = vmatprep.subr.bf16.mxu0 0
      %1063 = vmatpush1.bf16.msra.mxu0 0
      %1064 = vmatprep.subr.bf16.mxu0 0
      %1065 = vmatpush1.bf16.msra.mxu0 0
      %1066 = vmatprep.subr.bf16.mxu0 0
      %1067 = vmatpush1.bf16.msra.mxu0 0
      %1068 = vmatprep.subr.bf16.mxu0 0
      %1069 = vmatpush1.bf16.msra.mxu0 0
      %1070 = vmatprep.subr.bf16.mxu0 0
      %1071 = vmatpush1.bf16.msra.mxu0 0
      %1072 = vmatprep.subr.bf16.mxu0 0
      %1073 = vmatpush1.bf16.msra.mxu0 0
      %1074 = vmatprep.subr.bf16.mxu0 0
      %1075 = vmatpush1.bf16.msra.mxu0 0
      %1076 = vmatprep.subr.bf16.mxu0 0
      %1077 = vmatpush1.bf16.msra.mxu0 0
      %1078 = vmatprep.subr.bf16.mxu0 0
      %1079 = vmatpush1.bf16.msra.mxu0 0
      %1080 = vmatprep.subr.bf16.mxu0 0
      %1081 = vmatpush1.bf16.msra.mxu0 0
      %1082 = vmatprep.mubr.bf16.mxu0 0
      %1083 = vmatmul.mubr.bf16.gmra.mrb[0].mxu0 %v820
      %v1084 = vpop.f32.mrb[0].mxu0
      %v1085 = vadd.f32 %v908, %v1084
      %v1086 = vpop.f32.mrb[0].mxu0
      %v1087 = vpop.f32.mrb[0].mxu0
      %v1088 = vadd.f32 %v911, %v1087
      %v1089 = vpop.f32.mrb[0].mxu0
      %1090 = vmatprep.mubr.bf16.mxu0 0
      %1091 = vmatmul.mubr.bf16.gmra.mrb[0].mxu0 %v823
      %v1092 = vpop.f32.mrb[0].mxu0
      %v1093 = vadd.f32 %v916, %v1092
      %v1094 = vpop.f32.mrb[0].mxu0
      %v1095 = vpop.f32.mrb[0].mxu0
      %v1096 = vadd.f32 %v919, %v1095
      %v1097 = vpop.f32.mrb[0].mxu0
      %1098 = vmatprep.mubr.bf16.mxu0 0
      %1099 = vmatmul.mubr.bf16.gmra.mrb[0].mxu0 %v826
      %v1100 = vpop.f32.mrb[0].mxu0
      %v1101 = vadd.f32 %v924, %v1100
      %v1102 = vpop.f32.mrb[0].mxu0
      %v1103 = vpop.f32.mrb[0].mxu0
      %v1104 = vadd.f32 %v927, %v1103
      %v1105 = vpop.f32.mrb[0].mxu0
      %1106 = vmatprep.mubr.bf16.mxu0 0
      %1107 = vmatmul.mubr.bf16.gmra.mrb[0].mxu0 %v829
      %v1108 = vpop.f32.mrb[0].mxu0
      %v1109 = vadd.f32 %v932, %v1108
      %v1110 = vpop.f32.mrb[0].mxu0
      %v1111 = vpop.f32.mrb[0].mxu0
      %v1112 = vadd.f32 %v935, %v1111
      %v1113 = vpop.f32.mrb[0].mxu0
      %1114 = vmatprep.mubr.bf16.mxu0 0
      %1115 = vmatmul.mubr.bf16.gmra.mrb[0].mxu0 %v832
      %v1116 = vpop.f32.mrb[0].mxu0
      %v1117 = vadd.f32 %v940, %v1116
      %v1118 = vpop.f32.mrb[0].mxu0
      %v1119 = vpop.f32.mrb[0].mxu0
      %v1120 = vadd.f32 %v943, %v1119
      %v1121 = vpop.f32.mrb[0].mxu0
      %1122 = vmatprep.mubr.bf16.mxu0 0
      %1123 = vmatmul.mubr.bf16.gmra.mrb[0].mxu0 %v835
      %v1124 = vpop.f32.mrb[0].mxu0
      %v1125 = vadd.f32 %v948, %v1124
      %v1126 = vpop.f32.mrb[0].mxu0
      %v1127 = vpop.f32.mrb[0].mxu0
      %v1128 = vadd.f32 %v951, %v1127
      %v1129 = vpop.f32.mrb[0].mxu0
      %1130 = vmatprep.mubr.bf16.mxu0 0
      %1131 = vmatmul.mubr.bf16.gmra.mrb[0].mxu0 %v838
      %v1132 = vpop.f32.mrb[0].mxu0
      %v1133 = vadd.f32 %v956, %v1132
      %v1134 = vpop.f32.mrb[0].mxu0
      %v1135 = vpop.f32.mrb[0].mxu0
      %v1136 = vadd.f32 %v959, %v1135
      %v1137 = vpop.f32.mrb[0].mxu0
      %1138 = vmatprep.mubr.bf16.mxu0 0
      %1139 = vmatmul.mubr.bf16.gmra.mrb[0].mxu0 %v841
      %v1140 = vpop.f32.mrb[0].mxu0
      %v1141 = vadd.f32 %v964, %v1140
      %v1142 = vpop.f32.mrb[0].mxu0
      %v1143 = vpop.f32.mrb[0].mxu0
      %v1144 = vadd.f32 %v967, %v1143
      %v1145 = vpop.f32.mrb[0].mxu0
      %1146 = vmatprep.mubr.bf16.mxu0 0
      %1147 = vmatmul.mubr.bf16.gmra.mrb[0].mxu0 %v844
      %v1148 = vpop.f32.mrb[0].mxu0
      %v1149 = vadd.f32 %v972, %v1148
      %v1150 = vpop.f32.mrb[0].mxu0
      %v1151 = vpop.f32.mrb[0].mxu0
      %v1152 = vadd.f32 %v975, %v1151
      %v1153 = vpop.f32.mrb[0].mxu0
      %1154 = vmatprep.mubr.bf16.mxu0 0
      %1155 = vmatmul.mubr.bf16.gmra.mrb[0].mxu0 %v847
      %v1156 = vpop.f32.mrb[0].mxu0
      %v1157 = vadd.f32 %v980, %v1156
      %v1158 = vpop.f32.mrb[0].mxu0
      %v1159 = vpop.f32.mrb[0].mxu0
      %v1160 = vadd.f32 %v983, %v1159
      %v1161 = vpop.f32.mrb[0].mxu0
      %1162 = vmatprep.mubr.bf16.mxu0 0
      %1163 = vmatmul.mubr.bf16.gmra.mrb[0].mxu0 %v850
      %v1164 = vpop.f32.mrb[0].mxu0
      %v1165 = vadd.f32 %v988, %v1164
      %v1166 = vpop.f32.mrb[0].mxu0
      %v1167 = vpop.f32.mrb[0].mxu0
      %v1168 = vadd.f32 %v991, %v1167
      %v1169 = vpop.f32.mrb[0].mxu0
      %1170 = vmatprep.mubr.bf16.mxu0 0
      %1171 = vmatmul.mubr.bf16.gmra.mrb[0].mxu0 %v853
      %v1172 = vpop.f32.mrb[0].mxu0
      %v1173 = vadd.f32 %v996, %v1172
      %v1174 = vpop.f32.mrb[0].mxu0
      %v1175 = vpop.f32.mrb[0].mxu0
      %v1176 = vadd.f32 %v999, %v1175
      %v1177 = vpop.f32.mrb[0].mxu0
      %1178 = vmatprep.mubr.bf16.mxu0 0
      %1179 = vmatmul.mubr.bf16.gmra.mrb[0].mxu0 %v856
      %v1180 = vpop.f32.mrb[0].mxu0
      %v1181 = vadd.f32 %v1004, %v1180
      %v1182 = vpop.f32.mrb[0].mxu0
      %v1183 = vpop.f32.mrb[0].mxu0
      %v1184 = vadd.f32 %v1007, %v1183
      %v1185 = vpop.f32.mrb[0].mxu0
      %1186 = vmatprep.mubr.bf16.mxu0 0
      %1187 = vmatmul.mubr.bf16.gmra.mrb[0].mxu0 %v859
      %v1188 = vpop.f32.mrb[0].mxu0
      %v1189 = vadd.f32 %v1012, %v1188
      %v1190 = vpop.f32.mrb[0].mxu0
      %v1191 = vpop.f32.mrb[0].mxu0
      %v1192 = vadd.f32 %v1015, %v1191
      %v1193 = vpop.f32.mrb[0].mxu0
      %1194 = vmatprep.mubr.bf16.mxu0 0
      %1195 = vmatmul.mubr.bf16.gmra.mrb[0].mxu0 %v862
      %v1196 = vpop.f32.mrb[0].mxu0
      %v1197 = vadd.f32 %v1020, %v1196
      %v1198 = vpop.f32.mrb[0].mxu0
      %v1199 = vpop.f32.mrb[0].mxu0
      %v1200 = vadd.f32 %v1023, %v1199
      %v1201 = vpop.f32.mrb[0].mxu0
      %1202 = vmatprep.mubr.bf16.mxu0 0
      %1203 = vmatmul.mubr.bf16.gmra.mrb[0].mxu0 %v865
      %v1204 = vpop.f32.mrb[0].mxu0
      %v1205 = vadd.f32 %v1028, %v1204
      %v1206 = vpop.f32.mrb[0].mxu0
      %v1207 = vpop.f32.mrb[0].mxu0
      %v1208 = vadd.f32 %v1031, %v1207
      %v1209 = vpop.f32.mrb[0].mxu0
      %1210 = vmatprep.mubr.bf16.mxu0 0
      %1211 = vmatmul.mubr.bf16.gmra.mrb[0].mxu0 %v868
      %v1212 = vpop.f32.mrb[0].mxu0
      %v1213 = vadd.f32 %v1036, %v1212
      %v1214 = vpop.f32.mrb[0].mxu0
      %v1215 = vpop.f32.mrb[0].mxu0
      %v1216 = vadd.f32 %v1039, %v1215
      %v1217 = vpop.f32.mrb[0].mxu0
      %1218 = vmatprep.mubr.bf16.mxu0 0
      %1219 = vmatmul.mubr.bf16.gmra.mrb[0].mxu0 %v871
      %v1220 = vpop.f32.mrb[0].mxu0
      %v1221 = vadd.f32 %v1044, %v1220
      %v1222 = vpop.f32.mrb[0].mxu0
      %v1223 = vpop.f32.mrb[0].mxu0
      %v1224 = vadd.f32 %v1047, %v1223
      %v1225 = vpop.f32.mrb[0].mxu0
      %1226 = vdwg.mxu0
      %v1227 = vadd.f32 %v296, %v1085
      %v1228 = vadd.f32 %v297, %v1088
      %v1229 = vadd.f32 %v298, %v1093
      %v1230 = vadd.f32 %v299, %v1096
      %v1231 = vadd.f32 %v300, %v1101
      %v1232 = vadd.f32 %v301, %v1104
      %v1233 = vadd.f32 %v302, %v1109
      %v1234 = vadd.f32 %v303, %v1112
      %v1235 = vadd.f32 %v304, %v1117
      %v1236 = vadd.f32 %v305, %v1120
      %v1237 = vadd.f32 %v306, %v1125
      %v1238 = vadd.f32 %v307, %v1128
      %v1239 = vadd.f32 %v308, %v1133
      %v1240 = vadd.f32 %v309, %v1136
      %v1241 = vadd.f32 %v310, %v1141
      %v1242 = vadd.f32 %v311, %v1144
      %v1243 = vadd.f32 %v312, %v1149
      %v1244 = vadd.f32 %v313, %v1152
      %v1245 = vadd.f32 %v314, %v1157
      %v1246 = vadd.f32 %v315, %v1160
      %v1247 = vadd.f32 %v316, %v1165
      %v1248 = vadd.f32 %v317, %v1168
      %v1249 = vadd.f32 %v318, %v1173
      %v1250 = vadd.f32 %v319, %v1176
      %v1251 = vadd.f32 %v320, %v1181
      %v1252 = vadd.f32 %v321, %v1184
      %v1253 = vadd.f32 %v322, %v1189
      %v1254 = vadd.f32 %v323, %v1192
      %v1255 = vadd.f32 %v324, %v1197
      %v1256 = vadd.f32 %v325, %v1200
      %v1257 = vadd.f32 %v326, %v1205
      %v1258 = vadd.f32 %v327, %v1208
      %v1259 = vadd.f32 %v328, %v1213
      %v1260 = vadd.f32 %v329, %v1216
      %v1261 = vadd.f32 %v330, %v1221
      %v1262 = vadd.f32 %v331, %v1224
      %1263 = vst [vmem:[#allocation2] sm:$0xff] %v1227
      %1264 = vst [vmem:[#allocation2 + $0x8] sm:$0xff] %v1228
      %1265 = vst [vmem:[#allocation2 + $0x10] sm:$0xff] %v1229
      %1266 = vst [vmem:[#allocation2 + $0x18] sm:$0xff] %v1230
      %1267 = vst [vmem:[#allocation2 + $0x20] sm:$0xff] %v1231
      %1268 = vst [vmem:[#allocation2 + $0x28] sm:$0xff] %v1232
      %1269 = vst [vmem:[#allocation2 + $0x30] sm:$0xff] %v1233
      %1270 = vst [vmem:[#allocation2 + $0x38] sm:$0xff] %v1234
      %1271 = vst [vmem:[#allocation2 + $0x40] sm:$0xff] %v1235
      %1272 = vst [vmem:[#allocation2 + $0x48] sm:$0xff] %v1236
      %1273 = vst [vmem:[#allocation2 + $0x50] sm:$0xff] %v1237
      %1274 = vst [vmem:[#allocation2 + $0x58] sm:$0xff] %v1238
      %1275 = vst [vmem:[#allocation2 + $0x60] sm:$0xff] %v1239
      %1276 = vst [vmem:[#allocation2 + $0x68] sm:$0xff] %v1240
      %1277 = vst [vmem:[#allocation2 + $0x70] sm:$0xff] %v1241
      %1278 = vst [vmem:[#allocation2 + $0x78] sm:$0xff] %v1242
      %1279 = vst [vmem:[#allocation2 + $0x80] sm:$0xff] %v1243
      %1280 = vst [vmem:[#allocation2 + $0x88] sm:$0xff] %v1244
      %1281 = vst [vmem:[#allocation2 + $0x90] sm:$0xff] %v1245
      %1282 = vst [vmem:[#allocation2 + $0x98] sm:$0xff] %v1246
      %1283 = vst [vmem:[#allocation2 + $0xa0] sm:$0xff] %v1247
      %1284 = vst [vmem:[#allocation2 + $0xa8] sm:$0xff] %v1248
      %1285 = vst [vmem:[#allocation2 + $0xb0] sm:$0xff] %v1249
      %1286 = vst [vmem:[#allocation2 + $0xb8] sm:$0xff] %v1250
      %1287 = vst [vmem:[#allocation2 + $0xc0] sm:$0xff] %v1251
      %1288 = vst [vmem:[#allocation2 + $0xc8] sm:$0xff] %v1252
      %1289 = vst [vmem:[#allocation2 + $0xd0] sm:$0xff] %v1253
      %1290 = vst [vmem:[#allocation2 + $0xd8] sm:$0xff] %v1254
      %1291 = vst [vmem:[#allocation2 + $0xe0] sm:$0xff] %v1255
      %1292 = vst [vmem:[#allocation2 + $0xe8] sm:$0xff] %v1256
      %1293 = vst [vmem:[#allocation2 + $0xf0] sm:$0xff] %v1257
      %1294 = vst [vmem:[#allocation2 + $0xf8] sm:$0xff] %v1258
      %1295 = vst [vmem:[#allocation2 + $0x100] sm:$0xff] %v1259
      %1296 = vst [vmem:[#allocation2 + $0x108] sm:$0xff] %v1260
      %1297 = vst [vmem:[#allocation2 + $0x110] sm:$0xff] %v1261
      %1298 = vst [vmem:[#allocation2 + $0x118] sm:$0xff] %v1262
      // Predicated region
      $region41: #{mnist_encoder_forward.5} parent=35 // pred_check
        %p1299 = pneg %p256
      $region42: #{mnist_encoder_forward.5} parent=35 // pred_check_branch
        %1301 = sbr.rel (%p1299) target = $region44
      $region43: #{mnist_encoder_forward.5} parent=35 // pred_region
        %v1302 = vld [vmem:[#allocation2] sm:$0xff]
        %v1303 = vld [vmem:[#allocation2 + $0x8] sm:$0xff]
        %v1304 = vld [vmem:[#allocation2 + $0x10] sm:$0xff]
        %v1305 = vld [vmem:[#allocation2 + $0x18] sm:$0xff]
        %v1306 = vld [vmem:[#allocation2 + $0x20] sm:$0xff]
        %v1307 = vld [vmem:[#allocation2 + $0x28] sm:$0xff]
        %v1308 = vld [vmem:[#allocation2 + $0x30] sm:$0xff]
        %v1309 = vld [vmem:[#allocation2 + $0x38] sm:$0xff]
        %v1310 = vld [vmem:[#allocation2 + $0x40] sm:$0xff]
        %v1311 = vld [vmem:[#allocation2 + $0x48] sm:$0xff]
        %v1312 = vld [vmem:[#allocation2 + $0x50] sm:$0xff]
        %v1313 = vld [vmem:[#allocation2 + $0x58] sm:$0xff]
        %v1314 = vld [vmem:[#allocation2 + $0x60] sm:$0xff]
        %v1315 = vld [vmem:[#allocation2 + $0x68] sm:$0xff]
        %v1316 = vld [vmem:[#allocation2 + $0x70] sm:$0xff]
        %v1317 = vld [vmem:[#allocation2 + $0x78] sm:$0xff]
        %v1318 = vld [vmem:[#allocation2 + $0x80] sm:$0xff]
        %v1319 = vld [vmem:[#allocation2 + $0x88] sm:$0xff]
        %v1320 = vld [vmem:[#allocation2 + $0x90] sm:$0xff]
        %v1321 = vld [vmem:[#allocation2 + $0x98] sm:$0xff]
        %v1322 = vld [vmem:[#allocation2 + $0xa0] sm:$0xff]
        %v1323 = vld [vmem:[#allocation2 + $0xa8] sm:$0xff]
        %v1324 = vld [vmem:[#allocation2 + $0xb0] sm:$0xff]
        %v1325 = vld [vmem:[#allocation2 + $0xb8] sm:$0xff]
        %v1326 = vld [vmem:[#allocation2 + $0xc0] sm:$0xff]
        %v1327 = vld [vmem:[#allocation2 + $0xc8] sm:$0xff]
        %v1328 = vld [vmem:[#allocation2 + $0xd0] sm:$0xff]
        %v1329 = vld [vmem:[#allocation2 + $0xd8] sm:$0xff]
        %v1330 = vld [vmem:[#allocation2 + $0xe0] sm:$0xff]
        %v1331 = vld [vmem:[#allocation2 + $0xe8] sm:$0xff]
        %v1332 = vld [vmem:[#allocation2 + $0xf0] sm:$0xff]
        %v1333 = vld [vmem:[#allocation2 + $0xf8] sm:$0xff]
        %v1334 = vld [vmem:[#allocation2 + $0x100] sm:$0xff]
        %v1335 = vld [vmem:[#allocation2 + $0x108] sm:$0xff]
        %v1336 = vld [vmem:[#allocation2 + $0x110] sm:$0xff]
        %v1337 = vld [vmem:[#allocation2 + $0x118] sm:$0xff]
        %v1338 = vld [vmem:[%s2] sm:$0x1]
        %v1340 = vlaneseq
        %v1341 = vshrl.u32 %v1340, 7
        %v1342 = vsub.s32 0, %v1341
        %v1343 = vrot.slane %v1338, %v1342
        %v1345 = vadd.f32 %v1302, %v1343
        %v1346 = vadd.f32 %v1303, %v1343
        %v1347 = vadd.f32 %v1304, %v1343
        %v1348 = vadd.f32 %v1305, %v1343
        %v1349 = vadd.f32 %v1306, %v1343
        %v1350 = vadd.f32 %v1307, %v1343
        %v1351 = vadd.f32 %v1308, %v1343
        %v1352 = vadd.f32 %v1309, %v1343
        %v1353 = vadd.f32 %v1310, %v1343
        %v1354 = vadd.f32 %v1311, %v1343
        %v1355 = vadd.f32 %v1312, %v1343
        %v1356 = vadd.f32 %v1313, %v1343
        %v1357 = vadd.f32 %v1314, %v1343
        %v1358 = vadd.f32 %v1315, %v1343
        %v1359 = vadd.f32 %v1316, %v1343
        %v1360 = vadd.f32 %v1317, %v1343
        %v1361 = vadd.f32 %v1318, %v1343
        %v1362 = vadd.f32 %v1319, %v1343
        %v1363 = vadd.f32 %v1320, %v1343
        %v1364 = vadd.f32 %v1321, %v1343
        %v1365 = vadd.f32 %v1322, %v1343
        %v1366 = vadd.f32 %v1323, %v1343
        %v1367 = vadd.f32 %v1324, %v1343
        %v1368 = vadd.f32 %v1325, %v1343
        %v1369 = vadd.f32 %v1326, %v1343
        %v1370 = vadd.f32 %v1327, %v1343
        %v1371 = vadd.f32 %v1328, %v1343
        %v1372 = vadd.f32 %v1329, %v1343
        %v1373 = vadd.f32 %v1330, %v1343
        %v1374 = vadd.f32 %v1331, %v1343
        %v1375 = vadd.f32 %v1332, %v1343
        %v1376 = vadd.f32 %v1333, %v1343
        %v1377 = vadd.f32 %v1334, %v1343
        %v1378 = vadd.f32 %v1335, %v1343
        %v1379 = vadd.f32 %v1336, %v1343
        %v1380 = vadd.f32 %v1337, %v1343
        %s1381 = sld [smem:[#allocation3]]
        %vm1382 = vcmp.ge.f32.partialorder %v1345, 0.0
        %vm1383 = vcmp.ge.f32.partialorder %v1346, 0.0
        %vm1384 = vcmp.ge.f32.partialorder %v1347, 0.0
        %vm1385 = vcmp.ge.f32.partialorder %v1348, 0.0
        %vm1386 = vcmp.ge.f32.partialorder %v1349, 0.0
        %vm1387 = vcmp.ge.f32.partialorder %v1350, 0.0
        %vm1388 = vcmp.ge.f32.partialorder %v1351, 0.0
        %vm1389 = vcmp.ge.f32.partialorder %v1352, 0.0
        %vm1390 = vcmp.ge.f32.partialorder %v1353, 0.0
        %vm1391 = vcmp.ge.f32.partialorder %v1354, 0.0
        %vm1392 = vcmp.ge.f32.partialorder %v1355, 0.0
        %vm1393 = vcmp.ge.f32.partialorder %v1356, 0.0
        %vm1394 = vcmp.ge.f32.partialorder %v1357, 0.0
        %vm1395 = vcmp.ge.f32.partialorder %v1358, 0.0
        %vm1396 = vcmp.ge.f32.partialorder %v1359, 0.0
        %vm1397 = vcmp.ge.f32.partialorder %v1360, 0.0
        %vm1398 = vcmp.ge.f32.partialorder %v1361, 0.0
        %vm1399 = vcmp.ge.f32.partialorder %v1362, 0.0
        %vm1400 = vcmp.ge.f32.partialorder %v1363, 0.0
        %vm1401 = vcmp.ge.f32.partialorder %v1364, 0.0
        %vm1402 = vcmp.ge.f32.partialorder %v1365, 0.0
        %vm1403 = vcmp.ge.f32.partialorder %v1366, 0.0
        %vm1404 = vcmp.ge.f32.partialorder %v1367, 0.0
        %vm1405 = vcmp.ge.f32.partialorder %v1368, 0.0
        %vm1406 = vcmp.ge.f32.partialorder %v1369, 0.0
        %vm1407 = vcmp.ge.f32.partialorder %v1370, 0.0
        %vm1408 = vcmp.ge.f32.partialorder %v1371, 0.0
        %vm1409 = vcmp.ge.f32.partialorder %v1372, 0.0
        %vm1410 = vcmp.ge.f32.partialorder %v1373, 0.0
        %vm1411 = vcmp.ge.f32.partialorder %v1374, 0.0
        %vm1412 = vcmp.ge.f32.partialorder %v1375, 0.0
        %vm1413 = vcmp.ge.f32.partialorder %v1376, 0.0
        %vm1414 = vcmp.ge.f32.partialorder %v1377, 0.0
        %vm1415 = vcmp.ge.f32.partialorder %v1378, 0.0
        %vm1416 = vcmp.ge.f32.partialorder %v1379, 0.0
        %vm1417 = vcmp.ge.f32.partialorder %v1380, 0.0
        %v1418 = vstv %s1381
        %v1419 = vmul.f32 %v1418, %v1345
        %v1420 = vmul.f32 %v1418, %v1346
        %v1421 = vmul.f32 %v1418, %v1347
        %v1422 = vmul.f32 %v1418, %v1348
        %v1423 = vmul.f32 %v1418, %v1349
        %v1424 = vmul.f32 %v1418, %v1350
        %v1425 = vmul.f32 %v1418, %v1351
        %v1426 = vmul.f32 %v1418, %v1352
        %v1427 = vmul.f32 %v1418, %v1353
        %v1428 = vmul.f32 %v1418, %v1354
        %v1429 = vmul.f32 %v1418, %v1355
        %v1430 = vmul.f32 %v1418, %v1356
        %v1431 = vmul.f32 %v1418, %v1357
        %v1432 = vmul.f32 %v1418, %v1358
        %v1433 = vmul.f32 %v1418, %v1359
        %v1434 = vmul.f32 %v1418, %v1360
        %v1435 = vmul.f32 %v1418, %v1361
        %v1436 = vmul.f32 %v1418, %v1362
        %v1437 = vmul.f32 %v1418, %v1363
        %v1438 = vmul.f32 %v1418, %v1364
        %v1439 = vmul.f32 %v1418, %v1365
        %v1440 = vmul.f32 %v1418, %v1366
        %v1441 = vmul.f32 %v1418, %v1367
        %v1442 = vmul.f32 %v1418, %v1368
        %v1443 = vmul.f32 %v1418, %v1369
        %v1444 = vmul.f32 %v1418, %v1370
        %v1445 = vmul.f32 %v1418, %v1371
        %v1446 = vmul.f32 %v1418, %v1372
        %v1447 = vmul.f32 %v1418, %v1373
        %v1448 = vmul.f32 %v1418, %v1374
        %v1449 = vmul.f32 %v1418, %v1375
        %v1450 = vmul.f32 %v1418, %v1376
        %v1451 = vmul.f32 %v1418, %v1377
        %v1452 = vmul.f32 %v1418, %v1378
        %v1453 = vmul.f32 %v1418, %v1379
        %v1454 = vmul.f32 %v1418, %v1380
        %v1455 = vsel %vm1382, %v1345, %v1419
        %v1456 = vsel %vm1383, %v1346, %v1420
        %v1457 = vsel %vm1384, %v1347, %v1421
        %v1458 = vsel %vm1385, %v1348, %v1422
        %v1459 = vsel %vm1386, %v1349, %v1423
        %v1460 = vsel %vm1387, %v1350, %v1424
        %v1461 = vsel %vm1388, %v1351, %v1425
        %v1462 = vsel %vm1389, %v1352, %v1426
        %v1463 = vsel %vm1390, %v1353, %v1427
        %v1464 = vsel %vm1391, %v1354, %v1428
        %v1465 = vsel %vm1392, %v1355, %v1429
        %v1466 = vsel %vm1393, %v1356, %v1430
        %v1467 = vsel %vm1394, %v1357, %v1431
        %v1468 = vsel %vm1395, %v1358, %v1432
        %v1469 = vsel %vm1396, %v1359, %v1433
        %v1470 = vsel %vm1397, %v1360, %v1434
        %v1471 = vsel %vm1398, %v1361, %v1435
        %v1472 = vsel %vm1399, %v1362, %v1436
        %v1473 = vsel %vm1400, %v1363, %v1437
        %v1474 = vsel %vm1401, %v1364, %v1438
        %v1475 = vsel %vm1402, %v1365, %v1439
        %v1476 = vsel %vm1403, %v1366, %v1440
        %v1477 = vsel %vm1404, %v1367, %v1441
        %v1478 = vsel %vm1405, %v1368, %v1442
        %v1479 = vsel %vm1406, %v1369, %v1443
        %v1480 = vsel %vm1407, %v1370, %v1444
        %v1481 = vsel %vm1408, %v1371, %v1445
        %v1482 = vsel %vm1409, %v1372, %v1446
        %v1483 = vsel %vm1410, %v1373, %v1447
        %v1484 = vsel %vm1411, %v1374, %v1448
        %v1485 = vsel %vm1412, %v1375, %v1449
        %v1486 = vsel %vm1413, %v1376, %v1450
        %v1487 = vsel %vm1414, %v1377, %v1451
        %v1488 = vsel %vm1415, %v1378, %v1452
        %v1489 = vsel %vm1416, %v1379, %v1453
        %v1490 = vsel %vm1417, %v1380, %v1454
        %1491 = vst [vmem:[%s253] sm:$0xff] %v1455
        %1492 = vst [vmem:[%s253 + $0x8] sm:$0xff] %v1456
        %1493 = vst [vmem:[%s253 + $0x10] sm:$0xff] %v1457
        %1494 = vst [vmem:[%s253 + $0x18] sm:$0xff] %v1458
        %1495 = vst [vmem:[%s253 + $0x20] sm:$0xff] %v1459
        %1496 = vst [vmem:[%s253 + $0x28] sm:$0xff] %v1460
        %1497 = vst [vmem:[%s253 + $0x30] sm:$0xff] %v1461
        %1498 = vst [vmem:[%s253 + $0x38] sm:$0xff] %v1462
        %1499 = vst [vmem:[%s253 + $0x40] sm:$0xff] %v1463
        %1500 = vst [vmem:[%s253 + $0x48] sm:$0xff] %v1464
        %1501 = vst [vmem:[%s253 + $0x50] sm:$0xff] %v1465
        %1502 = vst [vmem:[%s253 + $0x58] sm:$0xff] %v1466
        %1503 = vst [vmem:[%s253 + $0x60] sm:$0xff] %v1467
        %1504 = vst [vmem:[%s253 + $0x68] sm:$0xff] %v1468
        %1505 = vst [vmem:[%s253 + $0x70] sm:$0xff] %v1469
        %1506 = vst [vmem:[%s253 + $0x78] sm:$0xff] %v1470
        %1507 = vst [vmem:[%s253 + $0x80] sm:$0xff] %v1471
        %1508 = vst [vmem:[%s253 + $0x88] sm:$0xff] %v1472
        %1509 = vst [vmem:[%s253 + $0x90] sm:$0xff] %v1473
        %1510 = vst [vmem:[%s253 + $0x98] sm:$0xff] %v1474
        %1511 = vst [vmem:[%s253 + $0xa0] sm:$0xff] %v1475
        %1512 = vst [vmem:[%s253 + $0xa8] sm:$0xff] %v1476
        %1513 = vst [vmem:[%s253 + $0xb0] sm:$0xff] %v1477
        %1514 = vst [vmem:[%s253 + $0xb8] sm:$0xff] %v1478
        %1515 = vst [vmem:[%s253 + $0xc0] sm:$0xff] %v1479
        %1516 = vst [vmem:[%s253 + $0xc8] sm:$0xff] %v1480
        %1517 = vst [vmem:[%s253 + $0xd0] sm:$0xff] %v1481
        %1518 = vst [vmem:[%s253 + $0xd8] sm:$0xff] %v1482
        %1519 = vst [vmem:[%s253 + $0xe0] sm:$0xff] %v1483
        %1520 = vst [vmem:[%s253 + $0xe8] sm:$0xff] %v1484
        %1521 = vst [vmem:[%s253 + $0xf0] sm:$0xff] %v1485
        %1522 = vst [vmem:[%s253 + $0xf8] sm:$0xff] %v1486
        %1523 = vst [vmem:[%s253 + $0x100] sm:$0xff] %v1487
        %1524 = vst [vmem:[%s253 + $0x108] sm:$0xff] %v1488
        %1525 = vst [vmem:[%s253 + $0x110] sm:$0xff] %v1489
        %1526 = vst [vmem:[%s253 + $0x118] sm:$0xff] %v1490
      $region44: #{mnist_encoder_forward.5} parent=35 // pred_fallthru
        _
      %s1527 = smul.u32 36, %s20
      %p1528 = scmp.lt.s32.totalorder %s1527, 71
      %s1529 = scalar_select %p1528, %s1527, 71
      %s1530 = smul.addr %s1529, 8
      %s1531 = scalar_lea.vmem %s4, %s1530
      // Predicated region
      $region45: #{mnist_encoder_forward.5} parent=35 // pred_check
        %p1532 = pneg %p142
      $region46: #{mnist_encoder_forward.5} parent=35 // pred_check_branch
        %1534 = sbr.rel (%p1532) target = $region48
      $region47: #{mnist_encoder_forward.5} parent=35 // pred_region
        %s1535 = smul.u32 36, %s20
      $region48: #{mnist_encoder_forward.5} parent=35 // pred_fallthru
        _
    $region36: #{mnist_encoder_forward.5} parent=5 // pred_fallthru
      _
    %p1536 = scmp.le.s32.totalorder 2, %s11
    // Predicated region
    $region49: #{mnist_encoder_forward.5} parent=5 // pred_check
      %p1537 = pneg %p1536
    $region50: #{mnist_encoder_forward.5} parent=5 // pred_check_branch
      %1539 = sbr.rel (%p1537) target = $region52
    $region51: #{mnist_encoder_forward.5} parent=5 // pred_region
      %s1540 = ssub.s32 %s11, 2
      // Predicated region
      $region53: #{mnist_encoder_forward.5} parent=51 // pred_check
        %p1541 = pneg %p148
      $region54: #{mnist_encoder_forward.5} parent=51 // pred_check_branch
        %1543 = sbr.rel (%p1541) target = $region56
      $region55: #{mnist_encoder_forward.5} parent=51 // pred_region
        %s1544 = smul.u32 36, %s22
        %p1545 = scmp.lt.s32.totalorder %s1544, 71
        %s1546 = scalar_select %p1545, %s1544, 71
        %s1547 = smul.addr %s1546, 8
        %s1548 = scalar_lea.vmem %s4, %s1547
      $region56: #{mnist_encoder_forward.5} parent=51 // pred_fallthru
        _
    $region52: #{mnist_encoder_forward.5} parent=5 // pred_fallthru
      _
  $region6: #{mnist_encoder_forward.5} parent=0 // loop_footer
    %s15 = sadd.s32 1, %s11
  $region7: #{mnist_encoder_forward.5} parent=0 // loop_footer_branch
    %10 = sbr.rel target = $region3
  $region8: #{mnist_encoder_forward.5} parent=0 // loop_exit
    _

// kernel: mnist_encoder_forward.6
$region0: #{mnist_encoder_forward.6}
  #allocation0 [shape = 'u32[]', space=smem, size = 0x4, offset = 0x4, fixed_abs, tag = 'smem constant byte address 0x4 - core index']
  #allocation1 [shape = 'u32[144,128]{1,0:T(1,128)}', space=vmem, size = 0x12000, scoped, tag = 'internal scratch']
  #allocation2 [shape = 'f32[208,128]{1,0:T(8,128)}', space=vmem, size = 0x1a000, scoped, tag = 'scratch operand']
  #allocation3 [shape = 'f32[1]{0:T(128)S(6)}', space=smem, size = 0x200, scoped, tag = 'scoped memory for mnist_encoder_forward.6']
  %s0 = inlined_call_operand.vmem [shape: bf16[416,288], index: 0, kind: input, shape index: {}]
  %s1 = inlined_call_operand.vmem [shape: bf16[288,128], index: 1, kind: input, shape index: {}]
  %s2 = inlined_call_operand.vmem [shape: f32[1,128], index: 2, kind: input, shape index: {}]
  %s3 = inlined_call_operand.<no memory space> [shape: f32[1], index: 3, kind: input, shape index: {}]
  %s4 = inlined_call_operand.vmem [shape: f32[416,128], index: 4, kind: output, shape index: {}]
  %s5 = sld [smem:[#allocation0]]
  $region57: #{mnist_encoder_forward.6} parent=0
    _
  %s7 = ssub.s32 1, %s5
  %s8 = scalar_select 0, %s7, %s5
  %9 = sst [smem:[#allocation3]] %s3
  loop: start=0, step=1, limit=4
  $region2: #{mnist_encoder_forward.6} parent=0 // loop_pre_header
    _
  $region3: #{mnist_encoder_forward.6} parent=0 // loop_header
    %s11 = sphi 0, %s15
    %p12 = scmp.ge.s32.totalorder %s11, 4
    %s18 = sphi 0, %s30
    %s19 = sphi 0, %s26
    %s20 = sphi 0, %s18
    %s21 = sphi 0, %s19
    %s22 = sphi 0, %s20
    %s23 = sphi 0, %s21
    %s35 = sphi 0, %s37
    %s38 = sphi 0, %s35
    %s39 = sphi 0, %s38
    %s55 = sphi 0, %s39
    %s61 = sphi 0, %s63
    %s64 = sphi 0, %s61
    %s65 = sphi 0, %s64
    %s81 = sphi 0, %s65
    %s85 = sphi 0, %s85
    %s87 = sphi 0, %s85
    %s88 = sphi 0, %s87
    %s102 = sphi 0, %s88
    %s106 = sphi 0, %s106
    %s108 = sphi 0, %s106
    %s109 = sphi 0, %s108
    %s123 = sphi 0, %s109
    %s129 = sphi 0, %s131
    %s132 = sphi 0, %s129
    %s133 = sphi 0, %s132
    %s149 = sphi 0, %s133
  $region4: #{mnist_encoder_forward.6} parent=0 // loop_header_branch
    %14 = sbr.rel (%p12) target = $region8
  $region5: #{mnist_encoder_forward.6} parent=0 // loop_body
    %s16 = ssub.s32 %s11, 1
    %s17 = ssub.s32 %s11, 2
    %s24 = sadd.s32 1, %s19
    %p25 = scmp.ge.s32.totalorder %s24, 1
    %s26 = scalar_select %p25, 0, %s24
    %s27 = sadd.s32 1, %s18
    %s28 = scalar_select %p25, %s27, %s18
    %p29 = scmp.ge.s32.totalorder %s28, 2
    %s30 = scalar_select %p29, 0, %s28
    %s31 = ssub.s32 %s18, %s30
    %s32 = ssub.s32 %s19, %s26
    %s33 = sor.u32 %s31, %s32
    %p34 = scmp.eq.s32.totalorder %s33, 0
    %s36 = sadd.s32 %s35, 1
    %s37 = scalar_select %p34, %s35, %s36
    %p40 = pneg %p34
    %p41 = scmp.eq.s32.totalorder %s11, 1
    %p42 = por %p40, %p41
    %p43 = scmp.ne.s32.totalorder %s35, %s38
    %p44 = scmp.eq.s32.totalorder %s11, 0
    %p45 = por %p43, %p44
    %p46 = scmp.ne.s32.totalorder %s35, %s38
    %p47 = scmp.eq.s32.totalorder %s16, 1
    %p48 = por %p46, %p47
    %p49 = scmp.ne.s32.totalorder %s38, %s39
    %p50 = scmp.eq.s32.totalorder %s16, 0
    %p51 = por %p49, %p50
    %p52 = scmp.ne.s32.totalorder %s38, %s39
    %p53 = scmp.eq.s32.totalorder %s17, 1
    %p54 = por %p52, %p53
    %p56 = scmp.ne.s32.totalorder %s39, %s55
    %p57 = scmp.eq.s32.totalorder %s17, 0
    %p58 = por %p56, %p57
    %s59 = ssub.s32 %s19, %s26
    %p60 = scmp.eq.s32.totalorder %s59, 0
    %s62 = sadd.s32 %s61, 1
    %s63 = scalar_select %p60, %s61, %s62
    %p66 = pneg %p60
    %p67 = scmp.eq.s32.totalorder %s11, 1
    %p68 = por %p66, %p67
    %p69 = scmp.ne.s32.totalorder %s61, %s64
    %p70 = scmp.eq.s32.totalorder %s11, 0
    %p71 = por %p69, %p70
    %p72 = scmp.ne.s32.totalorder %s61, %s64
    %p73 = scmp.eq.s32.totalorder %s16, 1
    %p74 = por %p72, %p73
    %p75 = scmp.ne.s32.totalorder %s64, %s65
    %p76 = scmp.eq.s32.totalorder %s16, 0
    %p77 = por %p75, %p76
    %p78 = scmp.ne.s32.totalorder %s64, %s65
    %p79 = scmp.eq.s32.totalorder %s17, 1
    %p80 = por %p78, %p79
    %p82 = scmp.ne.s32.totalorder %s65, %s81
    %p83 = scmp.eq.s32.totalorder %s17, 0
    %p84 = por %p82, %p83
    %s86 = sadd.s32 %s85, 1
    %p89 = scmp.eq.s32.totalorder %s11, 1
    %p90 = scmp.ne.s32.totalorder %s85, %s87
    %p91 = scmp.eq.s32.totalorder %s11, 0
    %p92 = por %p90, %p91
    %p93 = scmp.ne.s32.totalorder %s85, %s87
    %p94 = scmp.eq.s32.totalorder %s16, 1
    %p95 = por %p93, %p94
    %p96 = scmp.ne.s32.totalorder %s87, %s88
    %p97 = scmp.eq.s32.totalorder %s16, 0
    %p98 = por %p96, %p97
    %p99 = scmp.ne.s32.totalorder %s87, %s88
    %p100 = scmp.eq.s32.totalorder %s17, 1
    %p101 = por %p99, %p100
    %p103 = scmp.ne.s32.totalorder %s88, %s102
    %p104 = scmp.eq.s32.totalorder %s17, 0
    %p105 = por %p103, %p104
    %s107 = sadd.s32 %s106, 1
    %p110 = scmp.eq.s32.totalorder %s11, 1
    %p111 = scmp.ne.s32.totalorder %s106, %s108
    %p112 = scmp.eq.s32.totalorder %s11, 0
    %p113 = por %p111, %p112
    %p114 = scmp.ne.s32.totalorder %s106, %s108
    %p115 = scmp.eq.s32.totalorder %s16, 1
    %p116 = por %p114, %p115
    %p117 = scmp.ne.s32.totalorder %s108, %s109
    %p118 = scmp.eq.s32.totalorder %s16, 0
    %p119 = por %p117, %p118
    %p120 = scmp.ne.s32.totalorder %s108, %s109
    %p121 = scmp.eq.s32.totalorder %s17, 1
    %p122 = por %p120, %p121
    %p124 = scmp.ne.s32.totalorder %s109, %s123
    %p125 = scmp.eq.s32.totalorder %s17, 0
    %p126 = por %p124, %p125
    %s127 = ssub.s32 %s18, %s30
    %p128 = scmp.eq.s32.totalorder %s127, 0
    %s130 = sadd.s32 %s129, 1
    %s131 = scalar_select %p128, %s129, %s130
    %p134 = pneg %p128
    %p135 = scmp.eq.s32.totalorder %s11, 1
    %p136 = por %p134, %p135
    %p137 = scmp.ne.s32.totalorder %s129, %s132
    %p138 = scmp.eq.s32.totalorder %s11, 0
    %p139 = por %p137, %p138
    %p140 = scmp.ne.s32.totalorder %s129, %s132
    %p141 = scmp.eq.s32.totalorder %s16, 1
    %p142 = por %p140, %p141
    %p143 = scmp.ne.s32.totalorder %s132, %s133
    %p144 = scmp.eq.s32.totalorder %s16, 0
    %p145 = por %p143, %p144
    %p146 = scmp.ne.s32.totalorder %s132, %s133
    %p147 = scmp.eq.s32.totalorder %s17, 1
    %p148 = por %p146, %p147
    %p150 = scmp.ne.s32.totalorder %s133, %s149
    %p151 = scmp.eq.s32.totalorder %s17, 0
    %p152 = por %p150, %p151
    %p153 = scmp.le.s32.totalorder 1, %s11
    %p154 = scmp.lt.s32.totalorder %s11, 3
    %p155 = pnand %p153, %p154
    %p156 = pneg %p155
    // Predicated region
    $region9: #{mnist_encoder_forward.6} parent=5 // pred_check
      _
    $region10: #{mnist_encoder_forward.6} parent=5 // pred_check_branch
      %158 = sbr.rel (%p155) target = $region12
    $region11: #{mnist_encoder_forward.6} parent=5 // pred_region
      %s159 = ssub.s32 %s11, 1
      // Predicated region
      $region13: #{mnist_encoder_forward.6} parent=11 // pred_check
        %p160 = pneg %p77
      $region14: #{mnist_encoder_forward.6} parent=11 // pred_check_branch
        %162 = sbr.rel (%p160) target = $region16
      $region15: #{mnist_encoder_forward.6} parent=11 // pred_region
        %s163 = smul.u32 36, %s21
        %p164 = scmp.lt.s32.totalorder %s163, 35
        %s165 = scalar_select %p164, %s163, 35
        %s166 = smul.addr %s165, 4
        %s167 = scalar_lea.vmem %s1, %s166
        %s168 = smul.u32 36, %s21
      $region16: #{mnist_encoder_forward.6} parent=11 // pred_fallthru
        _
      // Predicated region
      $region17: #{mnist_encoder_forward.6} parent=11 // pred_check
        %p169 = pneg %p98
      $region18: #{mnist_encoder_forward.6} parent=11 // pred_check_branch
        %171 = sbr.rel (%p169) target = $region20
      $region19: #{mnist_encoder_forward.6} parent=11 // pred_region
        _
      $region20: #{mnist_encoder_forward.6} parent=11 // pred_fallthru
        _
      // Predicated region
      $region21: #{mnist_encoder_forward.6} parent=11 // pred_check
        %p172 = pneg %p119
      $region22: #{mnist_encoder_forward.6} parent=11 // pred_check_branch
        %174 = sbr.rel (%p172) target = $region24
      $region23: #{mnist_encoder_forward.6} parent=11 // pred_region
        _
      $region24: #{mnist_encoder_forward.6} parent=11 // pred_fallthru
        _
    $region12: #{mnist_encoder_forward.6} parent=5 // pred_fallthru
      _
    %p175 = scmp.lt.s32.totalorder %s11, 2
    // Predicated region
    $region25: #{mnist_encoder_forward.6} parent=5 // pred_check
      %p176 = pneg %p175
    $region26: #{mnist_encoder_forward.6} parent=5 // pred_check_branch
      %178 = sbr.rel (%p176) target = $region28
    $region27: #{mnist_encoder_forward.6} parent=5 // pred_region
      // Predicated region
      $region29: #{mnist_encoder_forward.6} parent=27 // pred_check
        %p179 = pneg %p45
      $region30: #{mnist_encoder_forward.6} parent=27 // pred_check_branch
        %181 = sbr.rel (%p179) target = $region32
      $region31: #{mnist_encoder_forward.6} parent=27 // pred_region
        %s182 = smul.u32 26, %s18
        %s183 = smul.u32 3, %s19
        %p184 = scmp.lt.s32.totalorder %s182, 51
        %s185 = scalar_select %p184, %s182, 51
        %p186 = scmp.lt.s32.totalorder %s183, 2
        %s187 = scalar_select %p186, %s183, 2
        %s188 = smul.addr %s185, 3
        %s189 = sadd.s32 %s187, %s188
        %s190 = smul.addr %s189, 4
        %s191 = scalar_lea.vmem %s0, %s190
        %s192 = smul.u32 26, %s18
        %s193 = smul.u32 3, %s19
      $region32: #{mnist_encoder_forward.6} parent=27 // pred_fallthru
        _
    $region28: #{mnist_encoder_forward.6} parent=5 // pred_fallthru
      _
    %p194 = scmp.le.s32.totalorder 1, %s11
    %p195 = scmp.lt.s32.totalorder %s11, 3
    %p196 = pnand %p194, %p195
    %p197 = pneg %p196
    // Predicated region
    $region33: #{mnist_encoder_forward.6} parent=5 // pred_check
      _
    $region34: #{mnist_encoder_forward.6} parent=5 // pred_check_branch
      %199 = sbr.rel (%p196) target = $region36
    $region35: #{mnist_encoder_forward.6} parent=5 // pred_region
      %s200 = ssub.s32 %s11, 1
      %s201 = smul.u32 26, %s20
      %s202 = smul.u32 3, %s21
      %p203 = scmp.lt.s32.totalorder %s201, 51
      %s204 = scalar_select %p203, %s201, 51
      %p205 = scmp.lt.s32.totalorder %s202, 2
      %s206 = scalar_select %p205, %s202, 2
      %s207 = smul.addr %s204, 3
      %s208 = sadd.s32 %s206, %s207
      %s209 = smul.addr %s208, 4
      %s210 = scalar_lea.vmem %s0, %s209
      %p211 = pneg %p51
      %p212 = pneg %p48
      %s213 = smul.u32 36, %s21
      %p214 = scmp.lt.s32.totalorder %s213, 35
      %s215 = scalar_select %p214, %s213, 35
      %s216 = smul.addr %s215, 4
      %s217 = scalar_lea.vmem %s1, %s216
      %p218 = pneg %p77
      %p219 = pneg %p74
      %p220 = pneg %p98
      %p221 = pneg %p95
      %p222 = pneg %p119
      %p223 = pneg %p116
      %p224 = pneg %p145
      %p225 = pneg %p142
      %s226 = smul.u32 26, %s20
      %p227 = scmp.lt.s32.totalorder %s226, 51
      %s228 = scalar_select %p227, %s226, 51
      %s229 = smul.addr %s228, 8
      %s230 = scalar_lea.vmem %s4, %s229
      %s231 = smul.u32 26, %s20
      %s232 = smul.u32 3, %s21
      %p233 = scmp.lt.s32.totalorder %s231, 51
      %s234 = scalar_select %p233, %s231, 51
      %p235 = scmp.lt.s32.totalorder %s232, 2
      %s236 = scalar_select %p235, %s232, 2
      %s237 = smul.addr %s234, 3
      %s238 = sadd.s32 %s236, %s237
      %s239 = smul.addr %s238, 4
      %s240 = scalar_lea.vmem %s0, %s239
      %s241 = smul.u32 26, %s20
      %s242 = smul.u32 3, %s21
      %s243 = smul.u32 36, %s21
      %p244 = scmp.lt.s32.totalorder %s243, 35
      %s245 = scalar_select %p244, %s243, 35
      %s246 = smul.addr %s245, 4
      %s247 = scalar_lea.vmem %s1, %s246
      %s248 = smul.u32 36, %s21
      %s249 = smul.u32 26, %s20
      %p250 = scmp.lt.s32.totalorder %s249, 51
      %s251 = scalar_select %p250, %s249, 51
      %s252 = smul.addr %s251, 8
      %s253 = scalar_lea.vmem %s4, %s252
      %s254 = smul.u32 26, %s20
      %p256 = scmp.eq.s32.totalorder %s21, 0
      // Predicated region
      $region37: #{mnist_encoder_forward.6} parent=35 // pred_check
        %p257 = pneg %p256
      $region38: #{mnist_encoder_forward.6} parent=35 // pred_check_branch
        %259 = sbr.rel (%p257) target = $region40
      $region39: #{mnist_encoder_forward.6} parent=35 // pred_region
        %260 = vst [vmem:[#allocation2] sm:$0xff] 0.0
        %261 = vst [vmem:[#allocation2 + $0x8] sm:$0xff] 0.0
        %262 = vst [vmem:[#allocation2 + $0x10] sm:$0xff] 0.0
        %263 = vst [vmem:[#allocation2 + $0x18] sm:$0xff] 0.0
        %264 = vst [vmem:[#allocation2 + $0x20] sm:$0xff] 0.0
        %265 = vst [vmem:[#allocation2 + $0x28] sm:$0xff] 0.0
        %266 = vst [vmem:[#allocation2 + $0x30] sm:$0xff] 0.0
        %267 = vst [vmem:[#allocation2 + $0x38] sm:$0xff] 0.0
        %268 = vst [vmem:[#allocation2 + $0x40] sm:$0xff] 0.0
        %269 = vst [vmem:[#allocation2 + $0x48] sm:$0xff] 0.0
        %270 = vst [vmem:[#allocation2 + $0x50] sm:$0xff] 0.0
        %271 = vst [vmem:[#allocation2 + $0x58] sm:$0xff] 0.0
        %272 = vst [vmem:[#allocation2 + $0x60] sm:$0xff] 0.0
        %273 = vst [vmem:[#allocation2 + $0x68] sm:$0xff] 0.0
        %274 = vst [vmem:[#allocation2 + $0x70] sm:$0xff] 0.0
        %275 = vst [vmem:[#allocation2 + $0x78] sm:$0xff] 0.0
        %276 = vst [vmem:[#allocation2 + $0x80] sm:$0xff] 0.0
        %277 = vst [vmem:[#allocation2 + $0x88] sm:$0xff] 0.0
        %278 = vst [vmem:[#allocation2 + $0x90] sm:$0xff] 0.0
        %279 = vst [vmem:[#allocation2 + $0x98] sm:$0xff] 0.0
        %280 = vst [vmem:[#allocation2 + $0xa0] sm:$0xff] 0.0
        %281 = vst [vmem:[#allocation2 + $0xa8] sm:$0xff] 0.0
        %282 = vst [vmem:[#allocation2 + $0xb0] sm:$0xff] 0.0
        %283 = vst [vmem:[#allocation2 + $0xb8] sm:$0xff] 0.0
        %284 = vst [vmem:[#allocation2 + $0xc0] sm:$0xff] 0.0
        %285 = vst [vmem:[#allocation2 + $0xc8] sm:$0xff] 0.0
      $region40: #{mnist_encoder_forward.6} parent=35 // pred_fallthru
        _
      %v286 = vld [vmem:[#allocation2] sm:$0xff]
      %v287 = vld [vmem:[#allocation2 + $0x8] sm:$0xff]
      %v288 = vld [vmem:[#allocation2 + $0x10] sm:$0xff]
      %v289 = vld [vmem:[#allocation2 + $0x18] sm:$0xff]
      %v290 = vld [vmem:[#allocation2 + $0x20] sm:$0xff]
      %v291 = vld [vmem:[#allocation2 + $0x28] sm:$0xff]
      %v292 = vld [vmem:[#allocation2 + $0x30] sm:$0xff]
      %v293 = vld [vmem:[#allocation2 + $0x38] sm:$0xff]
      %v294 = vld [vmem:[#allocation2 + $0x40] sm:$0xff]
      %v295 = vld [vmem:[#allocation2 + $0x48] sm:$0xff]
      %v296 = vld [vmem:[#allocation2 + $0x50] sm:$0xff]
      %v297 = vld [vmem:[#allocation2 + $0x58] sm:$0xff]
      %v298 = vld [vmem:[#allocation2 + $0x60] sm:$0xff]
      %v299 = vld [vmem:[#allocation2 + $0x68] sm:$0xff]
      %v300 = vld [vmem:[#allocation2 + $0x70] sm:$0xff]
      %v301 = vld [vmem:[#allocation2 + $0x78] sm:$0xff]
      %v302 = vld [vmem:[#allocation2 + $0x80] sm:$0xff]
      %v303 = vld [vmem:[#allocation2 + $0x88] sm:$0xff]
      %v304 = vld [vmem:[#allocation2 + $0x90] sm:$0xff]
      %v305 = vld [vmem:[#allocation2 + $0x98] sm:$0xff]
      %v306 = vld [vmem:[#allocation2 + $0xa0] sm:$0xff]
      %v307 = vld [vmem:[#allocation2 + $0xa8] sm:$0xff]
      %v308 = vld [vmem:[#allocation2 + $0xb0] sm:$0xff]
      %v309 = vld [vmem:[#allocation2 + $0xb8] sm:$0xff]
      %v310 = vld [vmem:[#allocation2 + $0xc0] sm:$0xff]
      %v311 = vld [vmem:[#allocation2 + $0xc8] sm:$0xff]
      %v312 = vld [vmem:[%s240] sm:$0xff]
      %v313 = vld [vmem:[%s240 + $0x8] sm:$0xf]
      %v314 = vld [vmem:[%s240 + $0xc] sm:$0xff]
      %v315 = vld [vmem:[%s240 + $0x14] sm:$0xf]
      %v316 = vld [vmem:[%s240 + $0x18] sm:$0xff]
      %v317 = vld [vmem:[%s240 + $0x20] sm:$0xf]
      %v318 = vld [vmem:[%s240 + $0x24] sm:$0xff]
      %v319 = vld [vmem:[%s240 + $0x2c] sm:$0xf]
      %v320 = vld [vmem:[%s240 + $0x30] sm:$0xff]
      %v321 = vld [vmem:[%s240 + $0x38] sm:$0xf]
      %v322 = vld [vmem:[%s240 + $0x3c] sm:$0xff]
      %v323 = vld [vmem:[%s240 + $0x44] sm:$0xf]
      %v324 = vld [vmem:[%s240 + $0x48] sm:$0xff]
      %v325 = vld [vmem:[%s240 + $0x50] sm:$0xf]
      %v326 = vld [vmem:[%s240 + $0x54] sm:$0xff]
      %v327 = vld [vmem:[%s240 + $0x5c] sm:$0xf]
      %v328 = vld [vmem:[%s240 + $0x60] sm:$0xff]
      %v329 = vld [vmem:[%s240 + $0x68] sm:$0xf]
      %v330 = vld [vmem:[%s240 + $0x6c] sm:$0xff]
      %v331 = vld [vmem:[%s240 + $0x74] sm:$0xf]
      %v332 = vld [vmem:[%s240 + $0x78] sm:$0xff]
      %v333 = vld [vmem:[%s240 + $0x80] sm:$0xf]
      %v334 = vld [vmem:[%s240 + $0x84] sm:$0xff]
      %v335 = vld [vmem:[%s240 + $0x8c] sm:$0xf]
      %v336 = vld [vmem:[%s240 + $0x90] sm:$0xff]
      %v337 = vld [vmem:[%s240 + $0x98] sm:$0xf]
      %v338 = vld [vmem:[%s240 + $0x9c] sm:$0xff]
      %v339 = vld [vmem:[%s240 + $0xa4] sm:$0xf]
      %v340 = vld [vmem:[%s240 + $0xa8] sm:$0xff]
      %v341 = vld [vmem:[%s240 + $0xb0] sm:$0xf]
      %v342 = vld [vmem:[%s240 + $0xb4] sm:$0xff]
      %v343 = vld [vmem:[%s240 + $0xbc] sm:$0xf]
      %v344 = vld [vmem:[%s240 + $0xc0] sm:$0xff]
      %v345 = vld [vmem:[%s240 + $0xc8] sm:$0xf]
      %v346 = vld [vmem:[%s240 + $0xcc] sm:$0xff]
      %v347 = vld [vmem:[%s240 + $0xd4] sm:$0xf]
      %v348 = vld [vmem:[%s240 + $0xd8] sm:$0xff]
      %v349 = vld [vmem:[%s240 + $0xe0] sm:$0xf]
      %v350 = vld [vmem:[%s240 + $0xe4] sm:$0xff]
      %v351 = vld [vmem:[%s240 + $0xec] sm:$0xf]
      %v352 = vld [vmem:[%s240 + $0xf0] sm:$0xff]
      %v353 = vld [vmem:[%s240 + $0xf8] sm:$0xf]
      %v354 = vld [vmem:[%s240 + $0xfc] sm:$0xff]
      %v355 = vld [vmem:[%s240 + $0x104] sm:$0xf]
      %v356 = vld [vmem:[%s240 + $0x108] sm:$0xff]
      %v357 = vld [vmem:[%s240 + $0x110] sm:$0xf]
      %v358 = vld [vmem:[%s240 + $0x114] sm:$0xff]
      %v359 = vld [vmem:[%s240 + $0x11c] sm:$0xf]
      %v360 = vld [vmem:[%s240 + $0x120] sm:$0xff]
      %v361 = vld [vmem:[%s240 + $0x128] sm:$0xf]
      %v362 = vld [vmem:[%s240 + $0x12c] sm:$0xff]
      %v363 = vld [vmem:[%s240 + $0x134] sm:$0xf]
      %v364 = vld [vmem:[%s247] sm:$0xf]
      %v365 = vld [vmem:[%s247 + $0x4] sm:$0xf]
      %v366 = vld [vmem:[%s247 + $0x8] sm:$0xf]
      %v367 = vld [vmem:[%s247 + $0xc] sm:$0xf]
      %v368 = vld [vmem:[%s247 + $0x10] sm:$0xf]
      %v369 = vld [vmem:[%s247 + $0x14] sm:$0xf]
      %v370 = vld [vmem:[%s247 + $0x18] sm:$0xf]
      %v371 = vld [vmem:[%s247 + $0x1c] sm:$0xf]
      %v372 = vld [vmem:[%s247 + $0x20] sm:$0xf]
      %v373 = vld [vmem:[%s247 + $0x24] sm:$0xf]
      %v374 = vld [vmem:[%s247 + $0x28] sm:$0xf]
      %v375 = vld [vmem:[%s247 + $0x2c] sm:$0xf]
      %v376 = vld [vmem:[%s247 + $0x30] sm:$0xf]
      %v377 = vld [vmem:[%s247 + $0x34] sm:$0xf]
      %v378 = vld [vmem:[%s247 + $0x38] sm:$0xf]
      %v379 = vld [vmem:[%s247 + $0x3c] sm:$0xf]
      %v380 = vld [vmem:[%s247 + $0x40] sm:$0xf]
      %v381 = vld [vmem:[%s247 + $0x44] sm:$0xf]
      %v382 = vld [vmem:[%s247 + $0x48] sm:$0xf]
      %v383 = vld [vmem:[%s247 + $0x4c] sm:$0xf]
      %v384 = vld [vmem:[%s247 + $0x50] sm:$0xf]
      %v385 = vld [vmem:[%s247 + $0x54] sm:$0xf]
      %v386 = vld [vmem:[%s247 + $0x58] sm:$0xf]
      %v387 = vld [vmem:[%s247 + $0x5c] sm:$0xf]
      %v388 = vld [vmem:[%s247 + $0x60] sm:$0xf]
      %v389 = vld [vmem:[%s247 + $0x64] sm:$0xf]
      %v390 = vld [vmem:[%s247 + $0x68] sm:$0xf]
      %v391 = vld [vmem:[%s247 + $0x6c] sm:$0xf]
      %v392 = vld [vmem:[%s247 + $0x70] sm:$0xf]
      %v393 = vld [vmem:[%s247 + $0x74] sm:$0xf]
      %v394 = vld [vmem:[%s247 + $0x78] sm:$0xf]
      %v395 = vld [vmem:[%s247 + $0x7c] sm:$0xf]
      %v396 = vld [vmem:[%s247 + $0x80] sm:$0xf]
      %v397 = vld [vmem:[%s247 + $0x84] sm:$0xf]
      %v398 = vld [vmem:[%s247 + $0x88] sm:$0xf]
      %v399 = vld [vmem:[%s247 + $0x8c] sm:$0xf]
      %v452 = vunpack.c.l.b16 %v312
      %v453 = vunpack.c.h.b16 %v312
      %v454 = vunpack.c.l.b16 %v313
      %v455 = vunpack.c.l.b16 %v314
      %v456 = vunpack.c.h.b16 %v314
      %v457 = vunpack.c.l.b16 %v315
      %v458 = vunpack.c.l.b16 %v316
      %v459 = vunpack.c.h.b16 %v316
      %v460 = vunpack.c.l.b16 %v317
      %v461 = vunpack.c.l.b16 %v318
      %v462 = vunpack.c.h.b16 %v318
      %v463 = vunpack.c.l.b16 %v319
      %v464 = vunpack.c.l.b16 %v320
      %v465 = vunpack.c.h.b16 %v320
      %v466 = vunpack.c.l.b16 %v321
      %v467 = vunpack.c.l.b16 %v322
      %v468 = vunpack.c.h.b16 %v322
      %v469 = vunpack.c.l.b16 %v323
      %v470 = vunpack.c.l.b16 %v324
      %v471 = vunpack.c.h.b16 %v324
      %v472 = vunpack.c.l.b16 %v325
      %v473 = vunpack.c.l.b16 %v326
      %v474 = vunpack.c.h.b16 %v326
      %v475 = vunpack.c.l.b16 %v327
      %v476 = vunpack.c.l.b16 %v328
      %v477 = vunpack.c.h.b16 %v328
      %v478 = vunpack.c.l.b16 %v329
      %v479 = vunpack.c.l.b16 %v330
      %v480 = vunpack.c.h.b16 %v330
      %v481 = vunpack.c.l.b16 %v331
      %v482 = vunpack.c.l.b16 %v332
      %v483 = vunpack.c.h.b16 %v332
      %v484 = vunpack.c.l.b16 %v333
      %v485 = vunpack.c.l.b16 %v334
      %v486 = vunpack.c.h.b16 %v334
      %v487 = vunpack.c.l.b16 %v335
      %v488 = vunpack.c.l.b16 %v336
      %v489 = vunpack.c.h.b16 %v336
      %v490 = vunpack.c.l.b16 %v337
      %v491 = vunpack.c.l.b16 %v338
      %v492 = vunpack.c.h.b16 %v338
      %v493 = vunpack.c.l.b16 %v339
      %v494 = vunpack.c.l.b16 %v340
      %v495 = vunpack.c.h.b16 %v340
      %v496 = vunpack.c.l.b16 %v341
      %v497 = vunpack.c.l.b16 %v342
      %v498 = vunpack.c.h.b16 %v342
      %v499 = vunpack.c.l.b16 %v343
      %v500 = vunpack.c.l.b16 %v344
      %v501 = vunpack.c.h.b16 %v344
      %v502 = vunpack.c.l.b16 %v345
      %v503 = vunpack.c.l.b16 %v346
      %v504 = vunpack.c.h.b16 %v346
      %v505 = vunpack.c.l.b16 %v347
      %v506 = vunpack.c.l.b16 %v348
      %v507 = vunpack.c.h.b16 %v348
      %v508 = vunpack.c.l.b16 %v349
      %v509 = vunpack.c.l.b16 %v350
      %v510 = vunpack.c.h.b16 %v350
      %v511 = vunpack.c.l.b16 %v351
      %v512 = vunpack.c.l.b16 %v352
      %v513 = vunpack.c.h.b16 %v352
      %v514 = vunpack.c.l.b16 %v353
      %v515 = vunpack.c.l.b16 %v354
      %v516 = vunpack.c.h.b16 %v354
      %v517 = vunpack.c.l.b16 %v355
      %v518 = vunpack.c.l.b16 %v356
      %v519 = vunpack.c.h.b16 %v356
      %v520 = vunpack.c.l.b16 %v357
      %v521 = vunpack.c.l.b16 %v358
      %v522 = vunpack.c.h.b16 %v358
      %v523 = vunpack.c.l.b16 %v359
      %v524 = vunpack.c.l.b16 %v360
      %v525 = vunpack.c.h.b16 %v360
      %v526 = vunpack.c.l.b16 %v361
      %v527 = vunpack.c.l.b16 %v362
      %v528 = vunpack.c.h.b16 %v362
      %v529 = vunpack.c.l.b16 %v363
      %v530 = vpack.c.b16 %v455, %v452
      %v531 = vpack.c.b16 %v456, %v453
      %v532 = vpack.c.b16 %v457, %v454
      %v533 = vpack.c.b16 %v461, %v458
      %v534 = vpack.c.b16 %v462, %v459
      %v535 = vpack.c.b16 %v463, %v460
      %v536 = vpack.c.b16 %v467, %v464
      %v537 = vpack.c.b16 %v468, %v465
      %v538 = vpack.c.b16 %v469, %v466
      %v539 = vpack.c.b16 %v473, %v470
      %v540 = vpack.c.b16 %v474, %v471
      %v541 = vpack.c.b16 %v475, %v472
      %v542 = vpack.c.b16 %v479, %v476
      %v543 = vpack.c.b16 %v480, %v477
      %v544 = vpack.c.b16 %v481, %v478
      %v545 = vpack.c.b16 %v485, %v482
      %v546 = vpack.c.b16 %v486, %v483
      %v547 = vpack.c.b16 %v487, %v484
      %v548 = vpack.c.b16 %v491, %v488
      %v549 = vpack.c.b16 %v492, %v489
      %v550 = vpack.c.b16 %v493, %v490
      %v551 = vpack.c.b16 %v497, %v494
      %v552 = vpack.c.b16 %v498, %v495
      %v553 = vpack.c.b16 %v499, %v496
      %v554 = vpack.c.b16 %v503, %v500
      %v555 = vpack.c.b16 %v504, %v501
      %v556 = vpack.c.b16 %v505, %v502
      %v557 = vpack.c.b16 %v509, %v506
      %v558 = vpack.c.b16 %v510, %v507
      %v559 = vpack.c.b16 %v511, %v508
      %v560 = vpack.c.b16 %v515, %v512
      %v561 = vpack.c.b16 %v516, %v513
      %v562 = vpack.c.b16 %v517, %v514
      %v563 = vpack.c.b16 %v521, %v518
      %v564 = vpack.c.b16 %v522, %v519
      %v565 = vpack.c.b16 %v523, %v520
      %v566 = vpack.c.b16 %v527, %v524
      %v567 = vpack.c.b16 %v528, %v525
      %v568 = vpack.c.b16 %v529, %v526
      %v631 = vunpack.c.l.b16 %v364
      %v632 = vunpack.c.l.b16 %v365
      %v633 = vunpack.c.l.b16 %v366
      %v634 = vunpack.c.l.b16 %v367
      %v635 = vunpack.c.l.b16 %v368
      %v636 = vunpack.c.l.b16 %v369
      %v637 = vunpack.c.l.b16 %v370
      %v638 = vunpack.c.l.b16 %v371
      %v639 = vunpack.c.l.b16 %v372
      %v640 = vunpack.c.l.b16 %v373
      %v641 = vunpack.c.l.b16 %v374
      %v642 = vunpack.c.l.b16 %v375
      %v643 = vunpack.c.l.b16 %v376
      %v644 = vunpack.c.l.b16 %v377
      %v645 = vunpack.c.l.b16 %v378
      %v646 = vunpack.c.l.b16 %v379
      %v647 = vunpack.c.l.b16 %v380
      %v648 = vunpack.c.l.b16 %v381
      %v649 = vunpack.c.l.b16 %v382
      %v650 = vunpack.c.l.b16 %v383
      %v651 = vunpack.c.l.b16 %v384
      %v652 = vunpack.c.l.b16 %v385
      %v653 = vunpack.c.l.b16 %v386
      %v654 = vunpack.c.l.b16 %v387
      %v655 = vunpack.c.l.b16 %v388
      %v656 = vunpack.c.l.b16 %v389
      %v657 = vunpack.c.l.b16 %v390
      %v658 = vunpack.c.l.b16 %v391
      %v659 = vunpack.c.l.b16 %v392
      %v660 = vunpack.c.l.b16 %v393
      %v661 = vunpack.c.l.b16 %v394
      %v662 = vunpack.c.l.b16 %v395
      %v663 = vunpack.c.l.b16 %v396
      %v664 = vunpack.c.l.b16 %v397
      %v665 = vunpack.c.l.b16 %v398
      %v666 = vunpack.c.l.b16 %v399
      %v667 = vpack.c.b16 %v632, %v631
      %v668 = vpack.c.b16 %v634, %v633
      %v669 = vpack.c.b16 %v636, %v635
      %v670 = vpack.c.b16 %v638, %v637
      %v671 = vpack.c.b16 %v640, %v639
      %v672 = vpack.c.b16 %v642, %v641
      %v673 = vpack.c.b16 %v644, %v643
      %v674 = vpack.c.b16 %v646, %v645
      %v675 = vpack.c.b16 %v648, %v647
      %v676 = vpack.c.b16 %v650, %v649
      %v677 = vpack.c.b16 %v652, %v651
      %v678 = vpack.c.b16 %v654, %v653
      %v679 = vpack.c.b16 %v656, %v655
      %v680 = vpack.c.b16 %v658, %v657
      %v681 = vpack.c.b16 %v660, %v659
      %v682 = vpack.c.b16 %v662, %v661
      %v683 = vpack.c.b16 %v664, %v663
      %v684 = vpack.c.b16 %v666, %v665
      %vm703 = vcmask 261120
      %v705 = vsel %vm703, %v532, 0
      %v708 = vsel %vm703, %v535, 0
      %v711 = vsel %vm703, %v538, 0
      %v714 = vsel %vm703, %v541, 0
      %v717 = vsel %vm703, %v544, 0
      %v720 = vsel %vm703, %v547, 0
      %v723 = vsel %vm703, %v550, 0
      %v726 = vsel %vm703, %v553, 0
      %v729 = vsel %vm703, %v556, 0
      %v732 = vsel %vm703, %v559, 0
      %v735 = vsel %vm703, %v562, 0
      %v738 = vsel %vm703, %v565, 0
      %v741 = vsel %vm703, %v568, 0
      %743 = vmatprep.subr.bf16.mxu0 0
      %744 = vmatpush1.bf16.msra.mxu0 %v667
      %745 = vmatprep.subr.bf16.mxu0 0
      %746 = vmatpush1.bf16.msra.mxu0 %v668
      %747 = vmatprep.subr.bf16.mxu0 0
      %748 = vmatpush1.bf16.msra.mxu0 %v669
      %749 = vmatprep.subr.bf16.mxu0 0
      %750 = vmatpush1.bf16.msra.mxu0 %v670
      %751 = vmatprep.subr.bf16.mxu0 0
      %752 = vmatpush1.bf16.msra.mxu0 %v671
      %753 = vmatprep.subr.bf16.mxu0 0
      %754 = vmatpush1.bf16.msra.mxu0 %v672
      %755 = vmatprep.subr.bf16.mxu0 0
      %756 = vmatpush1.bf16.msra.mxu0 %v673
      %757 = vmatprep.subr.bf16.mxu0 0
      %758 = vmatpush1.bf16.msra.mxu0 %v674
      %759 = vmatprep.subr.bf16.mxu0 0
      %760 = vmatpush1.bf16.msra.mxu0 %v675
      %761 = vmatprep.subr.bf16.mxu0 0
      %762 = vmatpush1.bf16.msra.mxu0 %v676
      %763 = vmatprep.subr.bf16.mxu0 0
      %764 = vmatpush1.bf16.msra.mxu0 %v677
      %765 = vmatprep.subr.bf16.mxu0 0
      %766 = vmatpush1.bf16.msra.mxu0 %v678
      %767 = vmatprep.subr.bf16.mxu0 0
      %768 = vmatpush1.bf16.msra.mxu0 %v679
      %769 = vmatprep.subr.bf16.mxu0 0
      %770 = vmatpush1.bf16.msra.mxu0 %v680
      %771 = vmatprep.subr.bf16.mxu0 0
      %772 = vmatpush1.bf16.msra.mxu0 %v681
      %773 = vmatprep.subr.bf16.mxu0 0
      %774 = vmatpush1.bf16.msra.mxu0 %v682
      %775 = vmatprep.mubr.bf16.mxu0 %v531
      %776 = vmatmul.mubr.bf16.gmra.mrb[0].mxu0 %v530
      %v777 = vpop.f32.mrb[0].mxu0
      %v778 = vadd.f32 0.0, %v777
      %v779 = vpop.f32.mrb[0].mxu0
      %v780 = vpop.f32.mrb[0].mxu0
      %v781 = vadd.f32 0.0, %v780
      %v782 = vpop.f32.mrb[0].mxu0
      %783 = vmatprep.mubr.bf16.mxu0 %v534
      %784 = vmatmul.mubr.bf16.gmra.mrb[0].mxu0 %v533
      %v785 = vpop.f32.mrb[0].mxu0
      %v786 = vadd.f32 0.0, %v785
      %v787 = vpop.f32.mrb[0].mxu0
      %v788 = vpop.f32.mrb[0].mxu0
      %v789 = vadd.f32 0.0, %v788
      %v790 = vpop.f32.mrb[0].mxu0
      %791 = vmatprep.mubr.bf16.mxu0 %v537
      %792 = vmatmul.mubr.bf16.gmra.mrb[0].mxu0 %v536
      %v793 = vpop.f32.mrb[0].mxu0
      %v794 = vadd.f32 0.0, %v793
      %v795 = vpop.f32.mrb[0].mxu0
      %v796 = vpop.f32.mrb[0].mxu0
      %v797 = vadd.f32 0.0, %v796
      %v798 = vpop.f32.mrb[0].mxu0
      %799 = vmatprep.mubr.bf16.mxu0 %v540
      %800 = vmatmul.mubr.bf16.gmra.mrb[0].mxu0 %v539
      %v801 = vpop.f32.mrb[0].mxu0
      %v802 = vadd.f32 0.0, %v801
      %v803 = vpop.f32.mrb[0].mxu0
      %v804 = vpop.f32.mrb[0].mxu0
      %v805 = vadd.f32 0.0, %v804
      %v806 = vpop.f32.mrb[0].mxu0
      %807 = vmatprep.mubr.bf16.mxu0 %v543
      %808 = vmatmul.mubr.bf16.gmra.mrb[0].mxu0 %v542
      %v809 = vpop.f32.mrb[0].mxu0
      %v810 = vadd.f32 0.0, %v809
      %v811 = vpop.f32.mrb[0].mxu0
      %v812 = vpop.f32.mrb[0].mxu0
      %v813 = vadd.f32 0.0, %v812
      %v814 = vpop.f32.mrb[0].mxu0
      %815 = vmatprep.mubr.bf16.mxu0 %v546
      %816 = vmatmul.mubr.bf16.gmra.mrb[0].mxu0 %v545
      %v817 = vpop.f32.mrb[0].mxu0
      %v818 = vadd.f32 0.0, %v817
      %v819 = vpop.f32.mrb[0].mxu0
      %v820 = vpop.f32.mrb[0].mxu0
      %v821 = vadd.f32 0.0, %v820
      %v822 = vpop.f32.mrb[0].mxu0
      %823 = vmatprep.mubr.bf16.mxu0 %v549
      %824 = vmatmul.mubr.bf16.gmra.mrb[0].mxu0 %v548
      %v825 = vpop.f32.mrb[0].mxu0
      %v826 = vadd.f32 0.0, %v825
      %v827 = vpop.f32.mrb[0].mxu0
      %v828 = vpop.f32.mrb[0].mxu0
      %v829 = vadd.f32 0.0, %v828
      %v830 = vpop.f32.mrb[0].mxu0
      %831 = vmatprep.mubr.bf16.mxu0 %v552
      %832 = vmatmul.mubr.bf16.gmra.mrb[0].mxu0 %v551
      %v833 = vpop.f32.mrb[0].mxu0
      %v834 = vadd.f32 0.0, %v833
      %v835 = vpop.f32.mrb[0].mxu0
      %v836 = vpop.f32.mrb[0].mxu0
      %v837 = vadd.f32 0.0, %v836
      %v838 = vpop.f32.mrb[0].mxu0
      %839 = vmatprep.mubr.bf16.mxu0 %v555
      %840 = vmatmul.mubr.bf16.gmra.mrb[0].mxu0 %v554
      %v841 = vpop.f32.mrb[0].mxu0
      %v842 = vadd.f32 0.0, %v841
      %v843 = vpop.f32.mrb[0].mxu0
      %v844 = vpop.f32.mrb[0].mxu0
      %v845 = vadd.f32 0.0, %v844
      %v846 = vpop.f32.mrb[0].mxu0
      %847 = vmatprep.mubr.bf16.mxu0 %v558
      %848 = vmatmul.mubr.bf16.gmra.mrb[0].mxu0 %v557
      %v849 = vpop.f32.mrb[0].mxu0
      %v850 = vadd.f32 0.0, %v849
      %v851 = vpop.f32.mrb[0].mxu0
      %v852 = vpop.f32.mrb[0].mxu0
      %v853 = vadd.f32 0.0, %v852
      %v854 = vpop.f32.mrb[0].mxu0
      %855 = vmatprep.mubr.bf16.mxu0 %v561
      %856 = vmatmul.mubr.bf16.gmra.mrb[0].mxu0 %v560
      %v857 = vpop.f32.mrb[0].mxu0
      %v858 = vadd.f32 0.0, %v857
      %v859 = vpop.f32.mrb[0].mxu0
      %v860 = vpop.f32.mrb[0].mxu0
      %v861 = vadd.f32 0.0, %v860
      %v862 = vpop.f32.mrb[0].mxu0
      %863 = vmatprep.mubr.bf16.mxu0 %v564
      %864 = vmatmul.mubr.bf16.gmra.mrb[0].mxu0 %v563
      %v865 = vpop.f32.mrb[0].mxu0
      %v866 = vadd.f32 0.0, %v865
      %v867 = vpop.f32.mrb[0].mxu0
      %v868 = vpop.f32.mrb[0].mxu0
      %v869 = vadd.f32 0.0, %v868
      %v870 = vpop.f32.mrb[0].mxu0
      %871 = vmatprep.mubr.bf16.mxu0 %v567
      %872 = vmatmul.mubr.bf16.gmra.mrb[0].mxu0 %v566
      %v873 = vpop.f32.mrb[0].mxu0
      %v874 = vadd.f32 0.0, %v873
      %v875 = vpop.f32.mrb[0].mxu0
      %v876 = vpop.f32.mrb[0].mxu0
      %v877 = vadd.f32 0.0, %v876
      %v878 = vpop.f32.mrb[0].mxu0
      %879 = vdwg.mxu0
      %880 = vmatprep.subr.bf16.mxu0 0
      %881 = vmatpush1.bf16.msra.mxu0 %v683
      %882 = vmatprep.subr.bf16.mxu0 0
      %883 = vmatpush1.bf16.msra.mxu0 %v684
      %884 = vmatprep.subr.bf16.mxu0 0
      %885 = vmatpush1.bf16.msra.mxu0 0
      %886 = vmatprep.subr.bf16.mxu0 0
      %887 = vmatpush1.bf16.msra.mxu0 0
      %888 = vmatprep.subr.bf16.mxu0 0
      %889 = vmatpush1.bf16.msra.mxu0 0
      %890 = vmatprep.subr.bf16.mxu0 0
      %891 = vmatpush1.bf16.msra.mxu0 0
      %892 = vmatprep.subr.bf16.mxu0 0
      %893 = vmatpush1.bf16.msra.mxu0 0
      %894 = vmatprep.subr.bf16.mxu0 0
      %895 = vmatpush1.bf16.msra.mxu0 0
      %896 = vmatprep.subr.bf16.mxu0 0
      %897 = vmatpush1.bf16.msra.mxu0 0
      %898 = vmatprep.subr.bf16.mxu0 0
      %899 = vmatpush1.bf16.msra.mxu0 0
      %900 = vmatprep.subr.bf16.mxu0 0
      %901 = vmatpush1.bf16.msra.mxu0 0
      %902 = vmatprep.subr.bf16.mxu0 0
      %903 = vmatpush1.bf16.msra.mxu0 0
      %904 = vmatprep.subr.bf16.mxu0 0
      %905 = vmatpush1.bf16.msra.mxu0 0
      %906 = vmatprep.subr.bf16.mxu0 0
      %907 = vmatpush1.bf16.msra.mxu0 0
      %908 = vmatprep.subr.bf16.mxu0 0
      %909 = vmatpush1.bf16.msra.mxu0 0
      %910 = vmatprep.subr.bf16.mxu0 0
      %911 = vmatpush1.bf16.msra.mxu0 0
      %912 = vmatprep.mubr.bf16.mxu0 0
      %913 = vmatmul.mubr.bf16.gmra.mrb[0].mxu0 %v705
      %v914 = vpop.f32.mrb[0].mxu0
      %v915 = vadd.f32 %v778, %v914
      %v916 = vpop.f32.mrb[0].mxu0
      %v917 = vpop.f32.mrb[0].mxu0
      %v918 = vadd.f32 %v781, %v917
      %v919 = vpop.f32.mrb[0].mxu0
      %920 = vmatprep.mubr.bf16.mxu0 0
      %921 = vmatmul.mubr.bf16.gmra.mrb[0].mxu0 %v708
      %v922 = vpop.f32.mrb[0].mxu0
      %v923 = vadd.f32 %v786, %v922
      %v924 = vpop.f32.mrb[0].mxu0
      %v925 = vpop.f32.mrb[0].mxu0
      %v926 = vadd.f32 %v789, %v925
      %v927 = vpop.f32.mrb[0].mxu0
      %928 = vmatprep.mubr.bf16.mxu0 0
      %929 = vmatmul.mubr.bf16.gmra.mrb[0].mxu0 %v711
      %v930 = vpop.f32.mrb[0].mxu0
      %v931 = vadd.f32 %v794, %v930
      %v932 = vpop.f32.mrb[0].mxu0
      %v933 = vpop.f32.mrb[0].mxu0
      %v934 = vadd.f32 %v797, %v933
      %v935 = vpop.f32.mrb[0].mxu0
      %936 = vmatprep.mubr.bf16.mxu0 0
      %937 = vmatmul.mubr.bf16.gmra.mrb[0].mxu0 %v714
      %v938 = vpop.f32.mrb[0].mxu0
      %v939 = vadd.f32 %v802, %v938
      %v940 = vpop.f32.mrb[0].mxu0
      %v941 = vpop.f32.mrb[0].mxu0
      %v942 = vadd.f32 %v805, %v941
      %v943 = vpop.f32.mrb[0].mxu0
      %944 = vmatprep.mubr.bf16.mxu0 0
      %945 = vmatmul.mubr.bf16.gmra.mrb[0].mxu0 %v717
      %v946 = vpop.f32.mrb[0].mxu0
      %v947 = vadd.f32 %v810, %v946
      %v948 = vpop.f32.mrb[0].mxu0
      %v949 = vpop.f32.mrb[0].mxu0
      %v950 = vadd.f32 %v813, %v949
      %v951 = vpop.f32.mrb[0].mxu0
      %952 = vmatprep.mubr.bf16.mxu0 0
      %953 = vmatmul.mubr.bf16.gmra.mrb[0].mxu0 %v720
      %v954 = vpop.f32.mrb[0].mxu0
      %v955 = vadd.f32 %v818, %v954
      %v956 = vpop.f32.mrb[0].mxu0
      %v957 = vpop.f32.mrb[0].mxu0
      %v958 = vadd.f32 %v821, %v957
      %v959 = vpop.f32.mrb[0].mxu0
      %960 = vmatprep.mubr.bf16.mxu0 0
      %961 = vmatmul.mubr.bf16.gmra.mrb[0].mxu0 %v723
      %v962 = vpop.f32.mrb[0].mxu0
      %v963 = vadd.f32 %v826, %v962
      %v964 = vpop.f32.mrb[0].mxu0
      %v965 = vpop.f32.mrb[0].mxu0
      %v966 = vadd.f32 %v829, %v965
      %v967 = vpop.f32.mrb[0].mxu0
      %968 = vmatprep.mubr.bf16.mxu0 0
      %969 = vmatmul.mubr.bf16.gmra.mrb[0].mxu0 %v726
      %v970 = vpop.f32.mrb[0].mxu0
      %v971 = vadd.f32 %v834, %v970
      %v972 = vpop.f32.mrb[0].mxu0
      %v973 = vpop.f32.mrb[0].mxu0
      %v974 = vadd.f32 %v837, %v973
      %v975 = vpop.f32.mrb[0].mxu0
      %976 = vmatprep.mubr.bf16.mxu0 0
      %977 = vmatmul.mubr.bf16.gmra.mrb[0].mxu0 %v729
      %v978 = vpop.f32.mrb[0].mxu0
      %v979 = vadd.f32 %v842, %v978
      %v980 = vpop.f32.mrb[0].mxu0
      %v981 = vpop.f32.mrb[0].mxu0
      %v982 = vadd.f32 %v845, %v981
      %v983 = vpop.f32.mrb[0].mxu0
      %984 = vmatprep.mubr.bf16.mxu0 0
      %985 = vmatmul.mubr.bf16.gmra.mrb[0].mxu0 %v732
      %v986 = vpop.f32.mrb[0].mxu0
      %v987 = vadd.f32 %v850, %v986
      %v988 = vpop.f32.mrb[0].mxu0
      %v989 = vpop.f32.mrb[0].mxu0
      %v990 = vadd.f32 %v853, %v989
      %v991 = vpop.f32.mrb[0].mxu0
      %992 = vmatprep.mubr.bf16.mxu0 0
      %993 = vmatmul.mubr.bf16.gmra.mrb[0].mxu0 %v735
      %v994 = vpop.f32.mrb[0].mxu0
      %v995 = vadd.f32 %v858, %v994
      %v996 = vpop.f32.mrb[0].mxu0
      %v997 = vpop.f32.mrb[0].mxu0
      %v998 = vadd.f32 %v861, %v997
      %v999 = vpop.f32.mrb[0].mxu0
      %1000 = vmatprep.mubr.bf16.mxu0 0
      %1001 = vmatmul.mubr.bf16.gmra.mrb[0].mxu0 %v738
      %v1002 = vpop.f32.mrb[0].mxu0
      %v1003 = vadd.f32 %v866, %v1002
      %v1004 = vpop.f32.mrb[0].mxu0
      %v1005 = vpop.f32.mrb[0].mxu0
      %v1006 = vadd.f32 %v869, %v1005
      %v1007 = vpop.f32.mrb[0].mxu0
      %1008 = vmatprep.mubr.bf16.mxu0 0
      %1009 = vmatmul.mubr.bf16.gmra.mrb[0].mxu0 %v741
      %v1010 = vpop.f32.mrb[0].mxu0
      %v1011 = vadd.f32 %v874, %v1010
      %v1012 = vpop.f32.mrb[0].mxu0
      %v1013 = vpop.f32.mrb[0].mxu0
      %v1014 = vadd.f32 %v877, %v1013
      %v1015 = vpop.f32.mrb[0].mxu0
      %1016 = vdwg.mxu0
      %v1017 = vadd.f32 %v286, %v915
      %v1018 = vadd.f32 %v287, %v918
      %v1019 = vadd.f32 %v288, %v923
      %v1020 = vadd.f32 %v289, %v926
      %v1021 = vadd.f32 %v290, %v931
      %v1022 = vadd.f32 %v291, %v934
      %v1023 = vadd.f32 %v292, %v939
      %v1024 = vadd.f32 %v293, %v942
      %v1025 = vadd.f32 %v294, %v947
      %v1026 = vadd.f32 %v295, %v950
      %v1027 = vadd.f32 %v296, %v955
      %v1028 = vadd.f32 %v297, %v958
      %v1029 = vadd.f32 %v298, %v963
      %v1030 = vadd.f32 %v299, %v966
      %v1031 = vadd.f32 %v300, %v971
      %v1032 = vadd.f32 %v301, %v974
      %v1033 = vadd.f32 %v302, %v979
      %v1034 = vadd.f32 %v303, %v982
      %v1035 = vadd.f32 %v304, %v987
      %v1036 = vadd.f32 %v305, %v990
      %v1037 = vadd.f32 %v306, %v995
      %v1038 = vadd.f32 %v307, %v998
      %v1039 = vadd.f32 %v308, %v1003
      %v1040 = vadd.f32 %v309, %v1006
      %v1041 = vadd.f32 %v310, %v1011
      %v1042 = vadd.f32 %v311, %v1014
      %1043 = vst [vmem:[#allocation2] sm:$0xff] %v1017
      %1044 = vst [vmem:[#allocation2 + $0x8] sm:$0xff] %v1018
      %1045 = vst [vmem:[#allocation2 + $0x10] sm:$0xff] %v1019
      %1046 = vst [vmem:[#allocation2 + $0x18] sm:$0xff] %v1020
      %1047 = vst [vmem:[#allocation2 + $0x20] sm:$0xff] %v1021
      %1048 = vst [vmem:[#allocation2 + $0x28] sm:$0xff] %v1022
      %1049 = vst [vmem:[#allocation2 + $0x30] sm:$0xff] %v1023
      %1050 = vst [vmem:[#allocation2 + $0x38] sm:$0xff] %v1024
      %1051 = vst [vmem:[#allocation2 + $0x40] sm:$0xff] %v1025
      %1052 = vst [vmem:[#allocation2 + $0x48] sm:$0xff] %v1026
      %1053 = vst [vmem:[#allocation2 + $0x50] sm:$0xff] %v1027
      %1054 = vst [vmem:[#allocation2 + $0x58] sm:$0xff] %v1028
      %1055 = vst [vmem:[#allocation2 + $0x60] sm:$0xff] %v1029
      %1056 = vst [vmem:[#allocation2 + $0x68] sm:$0xff] %v1030
      %1057 = vst [vmem:[#allocation2 + $0x70] sm:$0xff] %v1031
      %1058 = vst [vmem:[#allocation2 + $0x78] sm:$0xff] %v1032
      %1059 = vst [vmem:[#allocation2 + $0x80] sm:$0xff] %v1033
      %1060 = vst [vmem:[#allocation2 + $0x88] sm:$0xff] %v1034
      %1061 = vst [vmem:[#allocation2 + $0x90] sm:$0xff] %v1035
      %1062 = vst [vmem:[#allocation2 + $0x98] sm:$0xff] %v1036
      %1063 = vst [vmem:[#allocation2 + $0xa0] sm:$0xff] %v1037
      %1064 = vst [vmem:[#allocation2 + $0xa8] sm:$0xff] %v1038
      %1065 = vst [vmem:[#allocation2 + $0xb0] sm:$0xff] %v1039
      %1066 = vst [vmem:[#allocation2 + $0xb8] sm:$0xff] %v1040
      %1067 = vst [vmem:[#allocation2 + $0xc0] sm:$0xff] %v1041
      %1068 = vst [vmem:[#allocation2 + $0xc8] sm:$0xff] %v1042
      // Predicated region
      $region41: #{mnist_encoder_forward.6} parent=35 // pred_check
        %p1069 = pneg %p256
      $region42: #{mnist_encoder_forward.6} parent=35 // pred_check_branch
        %1071 = sbr.rel (%p1069) target = $region44
      $region43: #{mnist_encoder_forward.6} parent=35 // pred_region
        %v1072 = vld [vmem:[#allocation2] sm:$0xff]
        %v1073 = vld [vmem:[#allocation2 + $0x8] sm:$0xff]
        %v1074 = vld [vmem:[#allocation2 + $0x10] sm:$0xff]
        %v1075 = vld [vmem:[#allocation2 + $0x18] sm:$0xff]
        %v1076 = vld [vmem:[#allocation2 + $0x20] sm:$0xff]
        %v1077 = vld [vmem:[#allocation2 + $0x28] sm:$0xff]
        %v1078 = vld [vmem:[#allocation2 + $0x30] sm:$0xff]
        %v1079 = vld [vmem:[#allocation2 + $0x38] sm:$0xff]
        %v1080 = vld [vmem:[#allocation2 + $0x40] sm:$0xff]
        %v1081 = vld [vmem:[#allocation2 + $0x48] sm:$0xff]
        %v1082 = vld [vmem:[#allocation2 + $0x50] sm:$0xff]
        %v1083 = vld [vmem:[#allocation2 + $0x58] sm:$0xff]
        %v1084 = vld [vmem:[#allocation2 + $0x60] sm:$0xff]
        %v1085 = vld [vmem:[#allocation2 + $0x68] sm:$0xff]
        %v1086 = vld [vmem:[#allocation2 + $0x70] sm:$0xff]
        %v1087 = vld [vmem:[#allocation2 + $0x78] sm:$0xff]
        %v1088 = vld [vmem:[#allocation2 + $0x80] sm:$0xff]
        %v1089 = vld [vmem:[#allocation2 + $0x88] sm:$0xff]
        %v1090 = vld [vmem:[#allocation2 + $0x90] sm:$0xff]
        %v1091 = vld [vmem:[#allocation2 + $0x98] sm:$0xff]
        %v1092 = vld [vmem:[#allocation2 + $0xa0] sm:$0xff]
        %v1093 = vld [vmem:[#allocation2 + $0xa8] sm:$0xff]
        %v1094 = vld [vmem:[#allocation2 + $0xb0] sm:$0xff]
        %v1095 = vld [vmem:[#allocation2 + $0xb8] sm:$0xff]
        %v1096 = vld [vmem:[#allocation2 + $0xc0] sm:$0xff]
        %v1097 = vld [vmem:[#allocation2 + $0xc8] sm:$0xff]
        %v1098 = vld [vmem:[%s2] sm:$0x1]
        %v1100 = vlaneseq
        %v1101 = vshrl.u32 %v1100, 7
        %v1102 = vsub.s32 0, %v1101
        %v1103 = vrot.slane %v1098, %v1102
        %v1105 = vadd.f32 %v1072, %v1103
        %v1106 = vadd.f32 %v1073, %v1103
        %v1107 = vadd.f32 %v1074, %v1103
        %v1108 = vadd.f32 %v1075, %v1103
        %v1109 = vadd.f32 %v1076, %v1103
        %v1110 = vadd.f32 %v1077, %v1103
        %v1111 = vadd.f32 %v1078, %v1103
        %v1112 = vadd.f32 %v1079, %v1103
        %v1113 = vadd.f32 %v1080, %v1103
        %v1114 = vadd.f32 %v1081, %v1103
        %v1115 = vadd.f32 %v1082, %v1103
        %v1116 = vadd.f32 %v1083, %v1103
        %v1117 = vadd.f32 %v1084, %v1103
        %v1118 = vadd.f32 %v1085, %v1103
        %v1119 = vadd.f32 %v1086, %v1103
        %v1120 = vadd.f32 %v1087, %v1103
        %v1121 = vadd.f32 %v1088, %v1103
        %v1122 = vadd.f32 %v1089, %v1103
        %v1123 = vadd.f32 %v1090, %v1103
        %v1124 = vadd.f32 %v1091, %v1103
        %v1125 = vadd.f32 %v1092, %v1103
        %v1126 = vadd.f32 %v1093, %v1103
        %v1127 = vadd.f32 %v1094, %v1103
        %v1128 = vadd.f32 %v1095, %v1103
        %v1129 = vadd.f32 %v1096, %v1103
        %v1130 = vadd.f32 %v1097, %v1103
        %s1131 = sld [smem:[#allocation3]]
        %vm1132 = vcmp.ge.f32.partialorder %v1105, 0.0
        %vm1133 = vcmp.ge.f32.partialorder %v1106, 0.0
        %vm1134 = vcmp.ge.f32.partialorder %v1107, 0.0
        %vm1135 = vcmp.ge.f32.partialorder %v1108, 0.0
        %vm1136 = vcmp.ge.f32.partialorder %v1109, 0.0
        %vm1137 = vcmp.ge.f32.partialorder %v1110, 0.0
        %vm1138 = vcmp.ge.f32.partialorder %v1111, 0.0
        %vm1139 = vcmp.ge.f32.partialorder %v1112, 0.0
        %vm1140 = vcmp.ge.f32.partialorder %v1113, 0.0
        %vm1141 = vcmp.ge.f32.partialorder %v1114, 0.0
        %vm1142 = vcmp.ge.f32.partialorder %v1115, 0.0
        %vm1143 = vcmp.ge.f32.partialorder %v1116, 0.0
        %vm1144 = vcmp.ge.f32.partialorder %v1117, 0.0
        %vm1145 = vcmp.ge.f32.partialorder %v1118, 0.0
        %vm1146 = vcmp.ge.f32.partialorder %v1119, 0.0
        %vm1147 = vcmp.ge.f32.partialorder %v1120, 0.0
        %vm1148 = vcmp.ge.f32.partialorder %v1121, 0.0
        %vm1149 = vcmp.ge.f32.partialorder %v1122, 0.0
        %vm1150 = vcmp.ge.f32.partialorder %v1123, 0.0
        %vm1151 = vcmp.ge.f32.partialorder %v1124, 0.0
        %vm1152 = vcmp.ge.f32.partialorder %v1125, 0.0
        %vm1153 = vcmp.ge.f32.partialorder %v1126, 0.0
        %vm1154 = vcmp.ge.f32.partialorder %v1127, 0.0
        %vm1155 = vcmp.ge.f32.partialorder %v1128, 0.0
        %vm1156 = vcmp.ge.f32.partialorder %v1129, 0.0
        %vm1157 = vcmp.ge.f32.partialorder %v1130, 0.0
        %v1158 = vstv %s1131
        %v1159 = vmul.f32 %v1158, %v1105
        %v1160 = vmul.f32 %v1158, %v1106
        %v1161 = vmul.f32 %v1158, %v1107
        %v1162 = vmul.f32 %v1158, %v1108
        %v1163 = vmul.f32 %v1158, %v1109
        %v1164 = vmul.f32 %v1158, %v1110
        %v1165 = vmul.f32 %v1158, %v1111
        %v1166 = vmul.f32 %v1158, %v1112
        %v1167 = vmul.f32 %v1158, %v1113
        %v1168 = vmul.f32 %v1158, %v1114
        %v1169 = vmul.f32 %v1158, %v1115
        %v1170 = vmul.f32 %v1158, %v1116
        %v1171 = vmul.f32 %v1158, %v1117
        %v1172 = vmul.f32 %v1158, %v1118
        %v1173 = vmul.f32 %v1158, %v1119
        %v1174 = vmul.f32 %v1158, %v1120
        %v1175 = vmul.f32 %v1158, %v1121
        %v1176 = vmul.f32 %v1158, %v1122
        %v1177 = vmul.f32 %v1158, %v1123
        %v1178 = vmul.f32 %v1158, %v1124
        %v1179 = vmul.f32 %v1158, %v1125
        %v1180 = vmul.f32 %v1158, %v1126
        %v1181 = vmul.f32 %v1158, %v1127
        %v1182 = vmul.f32 %v1158, %v1128
        %v1183 = vmul.f32 %v1158, %v1129
        %v1184 = vmul.f32 %v1158, %v1130
        %v1185 = vsel %vm1132, %v1105, %v1159
        %v1186 = vsel %vm1133, %v1106, %v1160
        %v1187 = vsel %vm1134, %v1107, %v1161
        %v1188 = vsel %vm1135, %v1108, %v1162
        %v1189 = vsel %vm1136, %v1109, %v1163
        %v1190 = vsel %vm1137, %v1110, %v1164
        %v1191 = vsel %vm1138, %v1111, %v1165
        %v1192 = vsel %vm1139, %v1112, %v1166
        %v1193 = vsel %vm1140, %v1113, %v1167
        %v1194 = vsel %vm1141, %v1114, %v1168
        %v1195 = vsel %vm1142, %v1115, %v1169
        %v1196 = vsel %vm1143, %v1116, %v1170
        %v1197 = vsel %vm1144, %v1117, %v1171
        %v1198 = vsel %vm1145, %v1118, %v1172
        %v1199 = vsel %vm1146, %v1119, %v1173
        %v1200 = vsel %vm1147, %v1120, %v1174
        %v1201 = vsel %vm1148, %v1121, %v1175
        %v1202 = vsel %vm1149, %v1122, %v1176
        %v1203 = vsel %vm1150, %v1123, %v1177
        %v1204 = vsel %vm1151, %v1124, %v1178
        %v1205 = vsel %vm1152, %v1125, %v1179
        %v1206 = vsel %vm1153, %v1126, %v1180
        %v1207 = vsel %vm1154, %v1127, %v1181
        %v1208 = vsel %vm1155, %v1128, %v1182
        %v1209 = vsel %vm1156, %v1129, %v1183
        %v1210 = vsel %vm1157, %v1130, %v1184
        %1211 = vst [vmem:[%s253] sm:$0xff] %v1185
        %1212 = vst [vmem:[%s253 + $0x8] sm:$0xff] %v1186
        %1213 = vst [vmem:[%s253 + $0x10] sm:$0xff] %v1187
        %1214 = vst [vmem:[%s253 + $0x18] sm:$0xff] %v1188
        %1215 = vst [vmem:[%s253 + $0x20] sm:$0xff] %v1189
        %1216 = vst [vmem:[%s253 + $0x28] sm:$0xff] %v1190
        %1217 = vst [vmem:[%s253 + $0x30] sm:$0xff] %v1191
        %1218 = vst [vmem:[%s253 + $0x38] sm:$0xff] %v1192
        %1219 = vst [vmem:[%s253 + $0x40] sm:$0xff] %v1193
        %1220 = vst [vmem:[%s253 + $0x48] sm:$0xff] %v1194
        %1221 = vst [vmem:[%s253 + $0x50] sm:$0xff] %v1195
        %1222 = vst [vmem:[%s253 + $0x58] sm:$0xff] %v1196
        %1223 = vst [vmem:[%s253 + $0x60] sm:$0xff] %v1197
        %1224 = vst [vmem:[%s253 + $0x68] sm:$0xff] %v1198
        %1225 = vst [vmem:[%s253 + $0x70] sm:$0xff] %v1199
        %1226 = vst [vmem:[%s253 + $0x78] sm:$0xff] %v1200
        %1227 = vst [vmem:[%s253 + $0x80] sm:$0xff] %v1201
        %1228 = vst [vmem:[%s253 + $0x88] sm:$0xff] %v1202
        %1229 = vst [vmem:[%s253 + $0x90] sm:$0xff] %v1203
        %1230 = vst [vmem:[%s253 + $0x98] sm:$0xff] %v1204
        %1231 = vst [vmem:[%s253 + $0xa0] sm:$0xff] %v1205
        %1232 = vst [vmem:[%s253 + $0xa8] sm:$0xff] %v1206
        %1233 = vst [vmem:[%s253 + $0xb0] sm:$0xff] %v1207
        %1234 = vst [vmem:[%s253 + $0xb8] sm:$0xff] %v1208
        %1235 = vst [vmem:[%s253 + $0xc0] sm:$0xff] %v1209
        %1236 = vst [vmem:[%s253 + $0xc8] sm:$0xff] %v1210
      $region44: #{mnist_encoder_forward.6} parent=35 // pred_fallthru
        _
      %s1237 = smul.u32 26, %s20
      %p1238 = scmp.lt.s32.totalorder %s1237, 51
      %s1239 = scalar_select %p1238, %s1237, 51
      %s1240 = smul.addr %s1239, 8
      %s1241 = scalar_lea.vmem %s4, %s1240
      // Predicated region
      $region45: #{mnist_encoder_forward.6} parent=35 // pred_check
        %p1242 = pneg %p142
      $region46: #{mnist_encoder_forward.6} parent=35 // pred_check_branch
        %1244 = sbr.rel (%p1242) target = $region48
      $region47: #{mnist_encoder_forward.6} parent=35 // pred_region
        %s1245 = smul.u32 26, %s20
      $region48: #{mnist_encoder_forward.6} parent=35 // pred_fallthru
        _
    $region36: #{mnist_encoder_forward.6} parent=5 // pred_fallthru
      _
    %p1246 = scmp.le.s32.totalorder 2, %s11
    // Predicated region
    $region49: #{mnist_encoder_forward.6} parent=5 // pred_check
      %p1247 = pneg %p1246
    $region50: #{mnist_encoder_forward.6} parent=5 // pred_check_branch
      %1249 = sbr.rel (%p1247) target = $region52
    $region51: #{mnist_encoder_forward.6} parent=5 // pred_region
      %s1250 = ssub.s32 %s11, 2
      // Predicated region
      $region53: #{mnist_encoder_forward.6} parent=51 // pred_check
        %p1251 = pneg %p148
      $region54: #{mnist_encoder_forward.6} parent=51 // pred_check_branch
        %1253 = sbr.rel (%p1251) target = $region56
      $region55: #{mnist_encoder_forward.6} parent=51 // pred_region
        %s1254 = smul.u32 26, %s22
        %p1255 = scmp.lt.s32.totalorder %s1254, 51
        %s1256 = scalar_select %p1255, %s1254, 51
        %s1257 = smul.addr %s1256, 8
        %s1258 = scalar_lea.vmem %s4, %s1257
      $region56: #{mnist_encoder_forward.6} parent=51 // pred_fallthru
        _
    $region52: #{mnist_encoder_forward.6} parent=5 // pred_fallthru
      _
  $region6: #{mnist_encoder_forward.6} parent=0 // loop_footer
    %s15 = sadd.s32 1, %s11
  $region7: #{mnist_encoder_forward.6} parent=0 // loop_footer_branch
    %10 = sbr.rel target = $region3
  $region8: #{mnist_encoder_forward.6} parent=0 // loop_exit
    _

// kernel: mnist_encoder_forward.7
$region0: #{mnist_encoder_forward.7}
  #allocation0 [shape = 'u32[]', space=smem, size = 0x4, offset = 0x4, fixed_abs, tag = 'smem constant byte address 0x4 - core index']
  #allocation1 [shape = 'u32[144,128]{1,0:T(1,128)}', space=vmem, size = 0x12000, scoped, tag = 'internal scratch']
  #allocation2 [shape = 'f32[16,128]{1,0:T(8,128)}', space=vmem, size = 0x2000, scoped, tag = 'scratch operand']
  #allocation3 [shape = 'f32[1]{0:T(128)S(6)}', space=smem, size = 0x200, scoped, tag = 'scoped memory for mnist_encoder_forward.7']
  %s0 = inlined_call_operand.vmem [shape: bf16[16,6400], index: 0, kind: input, shape index: {}]
  %s1 = inlined_call_operand.vmem [shape: bf16[6400,128], index: 1, kind: input, shape index: {}]
  %s2 = inlined_call_operand.vmem [shape: f32[1,128], index: 2, kind: input, shape index: {}]
  %s3 = inlined_call_operand.<no memory space> [shape: f32[1], index: 3, kind: input, shape index: {}]
  %s4 = inlined_call_operand.vmem [shape: f32[16,128], index: 4, kind: output, shape index: {}]
  %s5 = sld [smem:[#allocation0]]
  $region80: #{mnist_encoder_forward.7} parent=0
    _
  %s7 = ssub.s32 1, %s5
  %s8 = scalar_select 0, %s7, %s5
  %9 = sst [smem:[#allocation3]] %s3
  $region1: #{mnist_encoder_forward.7} parent=0
    #allocation4 [shape = 'u8[81920]{0}', space=vmem, size = 0x14000, scoped, tag = 'input window, operand 0']
    loop: start=0, step=1, limit=7
    $region2: #{mnist_encoder_forward.7} parent=1 // loop_pre_header
      _
    $region3: #{mnist_encoder_forward.7} parent=1 // loop_header
      %s11 = sphi 0, %s15
      %p12 = scmp.ge.s32.totalorder %s11, 7
      %s18 = sphi 0, %s30
      %s19 = sphi 0, %s26
      %s20 = sphi 0, %s18
      %s21 = sphi 0, %s19
      %s22 = sphi 0, %s20
      %s23 = sphi 0, %s21
      %s35 = sphi 0, %s37
      %s38 = sphi 0, %s35
      %s39 = sphi 0, %s38
      %s55 = sphi 0, %s39
      %s61 = sphi 0, %s63
      %s64 = sphi 0, %s61
      %s65 = sphi 0, %s64
      %s81 = sphi 0, %s65
      %s85 = sphi 0, %s85
      %s87 = sphi 0, %s85
      %s88 = sphi 0, %s87
      %s102 = sphi 0, %s88
      %s106 = sphi 0, %s106
      %s108 = sphi 0, %s106
      %s109 = sphi 0, %s108
      %s123 = sphi 0, %s109
      %s129 = sphi 0, %s131
      %s132 = sphi 0, %s129
      %s133 = sphi 0, %s132
      %s149 = sphi 0, %s133
    $region4: #{mnist_encoder_forward.7} parent=1 // loop_header_branch
      %14 = sbr.rel (%p12) target = $region8
    $region5: #{mnist_encoder_forward.7} parent=1 // loop_body
      %s16 = ssub.s32 %s11, 1
      %s17 = ssub.s32 %s11, 2
      %s24 = sadd.s32 1, %s19
      %p25 = scmp.ge.s32.totalorder %s24, 5
      %s26 = scalar_select %p25, 0, %s24
      %s27 = sadd.s32 1, %s18
      %s28 = scalar_select %p25, %s27, %s18
      %p29 = scmp.ge.s32.totalorder %s28, 1
      %s30 = scalar_select %p29, 0, %s28
      %s31 = ssub.s32 %s18, %s30
      %s32 = ssub.s32 %s19, %s26
      %s33 = sor.u32 %s31, %s32
      %p34 = scmp.eq.s32.totalorder %s33, 0
      %s36 = sadd.s32 %s35, 1
      %s37 = scalar_select %p34, %s35, %s36
      %p40 = pneg %p34
      %p41 = scmp.eq.s32.totalorder %s11, 4
      %p42 = por %p40, %p41
      %p43 = scmp.ne.s32.totalorder %s35, %s38
      %p44 = scmp.eq.s32.totalorder %s11, 0
      %p45 = por %p43, %p44
      %p46 = scmp.ne.s32.totalorder %s35, %s38
      %p47 = scmp.eq.s32.totalorder %s16, 4
      %p48 = por %p46, %p47
      %p49 = scmp.ne.s32.totalorder %s38, %s39
      %p50 = scmp.eq.s32.totalorder %s16, 0
      %p51 = por %p49, %p50
      %p52 = scmp.ne.s32.totalorder %s38, %s39
      %p53 = scmp.eq.s32.totalorder %s17, 4
      %p54 = por %p52, %p53
      %p56 = scmp.ne.s32.totalorder %s39, %s55
      %p57 = scmp.eq.s32.totalorder %s17, 0
      %p58 = por %p56, %p57
      %s59 = ssub.s32 %s19, %s26
      %p60 = scmp.eq.s32.totalorder %s59, 0
      %s62 = sadd.s32 %s61, 1
      %s63 = scalar_select %p60, %s61, %s62
      %p66 = pneg %p60
      %p67 = scmp.eq.s32.totalorder %s11, 4
      %p68 = por %p66, %p67
      %p69 = scmp.ne.s32.totalorder %s61, %s64
      %p70 = scmp.eq.s32.totalorder %s11, 0
      %p71 = por %p69, %p70
      %p72 = scmp.ne.s32.totalorder %s61, %s64
      %p73 = scmp.eq.s32.totalorder %s16, 4
      %p74 = por %p72, %p73
      %p75 = scmp.ne.s32.totalorder %s64, %s65
      %p76 = scmp.eq.s32.totalorder %s16, 0
      %p77 = por %p75, %p76
      %p78 = scmp.ne.s32.totalorder %s64, %s65
      %p79 = scmp.eq.s32.totalorder %s17, 4
      %p80 = por %p78, %p79
      %p82 = scmp.ne.s32.totalorder %s65, %s81
      %p83 = scmp.eq.s32.totalorder %s17, 0
      %p84 = por %p82, %p83
      %s86 = sadd.s32 %s85, 1
      %p89 = scmp.eq.s32.totalorder %s11, 4
      %p90 = scmp.ne.s32.totalorder %s85, %s87
      %p91 = scmp.eq.s32.totalorder %s11, 0
      %p92 = por %p90, %p91
      %p93 = scmp.ne.s32.totalorder %s85, %s87
      %p94 = scmp.eq.s32.totalorder %s16, 4
      %p95 = por %p93, %p94
      %p96 = scmp.ne.s32.totalorder %s87, %s88
      %p97 = scmp.eq.s32.totalorder %s16, 0
      %p98 = por %p96, %p97
      %p99 = scmp.ne.s32.totalorder %s87, %s88
      %p100 = scmp.eq.s32.totalorder %s17, 4
      %p101 = por %p99, %p100
      %p103 = scmp.ne.s32.totalorder %s88, %s102
      %p104 = scmp.eq.s32.totalorder %s17, 0
      %p105 = por %p103, %p104
      %s107 = sadd.s32 %s106, 1
      %p110 = scmp.eq.s32.totalorder %s11, 4
      %p111 = scmp.ne.s32.totalorder %s106, %s108
      %p112 = scmp.eq.s32.totalorder %s11, 0
      %p113 = por %p111, %p112
      %p114 = scmp.ne.s32.totalorder %s106, %s108
      %p115 = scmp.eq.s32.totalorder %s16, 4
      %p116 = por %p114, %p115
      %p117 = scmp.ne.s32.totalorder %s108, %s109
      %p118 = scmp.eq.s32.totalorder %s16, 0
      %p119 = por %p117, %p118
      %p120 = scmp.ne.s32.totalorder %s108, %s109
      %p121 = scmp.eq.s32.totalorder %s17, 4
      %p122 = por %p120, %p121
      %p124 = scmp.ne.s32.totalorder %s109, %s123
      %p125 = scmp.eq.s32.totalorder %s17, 0
      %p126 = por %p124, %p125
      %s127 = ssub.s32 %s18, %s30
      %p128 = scmp.eq.s32.totalorder %s127, 0
      %s130 = sadd.s32 %s129, 1
      %s131 = scalar_select %p128, %s129, %s130
      %p134 = pneg %p128
      %p135 = scmp.eq.s32.totalorder %s11, 4
      %p136 = por %p134, %p135
      %p137 = scmp.ne.s32.totalorder %s129, %s132
      %p138 = scmp.eq.s32.totalorder %s11, 0
      %p139 = por %p137, %p138
      %p140 = scmp.ne.s32.totalorder %s129, %s132
      %p141 = scmp.eq.s32.totalorder %s16, 4
      %p142 = por %p140, %p141
      %p143 = scmp.ne.s32.totalorder %s132, %s133
      %p144 = scmp.eq.s32.totalorder %s16, 0
      %p145 = por %p143, %p144
      %p146 = scmp.ne.s32.totalorder %s132, %s133
      %p147 = scmp.eq.s32.totalorder %s17, 4
      %p148 = por %p146, %p147
      %p150 = scmp.ne.s32.totalorder %s133, %s149
      %p151 = scmp.eq.s32.totalorder %s17, 0
      %p152 = por %p150, %p151
      %p153 = scmp.le.s32.totalorder 1, %s11
      %p154 = scmp.lt.s32.totalorder %s11, 6
      %p155 = pnand %p153, %p154
      %p156 = pneg %p155
      // Predicated region
      $region9: #{mnist_encoder_forward.7} parent=5 // pred_check
        _
      $region10: #{mnist_encoder_forward.7} parent=5 // pred_check_branch
        %158 = sbr.rel (%p155) target = $region12
      $region11: #{mnist_encoder_forward.7} parent=5 // pred_region
        %s159 = ssub.s32 %s11, 1
        // Predicated region
        $region13: #{mnist_encoder_forward.7} parent=11 // pred_check
          %p160 = pneg %p98
        $region14: #{mnist_encoder_forward.7} parent=11 // pred_check_branch
          %162 = sbr.rel (%p160) target = $region16
        $region15: #{mnist_encoder_forward.7} parent=11 // pred_region
          _
        $region16: #{mnist_encoder_forward.7} parent=11 // pred_fallthru
          _
        // Predicated region
        $region17: #{mnist_encoder_forward.7} parent=11 // pred_check
          %p163 = pneg %p119
        $region18: #{mnist_encoder_forward.7} parent=11 // pred_check_branch
          %165 = sbr.rel (%p163) target = $region20
        $region19: #{mnist_encoder_forward.7} parent=11 // pred_region
          _
        $region20: #{mnist_encoder_forward.7} parent=11 // pred_fallthru
          _
      $region12: #{mnist_encoder_forward.7} parent=5 // pred_fallthru
        _
      %p166 = scmp.lt.s32.totalorder %s11, 5
      // Predicated region
      $region21: #{mnist_encoder_forward.7} parent=5 // pred_check
        %p167 = pneg %p166
      $region22: #{mnist_encoder_forward.7} parent=5 // pred_check_branch
        %169 = sbr.rel (%p167) target = $region24
      $region23: #{mnist_encoder_forward.7} parent=5 // pred_region
        // Predicated region
        $region25: #{mnist_encoder_forward.7} parent=23 // pred_check
          %p170 = pneg %p45
        $region26: #{mnist_encoder_forward.7} parent=23 // pred_check_branch
          %172 = sbr.rel (%p170) target = $region28
        $region27: #{mnist_encoder_forward.7} parent=23 // pred_region
          %s173 = sand.u32 %s35, 1
          %s174 = sand.u32 %s35, 1
          %s175 = smul.addr %s174, 80
          %s176 = scalar_lea.vmem [#allocation4], %s175
          %s177 = smul.u32 2, %s18
          %s178 = smul.u32 10, %s19
          %s179 = smul.addr %s177, 50
          %s180 = sadd.s32 %s178, %s179
          %s181 = smul.addr %s180, 4
          %s182 = scalar_lea.vmem %s0, %s181
          // Predicated region
          $region29: #{mnist_encoder_forward.7} parent=27 // pred_check
            _
          $region30: #{mnist_encoder_forward.7} parent=27 // pred_check_branch
            %184 = sbr.rel (0) target = $region32
          $region31: #{mnist_encoder_forward.7} parent=27 // pred_region
            // Predicated region
            $region33: #{mnist_encoder_forward.7} parent=31 // pred_check
              _
            $region34: #{mnist_encoder_forward.7} parent=31 // pred_check_branch
              %186 = sbr.rel (0) target = $region36
            $region35: #{mnist_encoder_forward.7} parent=31 // pred_region
              loop: start=0, step=1, limit=1
              $region37: #{mnist_encoder_forward.7} parent=35 // loop_pre_header
                _
              $region38: #{mnist_encoder_forward.7} parent=35 // loop_header
                %s188 = sphi 0, %s192
                %p189 = scmp.ge.s32.totalorder %s188, 1
                %s193 = sphi %s182, %s182
                %s194 = sphi %s176, %s176
              $region39: #{mnist_encoder_forward.7} parent=35 // loop_header_branch
                %191 = sbr.rel (%p189) target = $region43
              $region40: #{mnist_encoder_forward.7} parent=35 // loop_body
                %v195 = vld [vmem:[%s193] sm:$0xff]
                %196 = vst [vmem:[%s194] sm:$0xff] %v195
                %v197 = vld [vmem:[%s193 + $0x8] sm:$0xff]
                %198 = vst [vmem:[%s194 + $0x8] sm:$0xff] %v197
                %v199 = vld [vmem:[%s193 + $0x10] sm:$0xff]
                %200 = vst [vmem:[%s194 + $0x10] sm:$0xff] %v199
                %v201 = vld [vmem:[%s193 + $0x18] sm:$0xff]
                %202 = vst [vmem:[%s194 + $0x18] sm:$0xff] %v201
                %v203 = vld [vmem:[%s193 + $0x20] sm:$0xff]
                %204 = vst [vmem:[%s194 + $0x20] sm:$0xff] %v203
                %v205 = vld [vmem:[%s193 + $0xc8] sm:$0xff]
                %206 = vst [vmem:[%s194 + $0x28] sm:$0xff] %v205
                %v207 = vld [vmem:[%s193 + $0xd0] sm:$0xff]
                %208 = vst [vmem:[%s194 + $0x30] sm:$0xff] %v207
                %v209 = vld [vmem:[%s193 + $0xd8] sm:$0xff]
                %210 = vst [vmem:[%s194 + $0x38] sm:$0xff] %v209
                %v211 = vld [vmem:[%s193 + $0xe0] sm:$0xff]
                %212 = vst [vmem:[%s194 + $0x40] sm:$0xff] %v211
                %v213 = vld [vmem:[%s193 + $0xe8] sm:$0xff]
                %214 = vst [vmem:[%s194 + $0x48] sm:$0xff] %v213
              $region41: #{mnist_encoder_forward.7} parent=35 // loop_footer
                %s192 = sadd.s32 1, %s188
              $region42: #{mnist_encoder_forward.7} parent=35 // loop_footer_branch
                %187 = sbr.rel target = $region38
              $region43: #{mnist_encoder_forward.7} parent=35 // loop_exit
                _
            $region36: #{mnist_encoder_forward.7} parent=31 // pred_fallthru
              _
            // Predicated region
            $region44: #{mnist_encoder_forward.7} parent=31 // pred_check
              _
            $region45: #{mnist_encoder_forward.7} parent=31 // pred_check_branch
              %216 = sbr.rel target = $region47
            $region46: #{mnist_encoder_forward.7} parent=31 // pred_region
              _
            $region47: #{mnist_encoder_forward.7} parent=31 // pred_fallthru
              _
          $region32: #{mnist_encoder_forward.7} parent=27 // pred_fallthru
            _
          %217 = vnop
        $region28: #{mnist_encoder_forward.7} parent=23 // pred_fallthru
          _
        // Predicated region
        $region48: #{mnist_encoder_forward.7} parent=23 // pred_check
          %p218 = pneg %p71
        $region49: #{mnist_encoder_forward.7} parent=23 // pred_check_branch
          %220 = sbr.rel (%p218) target = $region51
        $region50: #{mnist_encoder_forward.7} parent=23 // pred_region
          %s221 = smul.u32 160, %s19
          %p222 = scmp.lt.s32.totalorder %s221, 799
          %s223 = scalar_select %p222, %s221, 799
          %s224 = smul.addr %s223, 4
          %s225 = scalar_lea.vmem %s1, %s224
          %s226 = smul.u32 160, %s19
        $region51: #{mnist_encoder_forward.7} parent=23 // pred_fallthru
          _
      $region24: #{mnist_encoder_forward.7} parent=5 // pred_fallthru
        _
      %p227 = scmp.le.s32.totalorder 1, %s11
      %p228 = scmp.lt.s32.totalorder %s11, 6
      %p229 = pnand %p227, %p228
      %p230 = pneg %p229
      // Predicated region
      $region52: #{mnist_encoder_forward.7} parent=5 // pred_check
        _
      $region53: #{mnist_encoder_forward.7} parent=5 // pred_check_branch
        %232 = sbr.rel (%p229) target = $region55
      $region54: #{mnist_encoder_forward.7} parent=5 // pred_region
        %s233 = ssub.s32 %s11, 1
        %s234 = sand.u32 %s38, 1
        %s235 = sand.u32 %s38, 1
        %s236 = smul.addr %s235, 80
        %s237 = scalar_lea.vmem [#allocation4], %s236
        // Predicated region
        $region56: #{mnist_encoder_forward.7} parent=54 // pred_check
          %p238 = pneg %p51
        $region57: #{mnist_encoder_forward.7} parent=54 // pred_check_branch
          %240 = sbr.rel (%p238) target = $region59
        $region58: #{mnist_encoder_forward.7} parent=54 // pred_region
          _
        $region59: #{mnist_encoder_forward.7} parent=54 // pred_fallthru
          _
        %s241 = sand.u32 %s38, 1
        %s242 = sand.u32 %s38, 1
        %s243 = smul.addr %s242, 80
        %s244 = scalar_lea.vmem [#allocation4], %s243
        %p245 = pneg %p51
        %p246 = pneg %p48
        %s247 = smul.u32 160, %s21
        %p248 = scmp.lt.s32.totalorder %s247, 799
        %s249 = scalar_select %p248, %s247, 799
        %s250 = smul.addr %s249, 4
        %s251 = scalar_lea.vmem %s1, %s250
        %p252 = pneg %p77
        %p253 = pneg %p74
        %p254 = pneg %p98
        %p255 = pneg %p95
        %p256 = pneg %p119
        %p257 = pneg %p116
        %p258 = pneg %p145
        %p259 = pneg %p142
        %s260 = smul.u32 2, %s20
        %p261 = scmp.lt.s32.totalorder %s260, 1
        %s262 = scalar_select %p261, %s260, 1
        %s263 = smul.addr %s262, 8
        %s264 = scalar_lea.vmem %s4, %s263
        %s265 = smul.u32 2, %s20
        %s266 = smul.u32 10, %s21
        %s267 = smul.u32 160, %s21
        %p268 = scmp.lt.s32.totalorder %s267, 799
        %s269 = scalar_select %p268, %s267, 799
        %s270 = smul.addr %s269, 4
        %s271 = scalar_lea.vmem %s1, %s270
        %s272 = smul.u32 160, %s21
        %s273 = smul.u32 2, %s20
        %p274 = scmp.lt.s32.totalorder %s273, 1
        %s275 = scalar_select %p274, %s273, 1
        %s276 = smul.addr %s275, 8
        %s277 = scalar_lea.vmem %s4, %s276
        %s278 = smul.u32 2, %s20
        %p280 = scmp.eq.s32.totalorder %s21, 0
        // Predicated region
        $region60: #{mnist_encoder_forward.7} parent=54 // pred_check
          %p281 = pneg %p280
        $region61: #{mnist_encoder_forward.7} parent=54 // pred_check_branch
          %283 = sbr.rel (%p281) target = $region63
        $region62: #{mnist_encoder_forward.7} parent=54 // pred_region
          %284 = vst [vmem:[#allocation2] sm:$0xff] 0.0
          %285 = vst [vmem:[#allocation2 + $0x8] sm:$0xff] 0.0
        $region63: #{mnist_encoder_forward.7} parent=54 // pred_fallthru
          _
        %v286 = vld [vmem:[#allocation2] sm:$0xff]
        %v287 = vld [vmem:[#allocation2 + $0x8] sm:$0xff]
        %v288 = vld [vmem:[%s237] sm:$0xff]
        %v289 = vld [vmem:[%s237 + $0x8] sm:$0xff]
        %v290 = vld [vmem:[%s237 + $0x10] sm:$0xff]
        %v291 = vld [vmem:[%s237 + $0x18] sm:$0xff]
        %v292 = vld [vmem:[%s237 + $0x20] sm:$0xff]
        %v293 = vld [vmem:[%s237 + $0x28] sm:$0xff]
        %v294 = vld [vmem:[%s237 + $0x30] sm:$0xff]
        %v295 = vld [vmem:[%s237 + $0x38] sm:$0xff]
        %v296 = vld [vmem:[%s237 + $0x40] sm:$0xff]
        %v297 = vld [vmem:[%s237 + $0x48] sm:$0xff]
        %v298 = vld [vmem:[%s271] sm:$0xf]
        %v299 = vld [vmem:[%s271 + $0x4] sm:$0xf]
        %v300 = vld [vmem:[%s271 + $0x8] sm:$0xf]
        %v301 = vld [vmem:[%s271 + $0xc] sm:$0xf]
        %v302 = vld [vmem:[%s271 + $0x10] sm:$0xf]
        %v303 = vld [vmem:[%s271 + $0x14] sm:$0xf]
        %v304 = vld [vmem:[%s271 + $0x18] sm:$0xf]
        %v305 = vld [vmem:[%s271 + $0x1c] sm:$0xf]
        %v306 = vld [vmem:[%s271 + $0x20] sm:$0xf]
        %v307 = vld [vmem:[%s271 + $0x24] sm:$0xf]
        %v308 = vld [vmem:[%s271 + $0x28] sm:$0xf]
        %v309 = vld [vmem:[%s271 + $0x2c] sm:$0xf]
        %v310 = vld [vmem:[%s271 + $0x30] sm:$0xf]
        %v311 = vld [vmem:[%s271 + $0x34] sm:$0xf]
        %v312 = vld [vmem:[%s271 + $0x38] sm:$0xf]
        %v313 = vld [vmem:[%s271 + $0x3c] sm:$0xf]
        %v314 = vld [vmem:[%s271 + $0x40] sm:$0xf]
        %v315 = vld [vmem:[%s271 + $0x44] sm:$0xf]
        %v316 = vld [vmem:[%s271 + $0x48] sm:$0xf]
        %v317 = vld [vmem:[%s271 + $0x4c] sm:$0xf]
        %v318 = vld [vmem:[%s271 + $0x50] sm:$0xf]
        %v319 = vld [vmem:[%s271 + $0x54] sm:$0xf]
        %v320 = vld [vmem:[%s271 + $0x58] sm:$0xf]
        %v321 = vld [vmem:[%s271 + $0x5c] sm:$0xf]
        %v322 = vld [vmem:[%s271 + $0x60] sm:$0xf]
        %v323 = vld [vmem:[%s271 + $0x64] sm:$0xf]
        %v324 = vld [vmem:[%s271 + $0x68] sm:$0xf]
        %v325 = vld [vmem:[%s271 + $0x6c] sm:$0xf]
        %v326 = vld [vmem:[%s271 + $0x70] sm:$0xf]
        %v327 = vld [vmem:[%s271 + $0x74] sm:$0xf]
        %v328 = vld [vmem:[%s271 + $0x78] sm:$0xf]
        %v329 = vld [vmem:[%s271 + $0x7c] sm:$0xf]
        %v330 = vld [vmem:[%s271 + $0x80] sm:$0xf]
        %v331 = vld [vmem:[%s271 + $0x84] sm:$0xf]
        %v332 = vld [vmem:[%s271 + $0x88] sm:$0xf]
        %v333 = vld [vmem:[%s271 + $0x8c] sm:$0xf]
        %v334 = vld [vmem:[%s271 + $0x90] sm:$0xf]
        %v335 = vld [vmem:[%s271 + $0x94] sm:$0xf]
        %v336 = vld [vmem:[%s271 + $0x98] sm:$0xf]
        %v337 = vld [vmem:[%s271 + $0x9c] sm:$0xf]
        %v338 = vld [vmem:[%s271 + $0xa0] sm:$0xf]
        %v339 = vld [vmem:[%s271 + $0xa4] sm:$0xf]
        %v340 = vld [vmem:[%s271 + $0xa8] sm:$0xf]
        %v341 = vld [vmem:[%s271 + $0xac] sm:$0xf]
        %v342 = vld [vmem:[%s271 + $0xb0] sm:$0xf]
        %v343 = vld [vmem:[%s271 + $0xb4] sm:$0xf]
        %v344 = vld [vmem:[%s271 + $0xb8] sm:$0xf]
        %v345 = vld [vmem:[%s271 + $0xbc] sm:$0xf]
        %v346 = vld [vmem:[%s271 + $0xc0] sm:$0xf]
        %v347 = vld [vmem:[%s271 + $0xc4] sm:$0xf]
        %v348 = vld [vmem:[%s271 + $0xc8] sm:$0xf]
        %v349 = vld [vmem:[%s271 + $0xcc] sm:$0xf]
        %v350 = vld [vmem:[%s271 + $0xd0] sm:$0xf]
        %v351 = vld [vmem:[%s271 + $0xd4] sm:$0xf]
        %v352 = vld [vmem:[%s271 + $0xd8] sm:$0xf]
        %v353 = vld [vmem:[%s271 + $0xdc] sm:$0xf]
        %v354 = vld [vmem:[%s271 + $0xe0] sm:$0xf]
        %v355 = vld [vmem:[%s271 + $0xe4] sm:$0xf]
        %v356 = vld [vmem:[%s271 + $0xe8] sm:$0xf]
        %v357 = vld [vmem:[%s271 + $0xec] sm:$0xf]
        %v358 = vld [vmem:[%s271 + $0xf0] sm:$0xf]
        %v359 = vld [vmem:[%s271 + $0xf4] sm:$0xf]
        %v360 = vld [vmem:[%s271 + $0xf8] sm:$0xf]
        %v361 = vld [vmem:[%s271 + $0xfc] sm:$0xf]
        %v362 = vld [vmem:[%s271 + $0x100] sm:$0xf]
        %v363 = vld [vmem:[%s271 + $0x104] sm:$0xf]
        %v364 = vld [vmem:[%s271 + $0x108] sm:$0xf]
        %v365 = vld [vmem:[%s271 + $0x10c] sm:$0xf]
        %v366 = vld [vmem:[%s271 + $0x110] sm:$0xf]
        %v367 = vld [vmem:[%s271 + $0x114] sm:$0xf]
        %v368 = vld [vmem:[%s271 + $0x118] sm:$0xf]
        %v369 = vld [vmem:[%s271 + $0x11c] sm:$0xf]
        %v370 = vld [vmem:[%s271 + $0x120] sm:$0xf]
        %v371 = vld [vmem:[%s271 + $0x124] sm:$0xf]
        %v372 = vld [vmem:[%s271 + $0x128] sm:$0xf]
        %v373 = vld [vmem:[%s271 + $0x12c] sm:$0xf]
        %v374 = vld [vmem:[%s271 + $0x130] sm:$0xf]
        %v375 = vld [vmem:[%s271 + $0x134] sm:$0xf]
        %v376 = vld [vmem:[%s271 + $0x138] sm:$0xf]
        %v377 = vld [vmem:[%s271 + $0x13c] sm:$0xf]
        %v378 = vld [vmem:[%s271 + $0x140] sm:$0xf]
        %v379 = vld [vmem:[%s271 + $0x144] sm:$0xf]
        %v380 = vld [vmem:[%s271 + $0x148] sm:$0xf]
        %v381 = vld [vmem:[%s271 + $0x14c] sm:$0xf]
        %v382 = vld [vmem:[%s271 + $0x150] sm:$0xf]
        %v383 = vld [vmem:[%s271 + $0x154] sm:$0xf]
        %v384 = vld [vmem:[%s271 + $0x158] sm:$0xf]
        %v385 = vld [vmem:[%s271 + $0x15c] sm:$0xf]
        %v386 = vld [vmem:[%s271 + $0x160] sm:$0xf]
        %v387 = vld [vmem:[%s271 + $0x164] sm:$0xf]
        %v388 = vld [vmem:[%s271 + $0x168] sm:$0xf]
        %v389 = vld [vmem:[%s271 + $0x16c] sm:$0xf]
        %v390 = vld [vmem:[%s271 + $0x170] sm:$0xf]
        %v391 = vld [vmem:[%s271 + $0x174] sm:$0xf]
        %v392 = vld [vmem:[%s271 + $0x178] sm:$0xf]
        %v393 = vld [vmem:[%s271 + $0x17c] sm:$0xf]
        %v394 = vld [vmem:[%s271 + $0x180] sm:$0xf]
        %v395 = vld [vmem:[%s271 + $0x184] sm:$0xf]
        %v396 = vld [vmem:[%s271 + $0x188] sm:$0xf]
        %v397 = vld [vmem:[%s271 + $0x18c] sm:$0xf]
        %v398 = vld [vmem:[%s271 + $0x190] sm:$0xf]
        %v399 = vld [vmem:[%s271 + $0x194] sm:$0xf]
        %v400 = vld [vmem:[%s271 + $0x198] sm:$0xf]
        %v401 = vld [vmem:[%s271 + $0x19c] sm:$0xf]
        %v402 = vld [vmem:[%s271 + $0x1a0] sm:$0xf]
        %v403 = vld [vmem:[%s271 + $0x1a4] sm:$0xf]
        %v404 = vld [vmem:[%s271 + $0x1a8] sm:$0xf]
        %v405 = vld [vmem:[%s271 + $0x1ac] sm:$0xf]
        %v406 = vld [vmem:[%s271 + $0x1b0] sm:$0xf]
        %v407 = vld [vmem:[%s271 + $0x1b4] sm:$0xf]
        %v408 = vld [vmem:[%s271 + $0x1b8] sm:$0xf]
        %v409 = vld [vmem:[%s271 + $0x1bc] sm:$0xf]
        %v410 = vld [vmem:[%s271 + $0x1c0] sm:$0xf]
        %v411 = vld [vmem:[%s271 + $0x1c4] sm:$0xf]
        %v412 = vld [vmem:[%s271 + $0x1c8] sm:$0xf]
        %v413 = vld [vmem:[%s271 + $0x1cc] sm:$0xf]
        %v414 = vld [vmem:[%s271 + $0x1d0] sm:$0xf]
        %v415 = vld [vmem:[%s271 + $0x1d4] sm:$0xf]
        %v416 = vld [vmem:[%s271 + $0x1d8] sm:$0xf]
        %v417 = vld [vmem:[%s271 + $0x1dc] sm:$0xf]
        %v418 = vld [vmem:[%s271 + $0x1e0] sm:$0xf]
        %v419 = vld [vmem:[%s271 + $0x1e4] sm:$0xf]
        %v420 = vld [vmem:[%s271 + $0x1e8] sm:$0xf]
        %v421 = vld [vmem:[%s271 + $0x1ec] sm:$0xf]
        %v422 = vld [vmem:[%s271 + $0x1f0] sm:$0xf]
        %v423 = vld [vmem:[%s271 + $0x1f4] sm:$0xf]
        %v424 = vld [vmem:[%s271 + $0x1f8] sm:$0xf]
        %v425 = vld [vmem:[%s271 + $0x1fc] sm:$0xf]
        %v426 = vld [vmem:[%s271 + $0x200] sm:$0xf]
        %v427 = vld [vmem:[%s271 + $0x204] sm:$0xf]
        %v428 = vld [vmem:[%s271 + $0x208] sm:$0xf]
        %v429 = vld [vmem:[%s271 + $0x20c] sm:$0xf]
        %v430 = vld [vmem:[%s271 + $0x210] sm:$0xf]
        %v431 = vld [vmem:[%s271 + $0x214] sm:$0xf]
        %v432 = vld [vmem:[%s271 + $0x218] sm:$0xf]
        %v433 = vld [vmem:[%s271 + $0x21c] sm:$0xf]
        %v434 = vld [vmem:[%s271 + $0x220] sm:$0xf]
        %v435 = vld [vmem:[%s271 + $0x224] sm:$0xf]
        %v436 = vld [vmem:[%s271 + $0x228] sm:$0xf]
        %v437 = vld [vmem:[%s271 + $0x22c] sm:$0xf]
        %v438 = vld [vmem:[%s271 + $0x230] sm:$0xf]
        %v439 = vld [vmem:[%s271 + $0x234] sm:$0xf]
        %v440 = vld [vmem:[%s271 + $0x238] sm:$0xf]
        %v441 = vld [vmem:[%s271 + $0x23c] sm:$0xf]
        %v442 = vld [vmem:[%s271 + $0x240] sm:$0xf]
        %v443 = vld [vmem:[%s271 + $0x244] sm:$0xf]
        %v444 = vld [vmem:[%s271 + $0x248] sm:$0xf]
        %v445 = vld [vmem:[%s271 + $0x24c] sm:$0xf]
        %v446 = vld [vmem:[%s271 + $0x250] sm:$0xf]
        %v447 = vld [vmem:[%s271 + $0x254] sm:$0xf]
        %v448 = vld [vmem:[%s271 + $0x258] sm:$0xf]
        %v449 = vld [vmem:[%s271 + $0x25c] sm:$0xf]
        %v450 = vld [vmem:[%s271 + $0x260] sm:$0xf]
        %v451 = vld [vmem:[%s271 + $0x264] sm:$0xf]
        %v452 = vld [vmem:[%s271 + $0x268] sm:$0xf]
        %v453 = vld [vmem:[%s271 + $0x26c] sm:$0xf]
        %v454 = vld [vmem:[%s271 + $0x270] sm:$0xf]
        %v455 = vld [vmem:[%s271 + $0x274] sm:$0xf]
        %v456 = vld [vmem:[%s271 + $0x278] sm:$0xf]
        %v457 = vld [vmem:[%s271 + $0x27c] sm:$0xf]
        %v468 = vunpack.c.l.b16 %v288
        %v469 = vunpack.c.h.b16 %v288
        %v470 = vunpack.c.l.b16 %v289
        %v471 = vunpack.c.h.b16 %v289
        %v472 = vunpack.c.l.b16 %v290
        %v473 = vunpack.c.h.b16 %v290
        %v474 = vunpack.c.l.b16 %v291
        %v475 = vunpack.c.h.b16 %v291
        %v476 = vunpack.c.l.b16 %v292
        %v477 = vunpack.c.h.b16 %v292
        %v478 = vunpack.c.l.b16 %v293
        %v479 = vunpack.c.h.b16 %v293
        %v480 = vunpack.c.l.b16 %v294
        %v481 = vunpack.c.h.b16 %v294
        %v482 = vunpack.c.l.b16 %v295
        %v483 = vunpack.c.h.b16 %v295
        %v484 = vunpack.c.l.b16 %v296
        %v485 = vunpack.c.h.b16 %v296
        %v486 = vunpack.c.l.b16 %v297
        %v487 = vunpack.c.h.b16 %v297
        %v488 = vpack.c.b16 %v478, %v468
        %v489 = vpack.c.b16 %v479, %v469
        %v490 = vpack.c.b16 %v480, %v470
        %v491 = vpack.c.b16 %v481, %v471
        %v492 = vpack.c.b16 %v482, %v472
        %v493 = vpack.c.b16 %v483, %v473
        %v494 = vpack.c.b16 %v484, %v474
        %v495 = vpack.c.b16 %v485, %v475
        %v496 = vpack.c.b16 %v486, %v476
        %v497 = vpack.c.b16 %v487, %v477
        %v668 = vunpack.c.l.b16 %v298
        %v669 = vunpack.c.l.b16 %v299
        %v670 = vunpack.c.l.b16 %v300
        %v671 = vunpack.c.l.b16 %v301
        %v672 = vunpack.c.l.b16 %v302
        %v673 = vunpack.c.l.b16 %v303
        %v674 = vunpack.c.l.b16 %v304
        %v675 = vunpack.c.l.b16 %v305
        %v676 = vunpack.c.l.b16 %v306
        %v677 = vunpack.c.l.b16 %v307
        %v678 = vunpack.c.l.b16 %v308
        %v679 = vunpack.c.l.b16 %v309
        %v680 = vunpack.c.l.b16 %v310
        %v681 = vunpack.c.l.b16 %v311
        %v682 = vunpack.c.l.b16 %v312
        %v683 = vunpack.c.l.b16 %v313
        %v684 = vunpack.c.l.b16 %v314
        %v685 = vunpack.c.l.b16 %v315
        %v686 = vunpack.c.l.b16 %v316
        %v687 = vunpack.c.l.b16 %v317
        %v688 = vunpack.c.l.b16 %v318
        %v689 = vunpack.c.l.b16 %v319
        %v690 = vunpack.c.l.b16 %v320
        %v691 = vunpack.c.l.b16 %v321
        %v692 = vunpack.c.l.b16 %v322
        %v693 = vunpack.c.l.b16 %v323
        %v694 = vunpack.c.l.b16 %v324
        %v695 = vunpack.c.l.b16 %v325
        %v696 = vunpack.c.l.b16 %v326
        %v697 = vunpack.c.l.b16 %v327
        %v698 = vunpack.c.l.b16 %v328
        %v699 = vunpack.c.l.b16 %v329
        %v700 = vunpack.c.l.b16 %v330
        %v701 = vunpack.c.l.b16 %v331
        %v702 = vunpack.c.l.b16 %v332
        %v703 = vunpack.c.l.b16 %v333
        %v704 = vunpack.c.l.b16 %v334
        %v705 = vunpack.c.l.b16 %v335
        %v706 = vunpack.c.l.b16 %v336
        %v707 = vunpack.c.l.b16 %v337
        %v708 = vunpack.c.l.b16 %v338
        %v709 = vunpack.c.l.b16 %v339
        %v710 = vunpack.c.l.b16 %v340
        %v711 = vunpack.c.l.b16 %v341
        %v712 = vunpack.c.l.b16 %v342
        %v713 = vunpack.c.l.b16 %v343
        %v714 = vunpack.c.l.b16 %v344
        %v715 = vunpack.c.l.b16 %v345
        %v716 = vunpack.c.l.b16 %v346
        %v717 = vunpack.c.l.b16 %v347
        %v718 = vunpack.c.l.b16 %v348
        %v719 = vunpack.c.l.b16 %v349
        %v720 = vunpack.c.l.b16 %v350
        %v721 = vunpack.c.l.b16 %v351
        %v722 = vunpack.c.l.b16 %v352
        %v723 = vunpack.c.l.b16 %v353
        %v724 = vunpack.c.l.b16 %v354
        %v725 = vunpack.c.l.b16 %v355
        %v726 = vunpack.c.l.b16 %v356
        %v727 = vunpack.c.l.b16 %v357
        %v728 = vunpack.c.l.b16 %v358
        %v729 = vunpack.c.l.b16 %v359
        %v730 = vunpack.c.l.b16 %v360
        %v731 = vunpack.c.l.b16 %v361
        %v732 = vunpack.c.l.b16 %v362
        %v733 = vunpack.c.l.b16 %v363
        %v734 = vunpack.c.l.b16 %v364
        %v735 = vunpack.c.l.b16 %v365
        %v736 = vunpack.c.l.b16 %v366
        %v737 = vunpack.c.l.b16 %v367
        %v738 = vunpack.c.l.b16 %v368
        %v739 = vunpack.c.l.b16 %v369
        %v740 = vunpack.c.l.b16 %v370
        %v741 = vunpack.c.l.b16 %v371
        %v742 = vunpack.c.l.b16 %v372
        %v743 = vunpack.c.l.b16 %v373
        %v744 = vunpack.c.l.b16 %v374
        %v745 = vunpack.c.l.b16 %v375
        %v746 = vunpack.c.l.b16 %v376
        %v747 = vunpack.c.l.b16 %v377
        %v748 = vunpack.c.l.b16 %v378
        %v749 = vunpack.c.l.b16 %v379
        %v750 = vunpack.c.l.b16 %v380
        %v751 = vunpack.c.l.b16 %v381
        %v752 = vunpack.c.l.b16 %v382
        %v753 = vunpack.c.l.b16 %v383
        %v754 = vunpack.c.l.b16 %v384
        %v755 = vunpack.c.l.b16 %v385
        %v756 = vunpack.c.l.b16 %v386
        %v757 = vunpack.c.l.b16 %v387
        %v758 = vunpack.c.l.b16 %v388
        %v759 = vunpack.c.l.b16 %v389
        %v760 = vunpack.c.l.b16 %v390
        %v761 = vunpack.c.l.b16 %v391
        %v762 = vunpack.c.l.b16 %v392
        %v763 = vunpack.c.l.b16 %v393
        %v764 = vunpack.c.l.b16 %v394
        %v765 = vunpack.c.l.b16 %v395
        %v766 = vunpack.c.l.b16 %v396
        %v767 = vunpack.c.l.b16 %v397
        %v768 = vunpack.c.l.b16 %v398
        %v769 = vunpack.c.l.b16 %v399
        %v770 = vunpack.c.l.b16 %v400
        %v771 = vunpack.c.l.b16 %v401
        %v772 = vunpack.c.l.b16 %v402
        %v773 = vunpack.c.l.b16 %v403
        %v774 = vunpack.c.l.b16 %v404
        %v775 = vunpack.c.l.b16 %v405
        %v776 = vunpack.c.l.b16 %v406
        %v777 = vunpack.c.l.b16 %v407
        %v778 = vunpack.c.l.b16 %v408
        %v779 = vunpack.c.l.b16 %v409
        %v780 = vunpack.c.l.b16 %v410
        %v781 = vunpack.c.l.b16 %v411
        %v782 = vunpack.c.l.b16 %v412
        %v783 = vunpack.c.l.b16 %v413
        %v784 = vunpack.c.l.b16 %v414
        %v785 = vunpack.c.l.b16 %v415
        %v786 = vunpack.c.l.b16 %v416
        %v787 = vunpack.c.l.b16 %v417
        %v788 = vunpack.c.l.b16 %v418
        %v789 = vunpack.c.l.b16 %v419
        %v790 = vunpack.c.l.b16 %v420
        %v791 = vunpack.c.l.b16 %v421
        %v792 = vunpack.c.l.b16 %v422
        %v793 = vunpack.c.l.b16 %v423
        %v794 = vunpack.c.l.b16 %v424
        %v795 = vunpack.c.l.b16 %v425
        %v796 = vunpack.c.l.b16 %v426
        %v797 = vunpack.c.l.b16 %v427
        %v798 = vunpack.c.l.b16 %v428
        %v799 = vunpack.c.l.b16 %v429
        %v800 = vunpack.c.l.b16 %v430
        %v801 = vunpack.c.l.b16 %v431
        %v802 = vunpack.c.l.b16 %v432
        %v803 = vunpack.c.l.b16 %v433
        %v804 = vunpack.c.l.b16 %v434
        %v805 = vunpack.c.l.b16 %v435
        %v806 = vunpack.c.l.b16 %v436
        %v807 = vunpack.c.l.b16 %v437
        %v808 = vunpack.c.l.b16 %v438
        %v809 = vunpack.c.l.b16 %v439
        %v810 = vunpack.c.l.b16 %v440
        %v811 = vunpack.c.l.b16 %v441
        %v812 = vunpack.c.l.b16 %v442
        %v813 = vunpack.c.l.b16 %v443
        %v814 = vunpack.c.l.b16 %v444
        %v815 = vunpack.c.l.b16 %v445
        %v816 = vunpack.c.l.b16 %v446
        %v817 = vunpack.c.l.b16 %v447
        %v818 = vunpack.c.l.b16 %v448
        %v819 = vunpack.c.l.b16 %v449
        %v820 = vunpack.c.l.b16 %v450
        %v821 = vunpack.c.l.b16 %v451
        %v822 = vunpack.c.l.b16 %v452
        %v823 = vunpack.c.l.b16 %v453
        %v824 = vunpack.c.l.b16 %v454
        %v825 = vunpack.c.l.b16 %v455
        %v826 = vunpack.c.l.b16 %v456
        %v827 = vunpack.c.l.b16 %v457
        %v828 = vpack.c.b16 %v669, %v668
        %v829 = vpack.c.b16 %v671, %v670
        %v830 = vpack.c.b16 %v673, %v672
        %v831 = vpack.c.b16 %v675, %v674
        %v832 = vpack.c.b16 %v677, %v676
        %v833 = vpack.c.b16 %v679, %v678
        %v834 = vpack.c.b16 %v681, %v680
        %v835 = vpack.c.b16 %v683, %v682
        %v836 = vpack.c.b16 %v685, %v684
        %v837 = vpack.c.b16 %v687, %v686
        %v838 = vpack.c.b16 %v689, %v688
        %v839 = vpack.c.b16 %v691, %v690
        %v840 = vpack.c.b16 %v693, %v692
        %v841 = vpack.c.b16 %v695, %v694
        %v842 = vpack.c.b16 %v697, %v696
        %v843 = vpack.c.b16 %v699, %v698
        %v844 = vpack.c.b16 %v701, %v700
        %v845 = vpack.c.b16 %v703, %v702
        %v846 = vpack.c.b16 %v705, %v704
        %v847 = vpack.c.b16 %v707, %v706
        %v848 = vpack.c.b16 %v709, %v708
        %v849 = vpack.c.b16 %v711, %v710
        %v850 = vpack.c.b16 %v713, %v712
        %v851 = vpack.c.b16 %v715, %v714
        %v852 = vpack.c.b16 %v717, %v716
        %v853 = vpack.c.b16 %v719, %v718
        %v854 = vpack.c.b16 %v721, %v720
        %v855 = vpack.c.b16 %v723, %v722
        %v856 = vpack.c.b16 %v725, %v724
        %v857 = vpack.c.b16 %v727, %v726
        %v858 = vpack.c.b16 %v729, %v728
        %v859 = vpack.c.b16 %v731, %v730
        %v860 = vpack.c.b16 %v733, %v732
        %v861 = vpack.c.b16 %v735, %v734
        %v862 = vpack.c.b16 %v737, %v736
        %v863 = vpack.c.b16 %v739, %v738
        %v864 = vpack.c.b16 %v741, %v740
        %v865 = vpack.c.b16 %v743, %v742
        %v866 = vpack.c.b16 %v745, %v744
        %v867 = vpack.c.b16 %v747, %v746
        %v868 = vpack.c.b16 %v749, %v748
        %v869 = vpack.c.b16 %v751, %v750
        %v870 = vpack.c.b16 %v753, %v752
        %v871 = vpack.c.b16 %v755, %v754
        %v872 = vpack.c.b16 %v757, %v756
        %v873 = vpack.c.b16 %v759, %v758
        %v874 = vpack.c.b16 %v761, %v760
        %v875 = vpack.c.b16 %v763, %v762
        %v876 = vpack.c.b16 %v765, %v764
        %v877 = vpack.c.b16 %v767, %v766
        %v878 = vpack.c.b16 %v769, %v768
        %v879 = vpack.c.b16 %v771, %v770
        %v880 = vpack.c.b16 %v773, %v772
        %v881 = vpack.c.b16 %v775, %v774
        %v882 = vpack.c.b16 %v777, %v776
        %v883 = vpack.c.b16 %v779, %v778
        %v884 = vpack.c.b16 %v781, %v780
        %v885 = vpack.c.b16 %v783, %v782
        %v886 = vpack.c.b16 %v785, %v784
        %v887 = vpack.c.b16 %v787, %v786
        %v888 = vpack.c.b16 %v789, %v788
        %v889 = vpack.c.b16 %v791, %v790
        %v890 = vpack.c.b16 %v793, %v792
        %v891 = vpack.c.b16 %v795, %v794
        %v892 = vpack.c.b16 %v797, %v796
        %v893 = vpack.c.b16 %v799, %v798
        %v894 = vpack.c.b16 %v801, %v800
        %v895 = vpack.c.b16 %v803, %v802
        %v896 = vpack.c.b16 %v805, %v804
        %v897 = vpack.c.b16 %v807, %v806
        %v898 = vpack.c.b16 %v809, %v808
        %v899 = vpack.c.b16 %v811, %v810
        %v900 = vpack.c.b16 %v813, %v812
        %v901 = vpack.c.b16 %v815, %v814
        %v902 = vpack.c.b16 %v817, %v816
        %v903 = vpack.c.b16 %v819, %v818
        %v904 = vpack.c.b16 %v821, %v820
        %v905 = vpack.c.b16 %v823, %v822
        %v906 = vpack.c.b16 %v825, %v824
        %v907 = vpack.c.b16 %v827, %v826
        %988 = vmatprep.subr.bf16.mxu0 0
        %989 = vmatpush1.bf16.msra.mxu0 %v828
        %990 = vmatprep.subr.bf16.mxu0 0
        %991 = vmatpush1.bf16.msra.mxu0 %v829
        %992 = vmatprep.subr.bf16.mxu0 0
        %993 = vmatpush1.bf16.msra.mxu0 %v830
        %994 = vmatprep.subr.bf16.mxu0 0
        %995 = vmatpush1.bf16.msra.mxu0 %v831
        %996 = vmatprep.subr.bf16.mxu0 0
        %997 = vmatpush1.bf16.msra.mxu0 %v832
        %998 = vmatprep.subr.bf16.mxu0 0
        %999 = vmatpush1.bf16.msra.mxu0 %v833
        %1000 = vmatprep.subr.bf16.mxu0 0
        %1001 = vmatpush1.bf16.msra.mxu0 %v834
        %1002 = vmatprep.subr.bf16.mxu0 0
        %1003 = vmatpush1.bf16.msra.mxu0 %v835
        %1004 = vmatprep.subr.bf16.mxu0 0
        %1005 = vmatpush1.bf16.msra.mxu0 %v836
        %1006 = vmatprep.subr.bf16.mxu0 0
        %1007 = vmatpush1.bf16.msra.mxu0 %v837
        %1008 = vmatprep.subr.bf16.mxu0 0
        %1009 = vmatpush1.bf16.msra.mxu0 %v838
        %1010 = vmatprep.subr.bf16.mxu0 0
        %1011 = vmatpush1.bf16.msra.mxu0 %v839
        %1012 = vmatprep.subr.bf16.mxu0 0
        %1013 = vmatpush1.bf16.msra.mxu0 %v840
        %1014 = vmatprep.subr.bf16.mxu0 0
        %1015 = vmatpush1.bf16.msra.mxu0 %v841
        %1016 = vmatprep.subr.bf16.mxu0 0
        %1017 = vmatpush1.bf16.msra.mxu0 %v842
        %1018 = vmatprep.subr.bf16.mxu0 0
        %1019 = vmatpush1.bf16.msra.mxu0 %v843
        %1020 = vmatprep.mubr.bf16.mxu0 %v489
        %1021 = vmatmul.mubr.bf16.gmra.mrb[0].mxu0 %v488
        %v1022 = vpop.f32.mrb[0].mxu0
        %v1023 = vadd.f32 0.0, %v1022
        %v1024 = vpop.f32.mrb[0].mxu0
        %v1025 = vpop.f32.mrb[0].mxu0
        %v1026 = vadd.f32 0.0, %v1025
        %v1027 = vpop.f32.mrb[0].mxu0
        %1028 = vdwg.mxu0
        %1029 = vmatprep.subr.bf16.mxu0 0
        %1030 = vmatpush1.bf16.msra.mxu0 %v844
        %1031 = vmatprep.subr.bf16.mxu0 0
        %1032 = vmatpush1.bf16.msra.mxu0 %v845
        %1033 = vmatprep.subr.bf16.mxu0 0
        %1034 = vmatpush1.bf16.msra.mxu0 %v846
        %1035 = vmatprep.subr.bf16.mxu0 0
        %1036 = vmatpush1.bf16.msra.mxu0 %v847
        %1037 = vmatprep.subr.bf16.mxu0 0
        %1038 = vmatpush1.bf16.msra.mxu0 %v848
        %1039 = vmatprep.subr.bf16.mxu0 0
        %1040 = vmatpush1.bf16.msra.mxu0 %v849
        %1041 = vmatprep.subr.bf16.mxu0 0
        %1042 = vmatpush1.bf16.msra.mxu0 %v850
        %1043 = vmatprep.subr.bf16.mxu0 0
        %1044 = vmatpush1.bf16.msra.mxu0 %v851
        %1045 = vmatprep.subr.bf16.mxu0 0
        %1046 = vmatpush1.bf16.msra.mxu0 %v852
        %1047 = vmatprep.subr.bf16.mxu0 0
        %1048 = vmatpush1.bf16.msra.mxu0 %v853
        %1049 = vmatprep.subr.bf16.mxu0 0
        %1050 = vmatpush1.bf16.msra.mxu0 %v854
        %1051 = vmatprep.subr.bf16.mxu0 0
        %1052 = vmatpush1.bf16.msra.mxu0 %v855
        %1053 = vmatprep.subr.bf16.mxu0 0
        %1054 = vmatpush1.bf16.msra.mxu0 %v856
        %1055 = vmatprep.subr.bf16.mxu0 0
        %1056 = vmatpush1.bf16.msra.mxu0 %v857
        %1057 = vmatprep.subr.bf16.mxu0 0
        %1058 = vmatpush1.bf16.msra.mxu0 %v858
        %1059 = vmatprep.subr.bf16.mxu0 0
        %1060 = vmatpush1.bf16.msra.mxu0 %v859
        %1061 = vmatprep.mubr.bf16.mxu0 %v491
        %1062 = vmatmul.mubr.bf16.gmra.mrb[0].mxu0 %v490
        %v1063 = vpop.f32.mrb[0].mxu0
        %v1064 = vadd.f32 %v1023, %v1063
        %v1065 = vpop.f32.mrb[0].mxu0
        %v1066 = vpop.f32.mrb[0].mxu0
        %v1067 = vadd.f32 %v1026, %v1066
        %v1068 = vpop.f32.mrb[0].mxu0
        %1069 = vdwg.mxu0
        %1070 = vmatprep.subr.bf16.mxu0 0
        %1071 = vmatpush1.bf16.msra.mxu0 %v860
        %1072 = vmatprep.subr.bf16.mxu0 0
        %1073 = vmatpush1.bf16.msra.mxu0 %v861
        %1074 = vmatprep.subr.bf16.mxu0 0
        %1075 = vmatpush1.bf16.msra.mxu0 %v862
        %1076 = vmatprep.subr.bf16.mxu0 0
        %1077 = vmatpush1.bf16.msra.mxu0 %v863
        %1078 = vmatprep.subr.bf16.mxu0 0
        %1079 = vmatpush1.bf16.msra.mxu0 %v864
        %1080 = vmatprep.subr.bf16.mxu0 0
        %1081 = vmatpush1.bf16.msra.mxu0 %v865
        %1082 = vmatprep.subr.bf16.mxu0 0
        %1083 = vmatpush1.bf16.msra.mxu0 %v866
        %1084 = vmatprep.subr.bf16.mxu0 0
        %1085 = vmatpush1.bf16.msra.mxu0 %v867
        %1086 = vmatprep.subr.bf16.mxu0 0
        %1087 = vmatpush1.bf16.msra.mxu0 %v868
        %1088 = vmatprep.subr.bf16.mxu0 0
        %1089 = vmatpush1.bf16.msra.mxu0 %v869
        %1090 = vmatprep.subr.bf16.mxu0 0
        %1091 = vmatpush1.bf16.msra.mxu0 %v870
        %1092 = vmatprep.subr.bf16.mxu0 0
        %1093 = vmatpush1.bf16.msra.mxu0 %v871
        %1094 = vmatprep.subr.bf16.mxu0 0
        %1095 = vmatpush1.bf16.msra.mxu0 %v872
        %1096 = vmatprep.subr.bf16.mxu0 0
        %1097 = vmatpush1.bf16.msra.mxu0 %v873
        %1098 = vmatprep.subr.bf16.mxu0 0
        %1099 = vmatpush1.bf16.msra.mxu0 %v874
        %1100 = vmatprep.subr.bf16.mxu0 0
        %1101 = vmatpush1.bf16.msra.mxu0 %v875
        %1102 = vmatprep.mubr.bf16.mxu0 %v493
        %1103 = vmatmul.mubr.bf16.gmra.mrb[0].mxu0 %v492
        %v1104 = vpop.f32.mrb[0].mxu0
        %v1105 = vadd.f32 %v1064, %v1104
        %v1106 = vpop.f32.mrb[0].mxu0
        %v1107 = vpop.f32.mrb[0].mxu0
        %v1108 = vadd.f32 %v1067, %v1107
        %v1109 = vpop.f32.mrb[0].mxu0
        %1110 = vdwg.mxu0
        %1111 = vmatprep.subr.bf16.mxu0 0
        %1112 = vmatpush1.bf16.msra.mxu0 %v876
        %1113 = vmatprep.subr.bf16.mxu0 0
        %1114 = vmatpush1.bf16.msra.mxu0 %v877
        %1115 = vmatprep.subr.bf16.mxu0 0
        %1116 = vmatpush1.bf16.msra.mxu0 %v878
        %1117 = vmatprep.subr.bf16.mxu0 0
        %1118 = vmatpush1.bf16.msra.mxu0 %v879
        %1119 = vmatprep.subr.bf16.mxu0 0
        %1120 = vmatpush1.bf16.msra.mxu0 %v880
        %1121 = vmatprep.subr.bf16.mxu0 0
        %1122 = vmatpush1.bf16.msra.mxu0 %v881
        %1123 = vmatprep.subr.bf16.mxu0 0
        %1124 = vmatpush1.bf16.msra.mxu0 %v882
        %1125 = vmatprep.subr.bf16.mxu0 0
        %1126 = vmatpush1.bf16.msra.mxu0 %v883
        %1127 = vmatprep.subr.bf16.mxu0 0
        %1128 = vmatpush1.bf16.msra.mxu0 %v884
        %1129 = vmatprep.subr.bf16.mxu0 0
        %1130 = vmatpush1.bf16.msra.mxu0 %v885
        %1131 = vmatprep.subr.bf16.mxu0 0
        %1132 = vmatpush1.bf16.msra.mxu0 %v886
        %1133 = vmatprep.subr.bf16.mxu0 0
        %1134 = vmatpush1.bf16.msra.mxu0 %v887
        %1135 = vmatprep.subr.bf16.mxu0 0
        %1136 = vmatpush1.bf16.msra.mxu0 %v888
        %1137 = vmatprep.subr.bf16.mxu0 0
        %1138 = vmatpush1.bf16.msra.mxu0 %v889
        %1139 = vmatprep.subr.bf16.mxu0 0
        %1140 = vmatpush1.bf16.msra.mxu0 %v890
        %1141 = vmatprep.subr.bf16.mxu0 0
        %1142 = vmatpush1.bf16.msra.mxu0 %v891
        %1143 = vmatprep.mubr.bf16.mxu0 %v495
        %1144 = vmatmul.mubr.bf16.gmra.mrb[0].mxu0 %v494
        %v1145 = vpop.f32.mrb[0].mxu0
        %v1146 = vadd.f32 %v1105, %v1145
        %v1147 = vpop.f32.mrb[0].mxu0
        %v1148 = vpop.f32.mrb[0].mxu0
        %v1149 = vadd.f32 %v1108, %v1148
        %v1150 = vpop.f32.mrb[0].mxu0
        %1151 = vdwg.mxu0
        %1152 = vmatprep.subr.bf16.mxu0 0
        %1153 = vmatpush1.bf16.msra.mxu0 %v892
        %1154 = vmatprep.subr.bf16.mxu0 0
        %1155 = vmatpush1.bf16.msra.mxu0 %v893
        %1156 = vmatprep.subr.bf16.mxu0 0
        %1157 = vmatpush1.bf16.msra.mxu0 %v894
        %1158 = vmatprep.subr.bf16.mxu0 0
        %1159 = vmatpush1.bf16.msra.mxu0 %v895
        %1160 = vmatprep.subr.bf16.mxu0 0
        %1161 = vmatpush1.bf16.msra.mxu0 %v896
        %1162 = vmatprep.subr.bf16.mxu0 0
        %1163 = vmatpush1.bf16.msra.mxu0 %v897
        %1164 = vmatprep.subr.bf16.mxu0 0
        %1165 = vmatpush1.bf16.msra.mxu0 %v898
        %1166 = vmatprep.subr.bf16.mxu0 0
        %1167 = vmatpush1.bf16.msra.mxu0 %v899
        %1168 = vmatprep.subr.bf16.mxu0 0
        %1169 = vmatpush1.bf16.msra.mxu0 %v900
        %1170 = vmatprep.subr.bf16.mxu0 0
        %1171 = vmatpush1.bf16.msra.mxu0 %v901
        %1172 = vmatprep.subr.bf16.mxu0 0
        %1173 = vmatpush1.bf16.msra.mxu0 %v902
        %1174 = vmatprep.subr.bf16.mxu0 0
        %1175 = vmatpush1.bf16.msra.mxu0 %v903
        %1176 = vmatprep.subr.bf16.mxu0 0
        %1177 = vmatpush1.bf16.msra.mxu0 %v904
        %1178 = vmatprep.subr.bf16.mxu0 0
        %1179 = vmatpush1.bf16.msra.mxu0 %v905
        %1180 = vmatprep.subr.bf16.mxu0 0
        %1181 = vmatpush1.bf16.msra.mxu0 %v906
        %1182 = vmatprep.subr.bf16.mxu0 0
        %1183 = vmatpush1.bf16.msra.mxu0 %v907
        %1184 = vmatprep.mubr.bf16.mxu0 %v497
        %1185 = vmatmul.mubr.bf16.gmra.mrb[0].mxu0 %v496
        %v1186 = vpop.f32.mrb[0].mxu0
        %v1187 = vadd.f32 %v1146, %v1186
        %v1188 = vpop.f32.mrb[0].mxu0
        %v1189 = vpop.f32.mrb[0].mxu0
        %v1190 = vadd.f32 %v1149, %v1189
        %v1191 = vpop.f32.mrb[0].mxu0
        %1192 = vdwg.mxu0
        %v1193 = vadd.f32 %v286, %v1187
        %v1194 = vadd.f32 %v287, %v1190
        %1195 = vst [vmem:[#allocation2] sm:$0xff] %v1193
        %1196 = vst [vmem:[#allocation2 + $0x8] sm:$0xff] %v1194
        %p1197 = scmp.eq.s32.totalorder %s21, 4
        // Predicated region
        $region64: #{mnist_encoder_forward.7} parent=54 // pred_check
          %p1198 = pneg %p1197
        $region65: #{mnist_encoder_forward.7} parent=54 // pred_check_branch
          %1200 = sbr.rel (%p1198) target = $region67
        $region66: #{mnist_encoder_forward.7} parent=54 // pred_region
          %v1201 = vld [vmem:[#allocation2] sm:$0xff]
          %v1202 = vld [vmem:[#allocation2 + $0x8] sm:$0xff]
          %v1203 = vld [vmem:[%s2] sm:$0x1]
          %v1205 = vlaneseq
          %v1206 = vshrl.u32 %v1205, 7
          %v1207 = vsub.s32 0, %v1206
          %v1208 = vrot.slane %v1203, %v1207
          %v1210 = vadd.f32 %v1201, %v1208
          %v1211 = vadd.f32 %v1202, %v1208
          %s1212 = sld [smem:[#allocation3]]
          %vm1213 = vcmp.ge.f32.partialorder %v1210, 0.0
          %vm1214 = vcmp.ge.f32.partialorder %v1211, 0.0
          %v1215 = vstv %s1212
          %v1216 = vmul.f32 %v1215, %v1210
          %v1217 = vmul.f32 %v1215, %v1211
          %v1218 = vsel %vm1213, %v1210, %v1216
          %v1219 = vsel %vm1214, %v1211, %v1217
          %1220 = vst [vmem:[%s277] sm:$0xff] %v1218
          %1221 = vst [vmem:[%s277 + $0x8] sm:$0xff] %v1219
        $region67: #{mnist_encoder_forward.7} parent=54 // pred_fallthru
          _
        %s1222 = smul.u32 2, %s20
        %p1223 = scmp.lt.s32.totalorder %s1222, 1
        %s1224 = scalar_select %p1223, %s1222, 1
        %s1225 = smul.addr %s1224, 8
        %s1226 = scalar_lea.vmem %s4, %s1225
        // Predicated region
        $region68: #{mnist_encoder_forward.7} parent=54 // pred_check
          %p1227 = pneg %p142
        $region69: #{mnist_encoder_forward.7} parent=54 // pred_check_branch
          %1229 = sbr.rel (%p1227) target = $region71
        $region70: #{mnist_encoder_forward.7} parent=54 // pred_region
          %s1230 = smul.u32 2, %s20
        $region71: #{mnist_encoder_forward.7} parent=54 // pred_fallthru
          _
        // Predicated region
        $region72: #{mnist_encoder_forward.7} parent=54 // pred_check
          %p1231 = pneg %p142
        $region73: #{mnist_encoder_forward.7} parent=54 // pred_check_branch
          %1233 = sbr.rel (%p1231) target = $region75
        $region74: #{mnist_encoder_forward.7} parent=54 // pred_region
          %s1234 = smul.u32 2, %s20
          %p1235 = scmp.lt.s32.totalorder %s1234, 1
          %s1236 = scalar_select %p1235, %s1234, 1
          %s1237 = smul.addr %s1236, 8
          %s1238 = scalar_lea.vmem %s4, %s1237
        $region75: #{mnist_encoder_forward.7} parent=54 // pred_fallthru
          _
      $region55: #{mnist_encoder_forward.7} parent=5 // pred_fallthru
        _
      %p1239 = scmp.le.s32.totalorder 2, %s11
      // Predicated region
      $region76: #{mnist_encoder_forward.7} parent=5 // pred_check
        %p1240 = pneg %p1239
      $region77: #{mnist_encoder_forward.7} parent=5 // pred_check_branch
        %1242 = sbr.rel (%p1240) target = $region79
      $region78: #{mnist_encoder_forward.7} parent=5 // pred_region
        %s1243 = ssub.s32 %s11, 2
      $region79: #{mnist_encoder_forward.7} parent=5 // pred_fallthru
        _
    $region6: #{mnist_encoder_forward.7} parent=1 // loop_footer
      %s15 = sadd.s32 1, %s11
    $region7: #{mnist_encoder_forward.7} parent=1 // loop_footer_branch
      %10 = sbr.rel target = $region3
    $region8: #{mnist_encoder_forward.7} parent=1 // loop_exit
      _

</llo_original>
